<compile_context>
chip_gen: v6e
topology: v6e:2x2x1
jax: 0.10.0
libtpu: 0.0.40
codegen_flags: <defaults>
</compile_context>

<pallas_src>
import functools

import jax
import jax.numpy as jnp
from jax.experimental import pallas as pl
from jax.experimental.pallas import tpu as pltpu


# --------------------------------------------------------------------------- #
# Fused CLIP-vision forward kernel (one batch row per grid step)
# --------------------------------------------------------------------------- #
def _clip_fused_kernel(xp_ref, pw_ref, pb_ref, cls_ref, pos_ref,
                       pre_g_ref, pre_b_ref,
                       ln1_g_ref, ln1_b_ref, qkv_w_ref, qkv_b_ref,
                       wo_ref, bo_ref, ln2_g_ref, ln2_b_ref,
                       fc1_w_ref, fc1_b_ref, fc2_w_ref, fc2_b_ref,
                       post_g_ref, post_b_ref, proj_w_ref,
                       out_ref, *, heads, eps=1e-5):
    S, D = pos_ref.shape
    L = qkv_w_ref.shape[0]
    HD = D // heads

    def ln(x, g, b):
        mu = jnp.mean(x, axis=-1, keepdims=True)
        var = jnp.mean(jnp.square(x - mu), axis=-1, keepdims=True)
        return (x - mu) * jax.lax.rsqrt(var + eps) * g + b

    # --- patch embedding (pixel normalization already folded into pw/pb) ----
    # xp_ref[0] row 0 is a zero pad for the CLS slot; its matmul result is discarded.
    pe = jnp.dot(xp_ref[0], pw_ref[...],
                 preferred_element_type=jnp.float32) + pb_ref[...]        # (S, D)
    row = jax.lax.broadcasted_iota(jnp.int32, (S, D), 0)
    cls = jnp.broadcast_to(cls_ref[...], (S, D))
    h = jnp.where(row == 0, cls, pe) + pos_ref[...]                        # (S, D)
    h = ln(h, pre_g_ref[...], pre_b_ref[...])                              # pre_layrnorm

    for l in range(L):                                                     # static unroll
        # ------------------------- self-attention -------------------------
        hn = ln(h, ln1_g_ref[l], ln1_b_ref[l])
        qkv = jnp.dot(hn, qkv_w_ref[l],
                      preferred_element_type=jnp.float32) + qkv_b_ref[l]   # (S, 3D)
        wo_l = wo_ref[l]                                                   # (D, D)
        acc = jnp.zeros((S, D), jnp.float32)
        for hh in range(heads):                                            # unrolled, in-kernel
            q = qkv[:, hh * HD:(hh + 1) * HD]                # 1/sqrt(HD) folded into W_q/b_q
            k = qkv[:, D + hh * HD: D + (hh + 1) * HD]
            v = qkv[:, 2 * D + hh * HD: 2 * D + (hh + 1) * HD]
            # contract last dims directly (no explicit k.T materialization)
            s = jax.lax.dot_general(q, k, (((1,), (1,)), ((), ())),
                                    preferred_element_type=jnp.float32)    # (S, S)
            m = jnp.max(s, axis=-1, keepdims=True)
            p = jnp.exp(s - m)
            p = p * pl.reciprocal(jnp.sum(p, axis=-1, keepdims=True), approx=True)
            o = jnp.dot(p, v, preferred_element_type=jnp.float32)          # (S, HD)
            # concat-of-heads @ W_o  ==  sum_h  o_h @ W_o[h*HD:(h+1)*HD, :]
            acc = acc + jnp.dot(o, wo_l[hh * HD:(hh + 1) * HD, :],
                                preferred_element_type=jnp.float32)
        h = h + acc + bo_ref[l]
        # ------------------------------ MLP -------------------------------
        hn = ln(h, ln2_g_ref[l], ln2_b_ref[l])
        m1 = jnp.dot(hn, fc1_w_ref[l],
                     preferred_element_type=jnp.float32) + fc1_b_ref[l]
        m1 = m1 * jax.nn.sigmoid(1.702 * m1)                               # CLIP quick-GELU
        m2 = jnp.dot(m1, fc2_w_ref[l],
                     preferred_element_type=jnp.float32) + fc2_b_ref[l]
        h = h + m2

    # post-LN on CLS token + visual projection (no bias in CLIP)
    cls_tok = ln(h[0:1, :], post_g_ref[...], post_b_ref[...])              # (1, D)
    out_ref[0] = jnp.dot(cls_tok, proj_w_ref[...],
                         preferred_element_type=jnp.float32)               # (1, proj)


# --------------------------------------------------------------------------- #
# Mini CLIP vision model (deterministic synthetic weights)
# --------------------------------------------------------------------------- #
CFG = dict(
    image_size=32, patch=8, channels=3,
    hidden=32, heads=4, mlp=64, layers=2, proj=16,
)

CLIP_MEAN = jnp.array([0.48145466, 0.4578275, 0.40821073], jnp.float32)
CLIP_STD = jnp.array([0.26862954, 0.26130258, 0.27577711], jnp.float32)


def init_params(key, cfg):
    D, C, p = cfg["hidden"], cfg["channels"], cfg["patch"]
    gh = cfg["image_size"] // p
    S = gh * gh + 1
    L = cfg["layers"]

    def nrm(k, shape, std=0.02):
        return (std * jax.random.normal(k, shape)).astype(jnp.float32)

    keys = iter(jax.random.split(key, 8 + 12 * L))
    params = {
        # conv weight (D, C, p, p) flattened to (C*p*p, D) for the matmul kernel
        "patch_w": nrm(next(keys), (D, C * p * p)).T,
        "class_emb": nrm(next(keys), (D,)),
        "pos_emb": nrm(next(keys), (S, D)),
        "pre_ln_g": jnp.ones((D,), jnp.float32),
        "pre_ln_b": jnp.zeros((D,), jnp.float32),
        "post_ln_g": jnp.ones((D,), jnp.float32),
        "post_ln_b": jnp.zeros((D,), jnp.float32),
        "proj_w": nrm(next(keys), (D, cfg["proj"])),
        "layers": [],
    }
    for _ in range(L):
        lp = {
            "ln1_g": jnp.ones((D,), jnp.float32), "ln1_b": jnp.zeros((D,), jnp.float32),
            "wq": nrm(next(keys), (D, D)), "bq": jnp.zeros((D,), jnp.float32),
            "wk": nrm(next(keys), (D, D)), "bk": jnp.zeros((D,), jnp.float32),
            "wv": nrm(next(keys), (D, D)), "bv": jnp.zeros((D,), jnp.float32),
            "wo": nrm(next(keys), (D, D)), "bo": jnp.zeros((D,), jnp.float32),
            "ln2_g": jnp.ones((D,), jnp.float32), "ln2_b": jnp.zeros((D,), jnp.float32),
            "fc1_w": nrm(next(keys), (D, cfg["mlp"])), "fc1_b": jnp.zeros((cfg["mlp"],), jnp.float32),
            "fc2_w": nrm(next(keys), (cfg["mlp"], D)), "fc2_b": jnp.zeros((D,), jnp.float32),
        }
        params["layers"].append(lp)
    return params


def _prepare_fused_params(params, cfg):
    """One-time weight transforms: fold CLIP pixel normalization into the patch
    matmul, fold the 1/sqrt(Dh) attention scale into W_q/b_q, fuse QKV, and
    stack per-layer weights along a leading layer axis."""
    D, p, NH = cfg["hidden"], cfg["patch"], cfg["heads"]
    HD = D // NH
    scale = HD ** -0.5

    # normalize-then-matmul == matmul with re-scaled weights + derived bias
    inv_std = jnp.repeat(1.0 / CLIP_STD, p * p)                  # channel-major (C,p,p) layout
    mean_over_std = jnp.repeat(CLIP_MEAN / CLIP_STD, p * p)
    pw = params["patch_w"]                                       # (C*p*p, D)
    pw_f = pw * inv_std[:, None]
    pb_f = -(mean_over_std[None, :] @ pw)                        # (1, D)

    lays = params["layers"]
    row = lambda a: a.reshape(1, -1)
    return {
        "patch_w": pw_f, "patch_b": pb_f,
        "class_emb": row(params["class_emb"]),
        "pos_emb": params["pos_emb"],
        "pre_g": row(params["pre_ln_g"]), "pre_b": row(params["pre_ln_b"]),
        "post_g": row(params["post_ln_g"]), "post_b": row(params["post_ln_b"]),
        "proj_w": params["proj_w"],
        "ln1_g": jnp.stack([row(lp["ln1_g"]) for lp in lays]),
        "ln1_b": jnp.stack([row(lp["ln1_b"]) for lp in lays]),
        "qkv_w": jnp.stack([jnp.concatenate(
            [lp["wq"] * scale, lp["wk"], lp["wv"]], axis=1) for lp in lays]),   # (L, D, 3D)
        "qkv_b": jnp.stack([row(jnp.concatenate(
            [lp["bq"] * scale, lp["bk"], lp["bv"]])) for lp in lays]),          # (L, 1, 3D)
        "wo": jnp.stack([lp["wo"] for lp in lays]),
        "bo": jnp.stack([row(lp["bo"]) for lp in lays]),
        "ln2_g": jnp.stack([row(lp["ln2_g"]) for lp in lays]),
        "ln2_b": jnp.stack([row(lp["ln2_b"]) for lp in lays]),
        "fc1_w": jnp.stack([lp["fc1_w"] for lp in lays]),
        "fc1_b": jnp.stack([row(lp["fc1_b"]) for lp in lays]),
        "fc2_w": jnp.stack([lp["fc2_w"] for lp in lays]),
        "fc2_b": jnp.stack([row(lp["fc2_b"]) for lp in lays]),
    }


def clip_image_features(params, x, cfg):
    B, C, H, W = x.shape
    p, D, NH, L = cfg["patch"], cfg["hidden"], cfg["heads"], cfg["layers"]
    P, MLP = cfg["proj"], cfg["mlp"]
    assert C == 3, "CLIP pixel normalization assumes 3 channels"
    gh, gw = H // p, W // p
    n_patch = gh * gw
    S = n_patch + 1
    Cpp = C * p * p

    fp = _prepare_fused_params(params, cfg)

    # NCHW -> flattened (C, p, p) patches; prepend one zero row per batch for the CLS slot
    xp = x.reshape(B, C, gh, p, gw, p).transpose(0, 2, 4, 1, 3, 5).reshape(B, n_patch, Cpp)
    xp = jnp.pad(xp, ((0, 0), (1, 0), (0, 0)))                   # (B, S, Cpp)

    full2 = lambda shp: pl.BlockSpec(shp, lambda b: (0, 0))
    full3 = lambda shp: pl.BlockSpec(shp, lambda b: (0, 0, 0))

    in_specs = [
        pl.BlockSpec((1, S, Cpp), lambda b: (b, 0, 0)),          # patches (per batch row)
        full2((Cpp, D)), full2((1, D)),                          # folded patch w / b
        full2((1, D)), full2((S, D)),                            # class emb, pos emb
        full2((1, D)), full2((1, D)),                            # pre-LN
        full3((L, 1, D)), full3((L, 1, D)),                      # ln1
        full3((L, D, 3 * D)), full3((L, 1, 3 * D)),              # fused QKV
        full3((L, D, D)), full3((L, 1, D)),                      # attn out-proj
        full3((L, 1, D)), full3((L, 1, D)),                      # ln2
        full3((L, D, MLP)), full3((L, 1, MLP)),                  # fc1
        full3((L, MLP, D)), full3((L, 1, D)),                    # fc2
        full2((1, D)), full2((1, D)),                            # post-LN
        full2((D, P)),                                           # visual projection
    ]

    feats = pl.pallas_call(
        functools.partial(_clip_fused_kernel, heads=NH),
        out_shape=jax.ShapeDtypeStruct((B, 1, P), jnp.float32),
        grid=(B,),
        in_specs=in_specs,
        out_specs=pl.BlockSpec((1, 1, P), lambda b: (b, 0, 0)),
        compiler_params=pltpu.CompilerParams(
            dimension_semantics=("parallel",)),
    )(xp, fp["patch_w"], fp["patch_b"], fp["class_emb"], fp["pos_emb"],
      fp["pre_g"], fp["pre_b"],
      fp["ln1_g"], fp["ln1_b"], fp["qkv_w"], fp["qkv_b"],
      fp["wo"], fp["bo"], fp["ln2_g"], fp["ln2_b"],
      fp["fc1_w"], fp["fc1_b"], fp["fc2_w"], fp["fc2_b"],
      fp["post_g"], fp["post_b"], fp["proj_w"])

    return feats.reshape(B, P)                                   # (B, proj)


# --------------------------------------------------------------------------- #
# Pure-JAX reference (un-fused, un-folded math) for numerical validation
# --------------------------------------------------------------------------- #
def clip_image_features_ref(params, x, cfg, eps=1e-5):
    D, p, NH, L = cfg["hidden"], cfg["patch"], cfg["heads"], cfg["layers"]
    HD = D // NH
    B, C, H, W = x.shape
    gh, gw = H // p, W // p
    S = gh * gw + 1

    xn = (x - CLIP_MEAN[None, :, None, None]) / CLIP_STD[None, :, None, None]
    xp = xn.reshape(B, C, gh, p, gw, p).transpose(0, 2, 4, 1, 3, 5).reshape(B, gh * gw, C * p * p)
    pe = xp @ params["patch_w"]                                            # (B, n_patch, D)
    cls = jnp.broadcast_to(params["class_emb"][None, None, :], (B, 1, D))
    h = jnp.concatenate([cls, pe], axis=1) + params["pos_emb"][None]

    def ln(x, g, b):
        mu = x.mean(-1, keepdims=True)
        var = ((x - mu) ** 2).mean(-1, keepdims=True)
        return (x - mu) / jnp.sqrt(var + eps) * g + b

    h = ln(h, params["pre_ln_g"], params["pre_ln_b"])
    scale = HD ** -0.5
    for lp in params["layers"]:
        hn = ln(h, lp["ln1_g"], lp["ln1_b"])
        q = ((hn @ lp["wq"] + lp["bq"]) * scale).reshape(B, S, NH, HD).transpose(0, 2, 1, 3)
        k = (hn @ lp["wk"] + lp["bk"]).reshape(B, S, NH, HD).transpose(0, 2, 1, 3)
        v = (hn @ lp["wv"] + lp["bv"]).reshape(B, S, NH, HD).transpose(0, 2, 1, 3)
        att = jax.nn.softmax(q @ k.transpose(0, 1, 3, 2), axis=-1)
        o = (att @ v).transpose(0, 2, 1, 3).reshape(B, S, D)
        h = h + o @ lp["wo"] + lp["bo"]
        hn = ln(h, lp["ln2_g"], lp["ln2_b"])
        m = hn @ lp["fc1_w"] + lp["fc1_b"]
        m = m * jax.nn.sigmoid(1.702 * m)
        h = h + m @ lp["fc2_w"] + lp["fc2_b"]

    cls_out = ln(h[:, 0, :], params["post_ln_g"], params["post_ln_b"])
    return cls_out @ params["proj_w"]                                      # (B, proj)


if __name__ == "__main__":
    key = jax.random.PRNGKey(0)
    k_img, k_par = jax.random.split(key)

    B, C, H, W = 2, CFG["channels"], CFG["image_size"], CFG["image_size"]
    x = jax.random.uniform(k_img, (B, C, H, W), dtype=jnp.float32)   # pixels in [0, 1]

    params = init_params(k_par, CFG)
    fwd = jax.jit(lambda prm, img: clip_image_features(prm, img, CFG))
    feats = jax.block_until_ready(fwd(params, x))

    assert feats.shape == (B, CFG["proj"]) and feats.dtype == jnp.float32
    assert bool(jnp.all(jnp.isfinite(feats)))

    ref = clip_image_features_ref(params, x, CFG)
    max_err = float(jnp.max(jnp.abs(feats - ref)))
    assert max_err < 5e-3, f"kernel vs reference max abs error {max_err}"
    print("KERNEL_OK")
</pallas_src>

<mosaic_0001>
module attributes {stable_mosaic.version = 11 : i64} {
  func.func @_clip_fused_kernel(%arg0: i32, %arg1: memref<1x17x192xf32, #tpu.memory_space<vmem>>, %arg2: memref<192x32xf32, #tpu.memory_space<vmem>>, %arg3: memref<1x32xf32, #tpu.memory_space<vmem>>, %arg4: memref<1x32xf32, #tpu.memory_space<vmem>>, %arg5: memref<17x32xf32, #tpu.memory_space<vmem>>, %arg6: memref<1x32xf32, #tpu.memory_space<vmem>>, %arg7: memref<1x32xf32, #tpu.memory_space<vmem>>, %arg8: memref<2x1x32xf32, #tpu.memory_space<vmem>>, %arg9: memref<2x1x32xf32, #tpu.memory_space<vmem>>, %arg10: memref<2x32x96xf32, #tpu.memory_space<vmem>>, %arg11: memref<2x1x96xf32, #tpu.memory_space<vmem>>, %arg12: memref<2x32x32xf32, #tpu.memory_space<vmem>>, %arg13: memref<2x1x32xf32, #tpu.memory_space<vmem>>, %arg14: memref<2x1x32xf32, #tpu.memory_space<vmem>>, %arg15: memref<2x1x32xf32, #tpu.memory_space<vmem>>, %arg16: memref<2x32x64xf32, #tpu.memory_space<vmem>>, %arg17: memref<2x1x64xf32, #tpu.memory_space<vmem>>, %arg18: memref<2x64x32xf32, #tpu.memory_space<vmem>>, %arg19: memref<2x1x32xf32, #tpu.memory_space<vmem>>, %arg20: memref<1x32xf32, #tpu.memory_space<vmem>>, %arg21: memref<1x32xf32, #tpu.memory_space<vmem>>, %arg22: memref<32x16xf32, #tpu.memory_space<vmem>>, %arg23: memref<1x1x16xf32, #tpu.memory_space<vmem>>) attributes {dimension_semantics = [#tpu.dimension_semantics<parallel>], iteration_bounds = array<i64: 2>, scalar_prefetch = 0 : i64, scratch_operands = 0 : i64, tpu.core_type = #tpu.core_type<tc>, window_params = [{transform_indices = @transform_0, window_bounds = array<i64: 1, 17, 192>}, {pipeline_mode = #tpu.pipeline_mode<synchronous>, transform_indices = @transform_1, window_bounds = array<i64: 192, 32>}, {pipeline_mode = #tpu.pipeline_mode<synchronous>, transform_indices = @transform_2, window_bounds = array<i64: 1, 32>}, {pipeline_mode = #tpu.pipeline_mode<synchronous>, transform_indices = @transform_3, window_bounds = array<i64: 1, 32>}, {pipeline_mode = #tpu.pipeline_mode<synchronous>, transform_indices = @transform_4, window_bounds = array<i64: 17, 32>}, {pipeline_mode = #tpu.pipeline_mode<synchronous>, transform_indices = @transform_5, window_bounds = array<i64: 1, 32>}, {pipeline_mode = #tpu.pipeline_mode<synchronous>, transform_indices = @transform_6, window_bounds = array<i64: 1, 32>}, {pipeline_mode = #tpu.pipeline_mode<synchronous>, transform_indices = @transform_7, window_bounds = array<i64: 2, 1, 32>}, {pipeline_mode = #tpu.pipeline_mode<synchronous>, transform_indices = @transform_8, window_bounds = array<i64: 2, 1, 32>}, {pipeline_mode = #tpu.pipeline_mode<synchronous>, transform_indices = @transform_9, window_bounds = array<i64: 2, 32, 96>}, {pipeline_mode = #tpu.pipeline_mode<synchronous>, transform_indices = @transform_10, window_bounds = array<i64: 2, 1, 96>}, {pipeline_mode = #tpu.pipeline_mode<synchronous>, transform_indices = @transform_11, window_bounds = array<i64: 2, 32, 32>}, {pipeline_mode = #tpu.pipeline_mode<synchronous>, transform_indices = @transform_12, window_bounds = array<i64: 2, 1, 32>}, {pipeline_mode = #tpu.pipeline_mode<synchronous>, transform_indices = @transform_13, window_bounds = array<i64: 2, 1, 32>}, {pipeline_mode = #tpu.pipeline_mode<synchronous>, transform_indices = @transform_14, window_bounds = array<i64: 2, 1, 32>}, {pipeline_mode = #tpu.pipeline_mode<synchronous>, transform_indices = @transform_15, window_bounds = array<i64: 2, 32, 64>}, {pipeline_mode = #tpu.pipeline_mode<synchronous>, transform_indices = @transform_16, window_bounds = array<i64: 2, 1, 64>}, {pipeline_mode = #tpu.pipeline_mode<synchronous>, transform_indices = @transform_17, window_bounds = array<i64: 2, 64, 32>}, {pipeline_mode = #tpu.pipeline_mode<synchronous>, transform_indices = @transform_18, window_bounds = array<i64: 2, 1, 32>}, {pipeline_mode = #tpu.pipeline_mode<synchronous>, transform_indices = @transform_19, window_bounds = array<i64: 1, 32>}, {pipeline_mode = #tpu.pipeline_mode<synchronous>, transform_indices = @transform_20, window_bounds = array<i64: 1, 32>}, {pipeline_mode = #tpu.pipeline_mode<synchronous>, transform_indices = @transform_21, window_bounds = array<i64: 32, 16>}, {transform_indices = @transform_22, window_bounds = array<i64: 1, 1, 16>}]} {
    %c0 = arith.constant 0 : index
    %c0_0 = arith.constant 0 : index
    %c0_1 = arith.constant 0 : index
    %0 = vector.load %arg1[%c0, %c0_0, %c0_1] : memref<1x17x192xf32, #tpu.memory_space<vmem>>, vector<1x17x192xf32>
    %1 = vector.shape_cast %0 : vector<1x17x192xf32> to vector<17x192xf32>
    %c0_2 = arith.constant 0 : index
    %c0_3 = arith.constant 0 : index
    %2 = vector.load %arg2[%c0_2, %c0_3] : memref<192x32xf32, #tpu.memory_space<vmem>>, vector<192x32xf32>
    %cst = arith.constant dense<0.000000e+00> : vector<17x32xf32>
    %3 = tpu.matmul %1, %2, %cst {dimension_numbers = #tpu.dot_dimension_numbers<[1], [0], [0], [1], [0, 0, 1, 1], [], []>} : vector<17x192xf32>, vector<192x32xf32>, vector<17x32xf32> -> vector<17x32xf32>
    %c0_4 = arith.constant 0 : index
    %c0_5 = arith.constant 0 : index
    %4 = vector.load %arg3[%c0_4, %c0_5] : memref<1x32xf32, #tpu.memory_space<vmem>>, vector<1x32xf32>
    %5 = vector.broadcast %4 : vector<1x32xf32> to vector<17x32xf32>
    %6 = arith.addf %3, %5 : vector<17x32xf32>
    %7 = tpu.iota {dimensions = array<i32: 0>} : vector<17x32xi32>
    %c0_6 = arith.constant 0 : index
    %c0_7 = arith.constant 0 : index
    %8 = vector.load %arg4[%c0_6, %c0_7] : memref<1x32xf32, #tpu.memory_space<vmem>>, vector<1x32xf32>
    %9 = vector.shape_cast %8 : vector<1x32xf32> to vector<1x32xf32>
    %10 = vector.broadcast %9 : vector<1x32xf32> to vector<17x32xf32>
    %c0_i32 = arith.constant 0 : i32
    %11 = vector.broadcast %c0_i32 : i32 to vector<17x32xi32>
    %12 = arith.cmpi eq, %7, %11 : vector<17x32xi32>
    %13 = arith.select %12, %10, %6 : vector<17x32xi1>, vector<17x32xf32>
    %c0_8 = arith.constant 0 : index
    %c0_9 = arith.constant 0 : index
    %14 = vector.load %arg5[%c0_8, %c0_9] : memref<17x32xf32, #tpu.memory_space<vmem>>, vector<17x32xf32>
    %15 = arith.addf %13, %14 : vector<17x32xf32>
    %c0_10 = arith.constant 0 : index
    %c0_11 = arith.constant 0 : index
    %16 = vector.load %arg6[%c0_10, %c0_11] : memref<1x32xf32, #tpu.memory_space<vmem>>, vector<1x32xf32>
    %c0_12 = arith.constant 0 : index
    %c0_13 = arith.constant 0 : index
    %17 = vector.load %arg7[%c0_12, %c0_13] : memref<1x32xf32, #tpu.memory_space<vmem>>, vector<1x32xf32>
    %cst_14 = arith.constant dense<0.000000e+00> : vector<17xf32>
    %18 = vector.multi_reduction <add>, %15, %cst_14 [1] : vector<17x32xf32> to vector<17xf32>
    %19 = vector.shape_cast %18 : vector<17xf32> to vector<17x1xf32>
    %cst_15 = arith.constant 3.200000e+01 : f32
    %20 = vector.broadcast %cst_15 : f32 to vector<17x1xf32>
    %21 = arith.divf %19, %20 : vector<17x1xf32>
    %22 = vector.broadcast %21 : vector<17x1xf32> to vector<17x32xf32>
    %23 = arith.subf %15, %22 : vector<17x32xf32>
    %24 = arith.mulf %23, %23 : vector<17x32xf32>
    %cst_16 = arith.constant dense<0.000000e+00> : vector<17xf32>
    %25 = vector.multi_reduction <add>, %24, %cst_16 [1] : vector<17x32xf32> to vector<17xf32>
    %26 = vector.shape_cast %25 : vector<17xf32> to vector<17x1xf32>
    %cst_17 = arith.constant 3.200000e+01 : f32
    %27 = vector.broadcast %cst_17 : f32 to vector<17x1xf32>
    %28 = arith.divf %26, %27 : vector<17x1xf32>
    %29 = vector.broadcast %21 : vector<17x1xf32> to vector<17x32xf32>
    %30 = arith.subf %15, %29 : vector<17x32xf32>
    %cst_18 = arith.constant 9.99999974E-6 : f32
    %31 = vector.broadcast %cst_18 : f32 to vector<17x1xf32>
    %32 = arith.addf %28, %31 : vector<17x1xf32>
    %33 = math.rsqrt %32 : vector<17x1xf32>
    %34 = vector.broadcast %33 : vector<17x1xf32> to vector<17x32xf32>
    %35 = arith.mulf %30, %34 : vector<17x32xf32>
    %36 = vector.broadcast %16 : vector<1x32xf32> to vector<17x32xf32>
    %37 = arith.mulf %35, %36 : vector<17x32xf32>
    %38 = vector.broadcast %17 : vector<1x32xf32> to vector<17x32xf32>
    %39 = arith.addf %37, %38 : vector<17x32xf32>
    %c0_19 = arith.constant 0 : index
    %c0_20 = arith.constant 0 : index
    %c0_21 = arith.constant 0 : index
    %40 = vector.load %arg8[%c0_19, %c0_20, %c0_21] : memref<2x1x32xf32, #tpu.memory_space<vmem>>, vector<1x1x32xf32>
    %41 = vector.shape_cast %40 : vector<1x1x32xf32> to vector<1x32xf32>
    %c0_22 = arith.constant 0 : index
    %c0_23 = arith.constant 0 : index
    %c0_24 = arith.constant 0 : index
    %42 = vector.load %arg9[%c0_22, %c0_23, %c0_24] : memref<2x1x32xf32, #tpu.memory_space<vmem>>, vector<1x1x32xf32>
    %43 = vector.shape_cast %42 : vector<1x1x32xf32> to vector<1x32xf32>
    %cst_25 = arith.constant dense<0.000000e+00> : vector<17xf32>
    %44 = vector.multi_reduction <add>, %39, %cst_25 [1] : vector<17x32xf32> to vector<17xf32>
    %45 = vector.shape_cast %44 : vector<17xf32> to vector<17x1xf32>
    %cst_26 = arith.constant 3.200000e+01 : f32
    %46 = vector.broadcast %cst_26 : f32 to vector<17x1xf32>
    %47 = arith.divf %45, %46 : vector<17x1xf32>
    %48 = vector.broadcast %47 : vector<17x1xf32> to vector<17x32xf32>
    %49 = arith.subf %39, %48 : vector<17x32xf32>
    %50 = arith.mulf %49, %49 : vector<17x32xf32>
    %cst_27 = arith.constant dense<0.000000e+00> : vector<17xf32>
    %51 = vector.multi_reduction <add>, %50, %cst_27 [1] : vector<17x32xf32> to vector<17xf32>
    %52 = vector.shape_cast %51 : vector<17xf32> to vector<17x1xf32>
    %cst_28 = arith.constant 3.200000e+01 : f32
    %53 = vector.broadcast %cst_28 : f32 to vector<17x1xf32>
    %54 = arith.divf %52, %53 : vector<17x1xf32>
    %55 = vector.broadcast %47 : vector<17x1xf32> to vector<17x32xf32>
    %56 = arith.subf %39, %55 : vector<17x32xf32>
    %cst_29 = arith.constant 9.99999974E-6 : f32
    %57 = vector.broadcast %cst_29 : f32 to vector<17x1xf32>
    %58 = arith.addf %54, %57 : vector<17x1xf32>
    %59 = math.rsqrt %58 : vector<17x1xf32>
    %60 = vector.broadcast %59 : vector<17x1xf32> to vector<17x32xf32>
    %61 = arith.mulf %56, %60 : vector<17x32xf32>
    %62 = vector.broadcast %41 : vector<1x32xf32> to vector<17x32xf32>
    %63 = arith.mulf %61, %62 : vector<17x32xf32>
    %64 = vector.broadcast %43 : vector<1x32xf32> to vector<17x32xf32>
    %65 = arith.addf %63, %64 : vector<17x32xf32>
    %c0_30 = arith.constant 0 : index
    %c0_31 = arith.constant 0 : index
    %c0_32 = arith.constant 0 : index
    %66 = vector.load %arg10[%c0_30, %c0_31, %c0_32] : memref<2x32x96xf32, #tpu.memory_space<vmem>>, vector<1x32x96xf32>
    %67 = vector.shape_cast %66 : vector<1x32x96xf32> to vector<32x96xf32>
    %cst_33 = arith.constant dense<0.000000e+00> : vector<17x96xf32>
    %68 = tpu.matmul %65, %67, %cst_33 {dimension_numbers = #tpu.dot_dimension_numbers<[1], [0], [0], [1], [0, 0, 1, 1], [], []>} : vector<17x32xf32>, vector<32x96xf32>, vector<17x96xf32> -> vector<17x96xf32>
    %c0_34 = arith.constant 0 : index
    %c0_35 = arith.constant 0 : index
    %c0_36 = arith.constant 0 : index
    %69 = vector.load %arg11[%c0_34, %c0_35, %c0_36] : memref<2x1x96xf32, #tpu.memory_space<vmem>>, vector<1x1x96xf32>
    %70 = vector.shape_cast %69 : vector<1x1x96xf32> to vector<1x96xf32>
    %71 = vector.broadcast %70 : vector<1x96xf32> to vector<17x96xf32>
    %72 = arith.addf %68, %71 : vector<17x96xf32>
    %c0_37 = arith.constant 0 : index
    %c0_38 = arith.constant 0 : index
    %c0_39 = arith.constant 0 : index
    %73 = vector.load %arg12[%c0_37, %c0_38, %c0_39] : memref<2x32x32xf32, #tpu.memory_space<vmem>>, vector<1x32x32xf32>
    %74 = vector.shape_cast %73 : vector<1x32x32xf32> to vector<32x32xf32>
    %cst_40 = arith.constant 0.000000e+00 : f32
    %75 = vector.broadcast %cst_40 : f32 to vector<17x32xf32>
    %76 = vector.extract_strided_slice %72 {offsets = [0, 0], sizes = [17, 8], strides = [1, 1]} : vector<17x96xf32> to vector<17x8xf32>
    %77 = vector.extract_strided_slice %72 {offsets = [0, 32], sizes = [17, 8], strides = [1, 1]} : vector<17x96xf32> to vector<17x8xf32>
    %78 = vector.extract_strided_slice %72 {offsets = [0, 64], sizes = [17, 8], strides = [1, 1]} : vector<17x96xf32> to vector<17x8xf32>
    %cst_41 = arith.constant dense<0.000000e+00> : vector<17x17xf32>
    %79 = tpu.matmul %76, %77, %cst_41 {dimension_numbers = #tpu.dot_dimension_numbers<[1], [1], [0], [0], [0, 0, 1, 0], [], []>} : vector<17x8xf32>, vector<17x8xf32>, vector<17x17xf32> -> vector<17x17xf32>
    %cst_42 = arith.constant dense<0xFF800000> : vector<17xf32>
    %80 = vector.multi_reduction <maximumf>, %79, %cst_42 [1] : vector<17x17xf32> to vector<17xf32>
    %81 = vector.shape_cast %80 : vector<17xf32> to vector<17x1xf32>
    %82 = vector.broadcast %81 : vector<17x1xf32> to vector<17x17xf32>
    %83 = arith.subf %79, %82 : vector<17x17xf32>
    %84 = math.exp %83 : vector<17x17xf32>
    %cst_43 = arith.constant dense<0.000000e+00> : vector<17xf32>
    %85 = vector.multi_reduction <add>, %84, %cst_43 [1] : vector<17x17xf32> to vector<17xf32>
    %86 = vector.shape_cast %85 : vector<17xf32> to vector<17x1xf32>
    %87 = tpu.reciprocal %86 {approx = true} : vector<17x1xf32> -> vector<17x1xf32>
    %88 = vector.broadcast %87 : vector<17x1xf32> to vector<17x17xf32>
    %89 = arith.mulf %84, %88 : vector<17x17xf32>
    %cst_44 = arith.constant dense<0.000000e+00> : vector<17x8xf32>
    %90 = tpu.matmul %89, %78, %cst_44 {dimension_numbers = #tpu.dot_dimension_numbers<[1], [0], [0], [1], [0, 0, 1, 1], [], []>} : vector<17x17xf32>, vector<17x8xf32>, vector<17x8xf32> -> vector<17x8xf32>
    %91 = vector.extract_strided_slice %74 {offsets = [0, 0], sizes = [8, 32], strides = [1, 1]} : vector<32x32xf32> to vector<8x32xf32>
    %cst_45 = arith.constant dense<0.000000e+00> : vector<17x32xf32>
    %92 = tpu.matmul %90, %91, %cst_45 {dimension_numbers = #tpu.dot_dimension_numbers<[1], [0], [0], [1], [0, 0, 1, 1], [], []>} : vector<17x8xf32>, vector<8x32xf32>, vector<17x32xf32> -> vector<17x32xf32>
    %93 = arith.addf %75, %92 : vector<17x32xf32>
    %94 = vector.extract_strided_slice %72 {offsets = [0, 8], sizes = [17, 8], strides = [1, 1]} : vector<17x96xf32> to vector<17x8xf32>
    %95 = vector.extract_strided_slice %72 {offsets = [0, 40], sizes = [17, 8], strides = [1, 1]} : vector<17x96xf32> to vector<17x8xf32>
    %96 = vector.extract_strided_slice %72 {offsets = [0, 72], sizes = [17, 8], strides = [1, 1]} : vector<17x96xf32> to vector<17x8xf32>
    %cst_46 = arith.constant dense<0.000000e+00> : vector<17x17xf32>
    %97 = tpu.matmul %94, %95, %cst_46 {dimension_numbers = #tpu.dot_dimension_numbers<[1], [1], [0], [0], [0, 0, 1, 0], [], []>} : vector<17x8xf32>, vector<17x8xf32>, vector<17x17xf32> -> vector<17x17xf32>
    %cst_47 = arith.constant dense<0xFF800000> : vector<17xf32>
    %98 = vector.multi_reduction <maximumf>, %97, %cst_47 [1] : vector<17x17xf32> to vector<17xf32>
    %99 = vector.shape_cast %98 : vector<17xf32> to vector<17x1xf32>
    %100 = vector.broadcast %99 : vector<17x1xf32> to vector<17x17xf32>
    %101 = arith.subf %97, %100 : vector<17x17xf32>
    %102 = math.exp %101 : vector<17x17xf32>
    %cst_48 = arith.constant dense<0.000000e+00> : vector<17xf32>
    %103 = vector.multi_reduction <add>, %102, %cst_48 [1] : vector<17x17xf32> to vector<17xf32>
    %104 = vector.shape_cast %103 : vector<17xf32> to vector<17x1xf32>
    %105 = tpu.reciprocal %104 {approx = true} : vector<17x1xf32> -> vector<17x1xf32>
    %106 = vector.broadcast %105 : vector<17x1xf32> to vector<17x17xf32>
    %107 = arith.mulf %102, %106 : vector<17x17xf32>
    %cst_49 = arith.constant dense<0.000000e+00> : vector<17x8xf32>
    %108 = tpu.matmul %107, %96, %cst_49 {dimension_numbers = #tpu.dot_dimension_numbers<[1], [0], [0], [1], [0, 0, 1, 1], [], []>} : vector<17x17xf32>, vector<17x8xf32>, vector<17x8xf32> -> vector<17x8xf32>
    %109 = vector.extract_strided_slice %74 {offsets = [8, 0], sizes = [8, 32], strides = [1, 1]} : vector<32x32xf32> to vector<8x32xf32>
    %cst_50 = arith.constant dense<0.000000e+00> : vector<17x32xf32>
    %110 = tpu.matmul %108, %109, %cst_50 {dimension_numbers = #tpu.dot_dimension_numbers<[1], [0], [0], [1], [0, 0, 1, 1], [], []>} : vector<17x8xf32>, vector<8x32xf32>, vector<17x32xf32> -> vector<17x32xf32>
    %111 = arith.addf %93, %110 : vector<17x32xf32>
    %112 = vector.extract_strided_slice %72 {offsets = [0, 16], sizes = [17, 8], strides = [1, 1]} : vector<17x96xf32> to vector<17x8xf32>
    %113 = vector.extract_strided_slice %72 {offsets = [0, 48], sizes = [17, 8], strides = [1, 1]} : vector<17x96xf32> to vector<17x8xf32>
    %114 = vector.extract_strided_slice %72 {offsets = [0, 80], sizes = [17, 8], strides = [1, 1]} : vector<17x96xf32> to vector<17x8xf32>
    %cst_51 = arith.constant dense<0.000000e+00> : vector<17x17xf32>
    %115 = tpu.matmul %112, %113, %cst_51 {dimension_numbers = #tpu.dot_dimension_numbers<[1], [1], [0], [0], [0, 0, 1, 0], [], []>} : vector<17x8xf32>, vector<17x8xf32>, vector<17x17xf32> -> vector<17x17xf32>
    %cst_52 = arith.constant dense<0xFF800000> : vector<17xf32>
    %116 = vector.multi_reduction <maximumf>, %115, %cst_52 [1] : vector<17x17xf32> to vector<17xf32>
    %117 = vector.shape_cast %116 : vector<17xf32> to vector<17x1xf32>
    %118 = vector.broadcast %117 : vector<17x1xf32> to vector<17x17xf32>
    %119 = arith.subf %115, %118 : vector<17x17xf32>
    %120 = math.exp %119 : vector<17x17xf32>
    %cst_53 = arith.constant dense<0.000000e+00> : vector<17xf32>
    %121 = vector.multi_reduction <add>, %120, %cst_53 [1] : vector<17x17xf32> to vector<17xf32>
    %122 = vector.shape_cast %121 : vector<17xf32> to vector<17x1xf32>
    %123 = tpu.reciprocal %122 {approx = true} : vector<17x1xf32> -> vector<17x1xf32>
    %124 = vector.broadcast %123 : vector<17x1xf32> to vector<17x17xf32>
    %125 = arith.mulf %120, %124 : vector<17x17xf32>
    %cst_54 = arith.constant dense<0.000000e+00> : vector<17x8xf32>
    %126 = tpu.matmul %125, %114, %cst_54 {dimension_numbers = #tpu.dot_dimension_numbers<[1], [0], [0], [1], [0, 0, 1, 1], [], []>} : vector<17x17xf32>, vector<17x8xf32>, vector<17x8xf32> -> vector<17x8xf32>
    %127 = vector.extract_strided_slice %74 {offsets = [16, 0], sizes = [8, 32], strides = [1, 1]} : vector<32x32xf32> to vector<8x32xf32>
    %cst_55 = arith.constant dense<0.000000e+00> : vector<17x32xf32>
    %128 = tpu.matmul %126, %127, %cst_55 {dimension_numbers = #tpu.dot_dimension_numbers<[1], [0], [0], [1], [0, 0, 1, 1], [], []>} : vector<17x8xf32>, vector<8x32xf32>, vector<17x32xf32> -> vector<17x32xf32>
    %129 = arith.addf %111, %128 : vector<17x32xf32>
    %130 = vector.extract_strided_slice %72 {offsets = [0, 24], sizes = [17, 8], strides = [1, 1]} : vector<17x96xf32> to vector<17x8xf32>
    %131 = vector.extract_strided_slice %72 {offsets = [0, 56], sizes = [17, 8], strides = [1, 1]} : vector<17x96xf32> to vector<17x8xf32>
    %132 = vector.extract_strided_slice %72 {offsets = [0, 88], sizes = [17, 8], strides = [1, 1]} : vector<17x96xf32> to vector<17x8xf32>
    %cst_56 = arith.constant dense<0.000000e+00> : vector<17x17xf32>
    %133 = tpu.matmul %130, %131, %cst_56 {dimension_numbers = #tpu.dot_dimension_numbers<[1], [1], [0], [0], [0, 0, 1, 0], [], []>} : vector<17x8xf32>, vector<17x8xf32>, vector<17x17xf32> -> vector<17x17xf32>
    %cst_57 = arith.constant dense<0xFF800000> : vector<17xf32>
    %134 = vector.multi_reduction <maximumf>, %133, %cst_57 [1] : vector<17x17xf32> to vector<17xf32>
    %135 = vector.shape_cast %134 : vector<17xf32> to vector<17x1xf32>
    %136 = vector.broadcast %135 : vector<17x1xf32> to vector<17x17xf32>
    %137 = arith.subf %133, %136 : vector<17x17xf32>
    %138 = math.exp %137 : vector<17x17xf32>
    %cst_58 = arith.constant dense<0.000000e+00> : vector<17xf32>
    %139 = vector.multi_reduction <add>, %138, %cst_58 [1] : vector<17x17xf32> to vector<17xf32>
    %140 = vector.shape_cast %139 : vector<17xf32> to vector<17x1xf32>
    %141 = tpu.reciprocal %140 {approx = true} : vector<17x1xf32> -> vector<17x1xf32>
    %142 = vector.broadcast %141 : vector<17x1xf32> to vector<17x17xf32>
    %143 = arith.mulf %138, %142 : vector<17x17xf32>
    %cst_59 = arith.constant dense<0.000000e+00> : vector<17x8xf32>
    %144 = tpu.matmul %143, %132, %cst_59 {dimension_numbers = #tpu.dot_dimension_numbers<[1], [0], [0], [1], [0, 0, 1, 1], [], []>} : vector<17x17xf32>, vector<17x8xf32>, vector<17x8xf32> -> vector<17x8xf32>
    %145 = vector.extract_strided_slice %74 {offsets = [24, 0], sizes = [8, 32], strides = [1, 1]} : vector<32x32xf32> to vector<8x32xf32>
    %cst_60 = arith.constant dense<0.000000e+00> : vector<17x32xf32>
    %146 = tpu.matmul %144, %145, %cst_60 {dimension_numbers = #tpu.dot_dimension_numbers<[1], [0], [0], [1], [0, 0, 1, 1], [], []>} : vector<17x8xf32>, vector<8x32xf32>, vector<17x32xf32> -> vector<17x32xf32>
    %147 = arith.addf %129, %146 : vector<17x32xf32>
    %148 = arith.addf %39, %147 : vector<17x32xf32>
    %c0_61 = arith.constant 0 : index
    %c0_62 = arith.constant 0 : index
    %c0_63 = arith.constant 0 : index
    %149 = vector.load %arg13[%c0_61, %c0_62, %c0_63] : memref<2x1x32xf32, #tpu.memory_space<vmem>>, vector<1x1x32xf32>
    %150 = vector.shape_cast %149 : vector<1x1x32xf32> to vector<1x32xf32>
    %151 = vector.broadcast %150 : vector<1x32xf32> to vector<17x32xf32>
    %152 = arith.addf %148, %151 : vector<17x32xf32>
    %c0_64 = arith.constant 0 : index
    %c0_65 = arith.constant 0 : index
    %c0_66 = arith.constant 0 : index
    %153 = vector.load %arg14[%c0_64, %c0_65, %c0_66] : memref<2x1x32xf32, #tpu.memory_space<vmem>>, vector<1x1x32xf32>
    %154 = vector.shape_cast %153 : vector<1x1x32xf32> to vector<1x32xf32>
    %c0_67 = arith.constant 0 : index
    %c0_68 = arith.constant 0 : index
    %c0_69 = arith.constant 0 : index
    %155 = vector.load %arg15[%c0_67, %c0_68, %c0_69] : memref<2x1x32xf32, #tpu.memory_space<vmem>>, vector<1x1x32xf32>
    %156 = vector.shape_cast %155 : vector<1x1x32xf32> to vector<1x32xf32>
    %cst_70 = arith.constant dense<0.000000e+00> : vector<17xf32>
    %157 = vector.multi_reduction <add>, %152, %cst_70 [1] : vector<17x32xf32> to vector<17xf32>
    %158 = vector.shape_cast %157 : vector<17xf32> to vector<17x1xf32>
    %cst_71 = arith.constant 3.200000e+01 : f32
    %159 = vector.broadcast %cst_71 : f32 to vector<17x1xf32>
    %160 = arith.divf %158, %159 : vector<17x1xf32>
    %161 = vector.broadcast %160 : vector<17x1xf32> to vector<17x32xf32>
    %162 = arith.subf %152, %161 : vector<17x32xf32>
    %163 = arith.mulf %162, %162 : vector<17x32xf32>
    %cst_72 = arith.constant dense<0.000000e+00> : vector<17xf32>
    %164 = vector.multi_reduction <add>, %163, %cst_72 [1] : vector<17x32xf32> to vector<17xf32>
    %165 = vector.shape_cast %164 : vector<17xf32> to vector<17x1xf32>
    %cst_73 = arith.constant 3.200000e+01 : f32
    %166 = vector.broadcast %cst_73 : f32 to vector<17x1xf32>
    %167 = arith.divf %165, %166 : vector<17x1xf32>
    %168 = vector.broadcast %160 : vector<17x1xf32> to vector<17x32xf32>
    %169 = arith.subf %152, %168 : vector<17x32xf32>
    %cst_74 = arith.constant 9.99999974E-6 : f32
    %170 = vector.broadcast %cst_74 : f32 to vector<17x1xf32>
    %171 = arith.addf %167, %170 : vector<17x1xf32>
    %172 = math.rsqrt %171 : vector<17x1xf32>
    %173 = vector.broadcast %172 : vector<17x1xf32> to vector<17x32xf32>
    %174 = arith.mulf %169, %173 : vector<17x32xf32>
    %175 = vector.broadcast %154 : vector<1x32xf32> to vector<17x32xf32>
    %176 = arith.mulf %174, %175 : vector<17x32xf32>
    %177 = vector.broadcast %156 : vector<1x32xf32> to vector<17x32xf32>
    %178 = arith.addf %176, %177 : vector<17x32xf32>
    %c0_75 = arith.constant 0 : index
    %c0_76 = arith.constant 0 : index
    %c0_77 = arith.constant 0 : index
    %179 = vector.load %arg16[%c0_75, %c0_76, %c0_77] : memref<2x32x64xf32, #tpu.memory_space<vmem>>, vector<1x32x64xf32>
    %180 = vector.shape_cast %179 : vector<1x32x64xf32> to vector<32x64xf32>
    %cst_78 = arith.constant dense<0.000000e+00> : vector<17x64xf32>
    %181 = tpu.matmul %178, %180, %cst_78 {dimension_numbers = #tpu.dot_dimension_numbers<[1], [0], [0], [1], [0, 0, 1, 1], [], []>} : vector<17x32xf32>, vector<32x64xf32>, vector<17x64xf32> -> vector<17x64xf32>
    %c0_79 = arith.constant 0 : index
    %c0_80 = arith.constant 0 : index
    %c0_81 = arith.constant 0 : index
    %182 = vector.load %arg17[%c0_79, %c0_80, %c0_81] : memref<2x1x64xf32, #tpu.memory_space<vmem>>, vector<1x1x64xf32>
    %183 = vector.shape_cast %182 : vector<1x1x64xf32> to vector<1x64xf32>
    %184 = vector.broadcast %183 : vector<1x64xf32> to vector<17x64xf32>
    %185 = arith.addf %181, %184 : vector<17x64xf32>
    %cst_82 = arith.constant 1.702000e+00 : f32
    %186 = vector.broadcast %cst_82 : f32 to vector<17x64xf32>
    %187 = arith.mulf %186, %185 : vector<17x64xf32>
    %188 = arith.negf %187 : vector<17x64xf32>
    %189 = math.exp %188 : vector<17x64xf32>
    %cst_83 = arith.constant 1.000000e+00 : f32
    %190 = vector.broadcast %cst_83 : f32 to vector<17x64xf32>
    %191 = arith.addf %190, %189 : vector<17x64xf32>
    %192 = arith.divf %190, %191 : vector<17x64xf32>
    %193 = arith.mulf %185, %192 : vector<17x64xf32>
    %c0_84 = arith.constant 0 : index
    %c0_85 = arith.constant 0 : index
    %c0_86 = arith.constant 0 : index
    %194 = vector.load %arg18[%c0_84, %c0_85, %c0_86] : memref<2x64x32xf32, #tpu.memory_space<vmem>>, vector<1x64x32xf32>
    %195 = vector.shape_cast %194 : vector<1x64x32xf32> to vector<64x32xf32>
    %cst_87 = arith.constant dense<0.000000e+00> : vector<17x32xf32>
    %196 = tpu.matmul %193, %195, %cst_87 {dimension_numbers = #tpu.dot_dimension_numbers<[1], [0], [0], [1], [0, 0, 1, 1], [], []>} : vector<17x64xf32>, vector<64x32xf32>, vector<17x32xf32> -> vector<17x32xf32>
    %c0_88 = arith.constant 0 : index
    %c0_89 = arith.constant 0 : index
    %c0_90 = arith.constant 0 : index
    %197 = vector.load %arg19[%c0_88, %c0_89, %c0_90] : memref<2x1x32xf32, #tpu.memory_space<vmem>>, vector<1x1x32xf32>
    %198 = vector.shape_cast %197 : vector<1x1x32xf32> to vector<1x32xf32>
    %199 = vector.broadcast %198 : vector<1x32xf32> to vector<17x32xf32>
    %200 = arith.addf %196, %199 : vector<17x32xf32>
    %201 = arith.addf %152, %200 : vector<17x32xf32>
    %c1 = arith.constant 1 : index
    %c0_91 = arith.constant 0 : index
    %c0_92 = arith.constant 0 : index
    %202 = vector.load %arg8[%c1, %c0_91, %c0_92] : memref<2x1x32xf32, #tpu.memory_space<vmem>>, vector<1x1x32xf32>
    %203 = vector.shape_cast %202 : vector<1x1x32xf32> to vector<1x32xf32>
    %c1_93 = arith.constant 1 : index
    %c0_94 = arith.constant 0 : index
    %c0_95 = arith.constant 0 : index
    %204 = vector.load %arg9[%c1_93, %c0_94, %c0_95] : memref<2x1x32xf32, #tpu.memory_space<vmem>>, vector<1x1x32xf32>
    %205 = vector.shape_cast %204 : vector<1x1x32xf32> to vector<1x32xf32>
    %cst_96 = arith.constant dense<0.000000e+00> : vector<17xf32>
    %206 = vector.multi_reduction <add>, %201, %cst_96 [1] : vector<17x32xf32> to vector<17xf32>
    %207 = vector.shape_cast %206 : vector<17xf32> to vector<17x1xf32>
    %cst_97 = arith.constant 3.200000e+01 : f32
    %208 = vector.broadcast %cst_97 : f32 to vector<17x1xf32>
    %209 = arith.divf %207, %208 : vector<17x1xf32>
    %210 = vector.broadcast %209 : vector<17x1xf32> to vector<17x32xf32>
    %211 = arith.subf %201, %210 : vector<17x32xf32>
    %212 = arith.mulf %211, %211 : vector<17x32xf32>
    %cst_98 = arith.constant dense<0.000000e+00> : vector<17xf32>
    %213 = vector.multi_reduction <add>, %212, %cst_98 [1] : vector<17x32xf32> to vector<17xf32>
    %214 = vector.shape_cast %213 : vector<17xf32> to vector<17x1xf32>
    %cst_99 = arith.constant 3.200000e+01 : f32
    %215 = vector.broadcast %cst_99 : f32 to vector<17x1xf32>
    %216 = arith.divf %214, %215 : vector<17x1xf32>
    %217 = vector.broadcast %209 : vector<17x1xf32> to vector<17x32xf32>
    %218 = arith.subf %201, %217 : vector<17x32xf32>
    %cst_100 = arith.constant 9.99999974E-6 : f32
    %219 = vector.broadcast %cst_100 : f32 to vector<17x1xf32>
    %220 = arith.addf %216, %219 : vector<17x1xf32>
    %221 = math.rsqrt %220 : vector<17x1xf32>
    %222 = vector.broadcast %221 : vector<17x1xf32> to vector<17x32xf32>
    %223 = arith.mulf %218, %222 : vector<17x32xf32>
    %224 = vector.broadcast %203 : vector<1x32xf32> to vector<17x32xf32>
    %225 = arith.mulf %223, %224 : vector<17x32xf32>
    %226 = vector.broadcast %205 : vector<1x32xf32> to vector<17x32xf32>
    %227 = arith.addf %225, %226 : vector<17x32xf32>
    %c1_101 = arith.constant 1 : index
    %c0_102 = arith.constant 0 : index
    %c0_103 = arith.constant 0 : index
    %228 = vector.load %arg10[%c1_101, %c0_102, %c0_103] : memref<2x32x96xf32, #tpu.memory_space<vmem>>, vector<1x32x96xf32>
    %229 = vector.shape_cast %228 : vector<1x32x96xf32> to vector<32x96xf32>
    %cst_104 = arith.constant dense<0.000000e+00> : vector<17x96xf32>
    %230 = tpu.matmul %227, %229, %cst_104 {dimension_numbers = #tpu.dot_dimension_numbers<[1], [0], [0], [1], [0, 0, 1, 1], [], []>} : vector<17x32xf32>, vector<32x96xf32>, vector<17x96xf32> -> vector<17x96xf32>
    %c1_105 = arith.constant 1 : index
    %c0_106 = arith.constant 0 : index
    %c0_107 = arith.constant 0 : index
    %231 = vector.load %arg11[%c1_105, %c0_106, %c0_107] : memref<2x1x96xf32, #tpu.memory_space<vmem>>, vector<1x1x96xf32>
    %232 = vector.shape_cast %231 : vector<1x1x96xf32> to vector<1x96xf32>
    %233 = vector.broadcast %232 : vector<1x96xf32> to vector<17x96xf32>
    %234 = arith.addf %230, %233 : vector<17x96xf32>
    %c1_108 = arith.constant 1 : index
    %c0_109 = arith.constant 0 : index
    %c0_110 = arith.constant 0 : index
    %235 = vector.load %arg12[%c1_108, %c0_109, %c0_110] : memref<2x32x32xf32, #tpu.memory_space<vmem>>, vector<1x32x32xf32>
    %236 = vector.shape_cast %235 : vector<1x32x32xf32> to vector<32x32xf32>
    %cst_111 = arith.constant 0.000000e+00 : f32
    %237 = vector.broadcast %cst_111 : f32 to vector<17x32xf32>
    %238 = vector.extract_strided_slice %234 {offsets = [0, 0], sizes = [17, 8], strides = [1, 1]} : vector<17x96xf32> to vector<17x8xf32>
    %239 = vector.extract_strided_slice %234 {offsets = [0, 32], sizes = [17, 8], strides = [1, 1]} : vector<17x96xf32> to vector<17x8xf32>
    %240 = vector.extract_strided_slice %234 {offsets = [0, 64], sizes = [17, 8], strides = [1, 1]} : vector<17x96xf32> to vector<17x8xf32>
    %cst_112 = arith.constant dense<0.000000e+00> : vector<17x17xf32>
    %241 = tpu.matmul %238, %239, %cst_112 {dimension_numbers = #tpu.dot_dimension_numbers<[1], [1], [0], [0], [0, 0, 1, 0], [], []>} : vector<17x8xf32>, vector<17x8xf32>, vector<17x17xf32> -> vector<17x17xf32>
    %cst_113 = arith.constant dense<0xFF800000> : vector<17xf32>
    %242 = vector.multi_reduction <maximumf>, %241, %cst_113 [1] : vector<17x17xf32> to vector<17xf32>
    %243 = vector.shape_cast %242 : vector<17xf32> to vector<17x1xf32>
    %244 = vector.broadcast %243 : vector<17x1xf32> to vector<17x17xf32>
    %245 = arith.subf %241, %244 : vector<17x17xf32>
    %246 = math.exp %245 : vector<17x17xf32>
    %cst_114 = arith.constant dense<0.000000e+00> : vector<17xf32>
    %247 = vector.multi_reduction <add>, %246, %cst_114 [1] : vector<17x17xf32> to vector<17xf32>
    %248 = vector.shape_cast %247 : vector<17xf32> to vector<17x1xf32>
    %249 = tpu.reciprocal %248 {approx = true} : vector<17x1xf32> -> vector<17x1xf32>
    %250 = vector.broadcast %249 : vector<17x1xf32> to vector<17x17xf32>
    %251 = arith.mulf %246, %250 : vector<17x17xf32>
    %cst_115 = arith.constant dense<0.000000e+00> : vector<17x8xf32>
    %252 = tpu.matmul %251, %240, %cst_115 {dimension_numbers = #tpu.dot_dimension_numbers<[1], [0], [0], [1], [0, 0, 1, 1], [], []>} : vector<17x17xf32>, vector<17x8xf32>, vector<17x8xf32> -> vector<17x8xf32>
    %253 = vector.extract_strided_slice %236 {offsets = [0, 0], sizes = [8, 32], strides = [1, 1]} : vector<32x32xf32> to vector<8x32xf32>
    %cst_116 = arith.constant dense<0.000000e+00> : vector<17x32xf32>
    %254 = tpu.matmul %252, %253, %cst_116 {dimension_numbers = #tpu.dot_dimension_numbers<[1], [0], [0], [1], [0, 0, 1, 1], [], []>} : vector<17x8xf32>, vector<8x32xf32>, vector<17x32xf32> -> vector<17x32xf32>
    %255 = arith.addf %237, %254 : vector<17x32xf32>
    %256 = vector.extract_strided_slice %234 {offsets = [0, 8], sizes = [17, 8], strides = [1, 1]} : vector<17x96xf32> to vector<17x8xf32>
    %257 = vector.extract_strided_slice %234 {offsets = [0, 40], sizes = [17, 8], strides = [1, 1]} : vector<17x96xf32> to vector<17x8xf32>
    %258 = vector.extract_strided_slice %234 {offsets = [0, 72], sizes = [17, 8], strides = [1, 1]} : vector<17x96xf32> to vector<17x8xf32>
    %cst_117 = arith.constant dense<0.000000e+00> : vector<17x17xf32>
    %259 = tpu.matmul %256, %257, %cst_117 {dimension_numbers = #tpu.dot_dimension_numbers<[1], [1], [0], [0], [0, 0, 1, 0], [], []>} : vector<17x8xf32>, vector<17x8xf32>, vector<17x17xf32> -> vector<17x17xf32>
    %cst_118 = arith.constant dense<0xFF800000> : vector<17xf32>
    %260 = vector.multi_reduction <maximumf>, %259, %cst_118 [1] : vector<17x17xf32> to vector<17xf32>
    %261 = vector.shape_cast %260 : vector<17xf32> to vector<17x1xf32>
    %262 = vector.broadcast %261 : vector<17x1xf32> to vector<17x17xf32>
    %263 = arith.subf %259, %262 : vector<17x17xf32>
    %264 = math.exp %263 : vector<17x17xf32>
    %cst_119 = arith.constant dense<0.000000e+00> : vector<17xf32>
    %265 = vector.multi_reduction <add>, %264, %cst_119 [1] : vector<17x17xf32> to vector<17xf32>
    %266 = vector.shape_cast %265 : vector<17xf32> to vector<17x1xf32>
    %267 = tpu.reciprocal %266 {approx = true} : vector<17x1xf32> -> vector<17x1xf32>
    %268 = vector.broadcast %267 : vector<17x1xf32> to vector<17x17xf32>
    %269 = arith.mulf %264, %268 : vector<17x17xf32>
    %cst_120 = arith.constant dense<0.000000e+00> : vector<17x8xf32>
    %270 = tpu.matmul %269, %258, %cst_120 {dimension_numbers = #tpu.dot_dimension_numbers<[1], [0], [0], [1], [0, 0, 1, 1], [], []>} : vector<17x17xf32>, vector<17x8xf32>, vector<17x8xf32> -> vector<17x8xf32>
    %271 = vector.extract_strided_slice %236 {offsets = [8, 0], sizes = [8, 32], strides = [1, 1]} : vector<32x32xf32> to vector<8x32xf32>
    %cst_121 = arith.constant dense<0.000000e+00> : vector<17x32xf32>
    %272 = tpu.matmul %270, %271, %cst_121 {dimension_numbers = #tpu.dot_dimension_numbers<[1], [0], [0], [1], [0, 0, 1, 1], [], []>} : vector<17x8xf32>, vector<8x32xf32>, vector<17x32xf32> -> vector<17x32xf32>
    %273 = arith.addf %255, %272 : vector<17x32xf32>
    %274 = vector.extract_strided_slice %234 {offsets = [0, 16], sizes = [17, 8], strides = [1, 1]} : vector<17x96xf32> to vector<17x8xf32>
    %275 = vector.extract_strided_slice %234 {offsets = [0, 48], sizes = [17, 8], strides = [1, 1]} : vector<17x96xf32> to vector<17x8xf32>
    %276 = vector.extract_strided_slice %234 {offsets = [0, 80], sizes = [17, 8], strides = [1, 1]} : vector<17x96xf32> to vector<17x8xf32>
    %cst_122 = arith.constant dense<0.000000e+00> : vector<17x17xf32>
    %277 = tpu.matmul %274, %275, %cst_122 {dimension_numbers = #tpu.dot_dimension_numbers<[1], [1], [0], [0], [0, 0, 1, 0], [], []>} : vector<17x8xf32>, vector<17x8xf32>, vector<17x17xf32> -> vector<17x17xf32>
    %cst_123 = arith.constant dense<0xFF800000> : vector<17xf32>
    %278 = vector.multi_reduction <maximumf>, %277, %cst_123 [1] : vector<17x17xf32> to vector<17xf32>
    %279 = vector.shape_cast %278 : vector<17xf32> to vector<17x1xf32>
    %280 = vector.broadcast %279 : vector<17x1xf32> to vector<17x17xf32>
    %281 = arith.subf %277, %280 : vector<17x17xf32>
    %282 = math.exp %281 : vector<17x17xf32>
    %cst_124 = arith.constant dense<0.000000e+00> : vector<17xf32>
    %283 = vector.multi_reduction <add>, %282, %cst_124 [1] : vector<17x17xf32> to vector<17xf32>
    %284 = vector.shape_cast %283 : vector<17xf32> to vector<17x1xf32>
    %285 = tpu.reciprocal %284 {approx = true} : vector<17x1xf32> -> vector<17x1xf32>
    %286 = vector.broadcast %285 : vector<17x1xf32> to vector<17x17xf32>
    %287 = arith.mulf %282, %286 : vector<17x17xf32>
    %cst_125 = arith.constant dense<0.000000e+00> : vector<17x8xf32>
    %288 = tpu.matmul %287, %276, %cst_125 {dimension_numbers = #tpu.dot_dimension_numbers<[1], [0], [0], [1], [0, 0, 1, 1], [], []>} : vector<17x17xf32>, vector<17x8xf32>, vector<17x8xf32> -> vector<17x8xf32>
    %289 = vector.extract_strided_slice %236 {offsets = [16, 0], sizes = [8, 32], strides = [1, 1]} : vector<32x32xf32> to vector<8x32xf32>
    %cst_126 = arith.constant dense<0.000000e+00> : vector<17x32xf32>
    %290 = tpu.matmul %288, %289, %cst_126 {dimension_numbers = #tpu.dot_dimension_numbers<[1], [0], [0], [1], [0, 0, 1, 1], [], []>} : vector<17x8xf32>, vector<8x32xf32>, vector<17x32xf32> -> vector<17x32xf32>
    %291 = arith.addf %273, %290 : vector<17x32xf32>
    %292 = vector.extract_strided_slice %234 {offsets = [0, 24], sizes = [17, 8], strides = [1, 1]} : vector<17x96xf32> to vector<17x8xf32>
    %293 = vector.extract_strided_slice %234 {offsets = [0, 56], sizes = [17, 8], strides = [1, 1]} : vector<17x96xf32> to vector<17x8xf32>
    %294 = vector.extract_strided_slice %234 {offsets = [0, 88], sizes = [17, 8], strides = [1, 1]} : vector<17x96xf32> to vector<17x8xf32>
    %cst_127 = arith.constant dense<0.000000e+00> : vector<17x17xf32>
    %295 = tpu.matmul %292, %293, %cst_127 {dimension_numbers = #tpu.dot_dimension_numbers<[1], [1], [0], [0], [0, 0, 1, 0], [], []>} : vector<17x8xf32>, vector<17x8xf32>, vector<17x17xf32> -> vector<17x17xf32>
    %cst_128 = arith.constant dense<0xFF800000> : vector<17xf32>
    %296 = vector.multi_reduction <maximumf>, %295, %cst_128 [1] : vector<17x17xf32> to vector<17xf32>
    %297 = vector.shape_cast %296 : vector<17xf32> to vector<17x1xf32>
    %298 = vector.broadcast %297 : vector<17x1xf32> to vector<17x17xf32>
    %299 = arith.subf %295, %298 : vector<17x17xf32>
    %300 = math.exp %299 : vector<17x17xf32>
    %cst_129 = arith.constant dense<0.000000e+00> : vector<17xf32>
    %301 = vector.multi_reduction <add>, %300, %cst_129 [1] : vector<17x17xf32> to vector<17xf32>
    %302 = vector.shape_cast %301 : vector<17xf32> to vector<17x1xf32>
    %303 = tpu.reciprocal %302 {approx = true} : vector<17x1xf32> -> vector<17x1xf32>
    %304 = vector.broadcast %303 : vector<17x1xf32> to vector<17x17xf32>
    %305 = arith.mulf %300, %304 : vector<17x17xf32>
    %cst_130 = arith.constant dense<0.000000e+00> : vector<17x8xf32>
    %306 = tpu.matmul %305, %294, %cst_130 {dimension_numbers = #tpu.dot_dimension_numbers<[1], [0], [0], [1], [0, 0, 1, 1], [], []>} : vector<17x17xf32>, vector<17x8xf32>, vector<17x8xf32> -> vector<17x8xf32>
    %307 = vector.extract_strided_slice %236 {offsets = [24, 0], sizes = [8, 32], strides = [1, 1]} : vector<32x32xf32> to vector<8x32xf32>
    %cst_131 = arith.constant dense<0.000000e+00> : vector<17x32xf32>
    %308 = tpu.matmul %306, %307, %cst_131 {dimension_numbers = #tpu.dot_dimension_numbers<[1], [0], [0], [1], [0, 0, 1, 1], [], []>} : vector<17x8xf32>, vector<8x32xf32>, vector<17x32xf32> -> vector<17x32xf32>
    %309 = arith.addf %291, %308 : vector<17x32xf32>
    %310 = arith.addf %201, %309 : vector<17x32xf32>
    %c1_132 = arith.constant 1 : index
    %c0_133 = arith.constant 0 : index
    %c0_134 = arith.constant 0 : index
    %311 = vector.load %arg13[%c1_132, %c0_133, %c0_134] : memref<2x1x32xf32, #tpu.memory_space<vmem>>, vector<1x1x32xf32>
    %312 = vector.shape_cast %311 : vector<1x1x32xf32> to vector<1x32xf32>
    %313 = vector.broadcast %312 : vector<1x32xf32> to vector<17x32xf32>
    %314 = arith.addf %310, %313 : vector<17x32xf32>
    %c1_135 = arith.constant 1 : index
    %c0_136 = arith.constant 0 : index
    %c0_137 = arith.constant 0 : index
    %315 = vector.load %arg14[%c1_135, %c0_136, %c0_137] : memref<2x1x32xf32, #tpu.memory_space<vmem>>, vector<1x1x32xf32>
    %316 = vector.shape_cast %315 : vector<1x1x32xf32> to vector<1x32xf32>
    %c1_138 = arith.constant 1 : index
    %c0_139 = arith.constant 0 : index
    %c0_140 = arith.constant 0 : index
    %317 = vector.load %arg15[%c1_138, %c0_139, %c0_140] : memref<2x1x32xf32, #tpu.memory_space<vmem>>, vector<1x1x32xf32>
    %318 = vector.shape_cast %317 : vector<1x1x32xf32> to vector<1x32xf32>
    %cst_141 = arith.constant dense<0.000000e+00> : vector<17xf32>
    %319 = vector.multi_reduction <add>, %314, %cst_141 [1] : vector<17x32xf32> to vector<17xf32>
    %320 = vector.shape_cast %319 : vector<17xf32> to vector<17x1xf32>
    %cst_142 = arith.constant 3.200000e+01 : f32
    %321 = vector.broadcast %cst_142 : f32 to vector<17x1xf32>
    %322 = arith.divf %320, %321 : vector<17x1xf32>
    %323 = vector.broadcast %322 : vector<17x1xf32> to vector<17x32xf32>
    %324 = arith.subf %314, %323 : vector<17x32xf32>
    %325 = arith.mulf %324, %324 : vector<17x32xf32>
    %cst_143 = arith.constant dense<0.000000e+00> : vector<17xf32>
    %326 = vector.multi_reduction <add>, %325, %cst_143 [1] : vector<17x32xf32> to vector<17xf32>
    %327 = vector.shape_cast %326 : vector<17xf32> to vector<17x1xf32>
    %cst_144 = arith.constant 3.200000e+01 : f32
    %328 = vector.broadcast %cst_144 : f32 to vector<17x1xf32>
    %329 = arith.divf %327, %328 : vector<17x1xf32>
    %330 = vector.broadcast %322 : vector<17x1xf32> to vector<17x32xf32>
    %331 = arith.subf %314, %330 : vector<17x32xf32>
    %cst_145 = arith.constant 9.99999974E-6 : f32
    %332 = vector.broadcast %cst_145 : f32 to vector<17x1xf32>
    %333 = arith.addf %329, %332 : vector<17x1xf32>
    %334 = math.rsqrt %333 : vector<17x1xf32>
    %335 = vector.broadcast %334 : vector<17x1xf32> to vector<17x32xf32>
    %336 = arith.mulf %331, %335 : vector<17x32xf32>
    %337 = vector.broadcast %316 : vector<1x32xf32> to vector<17x32xf32>
    %338 = arith.mulf %336, %337 : vector<17x32xf32>
    %339 = vector.broadcast %318 : vector<1x32xf32> to vector<17x32xf32>
    %340 = arith.addf %338, %339 : vector<17x32xf32>
    %c1_146 = arith.constant 1 : index
    %c0_147 = arith.constant 0 : index
    %c0_148 = arith.constant 0 : index
    %341 = vector.load %arg16[%c1_146, %c0_147, %c0_148] : memref<2x32x64xf32, #tpu.memory_space<vmem>>, vector<1x32x64xf32>
    %342 = vector.shape_cast %341 : vector<1x32x64xf32> to vector<32x64xf32>
    %cst_149 = arith.constant dense<0.000000e+00> : vector<17x64xf32>
    %343 = tpu.matmul %340, %342, %cst_149 {dimension_numbers = #tpu.dot_dimension_numbers<[1], [0], [0], [1], [0, 0, 1, 1], [], []>} : vector<17x32xf32>, vector<32x64xf32>, vector<17x64xf32> -> vector<17x64xf32>
    %c1_150 = arith.constant 1 : index
    %c0_151 = arith.constant 0 : index
    %c0_152 = arith.constant 0 : index
    %344 = vector.load %arg17[%c1_150, %c0_151, %c0_152] : memref<2x1x64xf32, #tpu.memory_space<vmem>>, vector<1x1x64xf32>
    %345 = vector.shape_cast %344 : vector<1x1x64xf32> to vector<1x64xf32>
    %346 = vector.broadcast %345 : vector<1x64xf32> to vector<17x64xf32>
    %347 = arith.addf %343, %346 : vector<17x64xf32>
    %cst_153 = arith.constant 1.702000e+00 : f32
    %348 = vector.broadcast %cst_153 : f32 to vector<17x64xf32>
    %349 = arith.mulf %348, %347 : vector<17x64xf32>
    %350 = arith.negf %349 : vector<17x64xf32>
    %351 = math.exp %350 : vector<17x64xf32>
    %cst_154 = arith.constant 1.000000e+00 : f32
    %352 = vector.broadcast %cst_154 : f32 to vector<17x64xf32>
    %353 = arith.addf %352, %351 : vector<17x64xf32>
    %354 = arith.divf %352, %353 : vector<17x64xf32>
    %355 = arith.mulf %347, %354 : vector<17x64xf32>
    %c1_155 = arith.constant 1 : index
    %c0_156 = arith.constant 0 : index
    %c0_157 = arith.constant 0 : index
    %356 = vector.load %arg18[%c1_155, %c0_156, %c0_157] : memref<2x64x32xf32, #tpu.memory_space<vmem>>, vector<1x64x32xf32>
    %357 = vector.shape_cast %356 : vector<1x64x32xf32> to vector<64x32xf32>
    %cst_158 = arith.constant dense<0.000000e+00> : vector<17x32xf32>
    %358 = tpu.matmul %355, %357, %cst_158 {dimension_numbers = #tpu.dot_dimension_numbers<[1], [0], [0], [1], [0, 0, 1, 1], [], []>} : vector<17x64xf32>, vector<64x32xf32>, vector<17x32xf32> -> vector<17x32xf32>
    %c1_159 = arith.constant 1 : index
    %c0_160 = arith.constant 0 : index
    %c0_161 = arith.constant 0 : index
    %359 = vector.load %arg19[%c1_159, %c0_160, %c0_161] : memref<2x1x32xf32, #tpu.memory_space<vmem>>, vector<1x1x32xf32>
    %360 = vector.shape_cast %359 : vector<1x1x32xf32> to vector<1x32xf32>
    %361 = vector.broadcast %360 : vector<1x32xf32> to vector<17x32xf32>
    %362 = arith.addf %358, %361 : vector<17x32xf32>
    %363 = arith.addf %314, %362 : vector<17x32xf32>
    %364 = vector.extract_strided_slice %363 {offsets = [0, 0], sizes = [1, 32], strides = [1, 1]} : vector<17x32xf32> to vector<1x32xf32>
    %c0_162 = arith.constant 0 : index
    %c0_163 = arith.constant 0 : index
    %365 = vector.load %arg20[%c0_162, %c0_163] : memref<1x32xf32, #tpu.memory_space<vmem>>, vector<1x32xf32>
    %c0_164 = arith.constant 0 : index
    %c0_165 = arith.constant 0 : index
    %366 = vector.load %arg21[%c0_164, %c0_165] : memref<1x32xf32, #tpu.memory_space<vmem>>, vector<1x32xf32>
    %cst_166 = arith.constant dense<0.000000e+00> : vector<1xf32>
    %367 = vector.multi_reduction <add>, %364, %cst_166 [1] : vector<1x32xf32> to vector<1xf32>
    %368 = vector.shape_cast %367 : vector<1xf32> to vector<1x1xf32>
    %cst_167 = arith.constant 3.200000e+01 : f32
    %369 = vector.broadcast %cst_167 : f32 to vector<1x1xf32>
    %370 = arith.divf %368, %369 : vector<1x1xf32>
    %371 = vector.broadcast %370 : vector<1x1xf32> to vector<1x32xf32>
    %372 = arith.subf %364, %371 : vector<1x32xf32>
    %373 = arith.mulf %372, %372 : vector<1x32xf32>
    %cst_168 = arith.constant dense<0.000000e+00> : vector<1xf32>
    %374 = vector.multi_reduction <add>, %373, %cst_168 [1] : vector<1x32xf32> to vector<1xf32>
    %375 = vector.shape_cast %374 : vector<1xf32> to vector<1x1xf32>
    %cst_169 = arith.constant 3.200000e+01 : f32
    %376 = vector.broadcast %cst_169 : f32 to vector<1x1xf32>
    %377 = arith.divf %375, %376 : vector<1x1xf32>
    %378 = vector.broadcast %370 : vector<1x1xf32> to vector<1x32xf32>
    %379 = arith.subf %364, %378 : vector<1x32xf32>
    %cst_170 = arith.constant 9.99999974E-6 : f32
    %380 = vector.broadcast %cst_170 : f32 to vector<1x1xf32>
    %381 = arith.addf %377, %380 : vector<1x1xf32>
    %382 = math.rsqrt %381 : vector<1x1xf32>
    %383 = vector.broadcast %382 : vector<1x1xf32> to vector<1x32xf32>
    %384 = arith.mulf %379, %383 : vector<1x32xf32>
    %385 = arith.mulf %384, %365 : vector<1x32xf32>
    %386 = arith.addf %385, %366 : vector<1x32xf32>
    %c0_171 = arith.constant 0 : index
    %c0_172 = arith.constant 0 : index
    %387 = vector.load %arg22[%c0_171, %c0_172] : memref<32x16xf32, #tpu.memory_space<vmem>>, vector<32x16xf32>
    %cst_173 = arith.constant dense<0.000000e+00> : vector<1x16xf32>
    %388 = tpu.matmul %386, %387, %cst_173 {dimension_numbers = #tpu.dot_dimension_numbers<[1], [0], [0], [1], [0, 0, 1, 1], [], []>} : vector<1x32xf32>, vector<32x16xf32>, vector<1x16xf32> -> vector<1x16xf32>
    %c0_174 = arith.constant 0 : index
    %c0_175 = arith.constant 0 : index
    %c0_176 = arith.constant 0 : index
    %389 = vector.load %arg23[%c0_174, %c0_175, %c0_176] : memref<1x1x16xf32, #tpu.memory_space<vmem>>, vector<1x1x16xf32>
    %390 = vector.shape_cast %389 : vector<1x1x16xf32> to vector<1x16xf32>
    %391 = vector.shape_cast %388 : vector<1x16xf32> to vector<1x1x16xf32>
    tpu.vector_store %arg23[%c0_174, %c0_175, %c0_176], %391 {strides = array<i32>} : memref<1x1x16xf32, #tpu.memory_space<vmem>>, vector<1x1x16xf32>,
    return
  }
  func.func @transform_0(%arg0: i32) -> (i32, i32, i32) {
    %c0_i32 = arith.constant 0 : i32
    %c0_i32_0 = arith.constant 0 : i32
    %c0_i32_1 = arith.constant 0 : i32
    return %arg0, %c0_i32, %c0_i32_0 : i32, i32, i32
  }
  func.func @transform_1(%arg0: i32) -> (i32, i32) {
    %c0_i32 = arith.constant 0 : i32
    %c0_i32_0 = arith.constant 0 : i32
    %c0_i32_1 = arith.constant 0 : i32
    return %c0_i32, %c0_i32_0 : i32, i32
  }
  func.func @transform_2(%arg0: i32) -> (i32, i32) {
    %c0_i32 = arith.constant 0 : i32
    %c0_i32_0 = arith.constant 0 : i32
    %c0_i32_1 = arith.constant 0 : i32
    return %c0_i32, %c0_i32_0 : i32, i32
  }
  func.func @transform_3(%arg0: i32) -> (i32, i32) {
    %c0_i32 = arith.constant 0 : i32
    %c0_i32_0 = arith.constant 0 : i32
    %c0_i32_1 = arith.constant 0 : i32
    return %c0_i32, %c0_i32_0 : i32, i32
  }
  func.func @transform_4(%arg0: i32) -> (i32, i32) {
    %c0_i32 = arith.constant 0 : i32
    %c0_i32_0 = arith.constant 0 : i32
    %c0_i32_1 = arith.constant 0 : i32
    return %c0_i32, %c0_i32_0 : i32, i32
  }
  func.func @transform_5(%arg0: i32) -> (i32, i32) {
    %c0_i32 = arith.constant 0 : i32
    %c0_i32_0 = arith.constant 0 : i32
    %c0_i32_1 = arith.constant 0 : i32
    return %c0_i32, %c0_i32_0 : i32, i32
  }
  func.func @transform_6(%arg0: i32) -> (i32, i32) {
    %c0_i32 = arith.constant 0 : i32
    %c0_i32_0 = arith.constant 0 : i32
    %c0_i32_1 = arith.constant 0 : i32
    return %c0_i32, %c0_i32_0 : i32, i32
  }
  func.func @transform_7(%arg0: i32) -> (i32, i32, i32) {
    %c0_i32 = arith.constant 0 : i32
    %c0_i32_0 = arith.constant 0 : i32
    %c0_i32_1 = arith.constant 0 : i32
    %c0_i32_2 = arith.constant 0 : i32
    return %c0_i32, %c0_i32_0, %c0_i32_1 : i32, i32, i32
  }
  func.func @transform_8(%arg0: i32) -> (i32, i32, i32) {
    %c0_i32 = arith.constant 0 : i32
    %c0_i32_0 = arith.constant 0 : i32
    %c0_i32_1 = arith.constant 0 : i32
    %c0_i32_2 = arith.constant 0 : i32
    return %c0_i32, %c0_i32_0, %c0_i32_1 : i32, i32, i32
  }
  func.func @transform_9(%arg0: i32) -> (i32, i32, i32) {
    %c0_i32 = arith.constant 0 : i32
    %c0_i32_0 = arith.constant 0 : i32
    %c0_i32_1 = arith.constant 0 : i32
    %c0_i32_2 = arith.constant 0 : i32
    return %c0_i32, %c0_i32_0, %c0_i32_1 : i32, i32, i32
  }
  func.func @transform_10(%arg0: i32) -> (i32, i32, i32) {
    %c0_i32 = arith.constant 0 : i32
    %c0_i32_0 = arith.constant 0 : i32
    %c0_i32_1 = arith.constant 0 : i32
    %c0_i32_2 = arith.constant 0 : i32
    return %c0_i32, %c0_i32_0, %c0_i32_1 : i32, i32, i32
  }
  func.func @transform_11(%arg0: i32) -> (i32, i32, i32) {
    %c0_i32 = arith.constant 0 : i32
    %c0_i32_0 = arith.constant 0 : i32
    %c0_i32_1 = arith.constant 0 : i32
    %c0_i32_2 = arith.constant 0 : i32
    return %c0_i32, %c0_i32_0, %c0_i32_1 : i32, i32, i32
  }
  func.func @transform_12(%arg0: i32) -> (i32, i32, i32) {
    %c0_i32 = arith.constant 0 : i32
    %c0_i32_0 = arith.constant 0 : i32
    %c0_i32_1 = arith.constant 0 : i32
    %c0_i32_2 = arith.constant 0 : i32
    return %c0_i32, %c0_i32_0, %c0_i32_1 : i32, i32, i32
  }
  func.func @transform_13(%arg0: i32) -> (i32, i32, i32) {
    %c0_i32 = arith.constant 0 : i32
    %c0_i32_0 = arith.constant 0 : i32
    %c0_i32_1 = arith.constant 0 : i32
    %c0_i32_2 = arith.constant 0 : i32
    return %c0_i32, %c0_i32_0, %c0_i32_1 : i32, i32, i32
  }
  func.func @transform_14(%arg0: i32) -> (i32, i32, i32) {
    %c0_i32 = arith.constant 0 : i32
    %c0_i32_0 = arith.constant 0 : i32
    %c0_i32_1 = arith.constant 0 : i32
    %c0_i32_2 = arith.constant 0 : i32
    return %c0_i32, %c0_i32_0, %c0_i32_1 : i32, i32, i32
  }
  func.func @transform_15(%arg0: i32) -> (i32, i32, i32) {
    %c0_i32 = arith.constant 0 : i32
    %c0_i32_0 = arith.constant 0 : i32
    %c0_i32_1 = arith.constant 0 : i32
    %c0_i32_2 = arith.constant 0 : i32
    return %c0_i32, %c0_i32_0, %c0_i32_1 : i32, i32, i32
  }
  func.func @transform_16(%arg0: i32) -> (i32, i32, i32) {
    %c0_i32 = arith.constant 0 : i32
    %c0_i32_0 = arith.constant 0 : i32
    %c0_i32_1 = arith.constant 0 : i32
    %c0_i32_2 = arith.constant 0 : i32
    return %c0_i32, %c0_i32_0, %c0_i32_1 : i32, i32, i32
  }
  func.func @transform_17(%arg0: i32) -> (i32, i32, i32) {
    %c0_i32 = arith.constant 0 : i32
    %c0_i32_0 = arith.constant 0 : i32
    %c0_i32_1 = arith.constant 0 : i32
    %c0_i32_2 = arith.constant 0 : i32
    return %c0_i32, %c0_i32_0, %c0_i32_1 : i32, i32, i32
  }
  func.func @transform_18(%arg0: i32) -> (i32, i32, i32) {
    %c0_i32 = arith.constant 0 : i32
    %c0_i32_0 = arith.constant 0 : i32
    %c0_i32_1 = arith.constant 0 : i32
    %c0_i32_2 = arith.constant 0 : i32
    return %c0_i32, %c0_i32_0, %c0_i32_1 : i32, i32, i32
  }
  func.func @transform_19(%arg0: i32) -> (i32, i32) {
    %c0_i32 = arith.constant 0 : i32
    %c0_i32_0 = arith.constant 0 : i32
    %c0_i32_1 = arith.constant 0 : i32
    return %c0_i32, %c0_i32_0 : i32, i32
  }
  func.func @transform_20(%arg0: i32) -> (i32, i32) {
    %c0_i32 = arith.constant 0 : i32
    %c0_i32_0 = arith.constant 0 : i32
    %c0_i32_1 = arith.constant 0 : i32
    return %c0_i32, %c0_i32_0 : i32, i32
  }
  func.func @transform_21(%arg0: i32) -> (i32, i32) {
    %c0_i32 = arith.constant 0 : i32
    %c0_i32_0 = arith.constant 0 : i32
    %c0_i32_1 = arith.constant 0 : i32
    return %c0_i32, %c0_i32_0 : i32, i32
  }
  func.func @transform_22(%arg0: i32) -> (i32, i32, i32) {
    %c0_i32 = arith.constant 0 : i32
    %c0_i32_0 = arith.constant 0 : i32
    %c0_i32_1 = arith.constant 0 : i32
    return %arg0, %c0_i32, %c0_i32_0 : i32, i32, i32
  }
}

</mosaic_0001>

<llo_original>
// kernel: mul.9
$region0: #{mul.9}
  %s0 = inlined_call_operand.vmem [shape: f32[3,64], index: 0, kind: input, shape index: {}]
  %s1 = inlined_call_operand.vmem [shape: f32[192], index: 1, kind: output, shape index: {}]
  $region1: #{mul.9} parent=0
    #allocation0 [shape = 'u8[4096]{0}', space=vmem, size = 0x1000, scoped, tag = 'scoped mem for output reshape']
    #allocation1 [shape = 'u8[4096]{0}', space=vmem, size = 0x1000, scoped, tag = 'scoped mem for input reshape']
    %s3 = sshll.u32 1, 4
    %s4 = ssub.s32 %s3, 1
    %v5 = vld [vmem:[%s0] sm:%s4]
    %6 = vst [vmem:[#allocation1] sm:%s4] %v5
    %s7 = smov 3
    %v8 = vld [vmem:[#allocation1] ss:$2 sm:%s7]
    %vm9 = vcmask 523264
    %10 = vst.msk [vmem:[#allocation0] sm:$0x3] %vm9, %v8
    %s11 = scalar_lea.vmem [#allocation1], 1
    %v12 = vld [vmem:[%s11] sm:$0x1]
    %13 = vrot.lane.b32.xlu0 %v12, 64
    %v14 = vpop.permute.xlu0 %13
    %vm15 = vcmask 1048064
    %16 = vst.msk [vmem:[#allocation0] sm:$0x1] %vm15, %v14
    %s18 = sshll.u32 1, 2
    %s19 = ssub.s32 %s18, 1
    %v21 = vld [vmem:[#allocation0] sm:%s19]
    %s22 = sshll.u32 1, 2
    %s23 = ssub.s32 %s22, 1
    %24 = vst [vmem:[%s1] sm:%s23] %v21

// kernel: _lambda_.1
$region0: #{_lambda_.1}
  #allocation0 [shape = 'u32[]', space=smem, size = 0x4, offset = 0x4, fixed_abs, tag = 'smem constant byte address 0x4 - core index']
  #allocation1 [shape = 'u32[144,128]{1,0:T(1,128)}', space=vmem, size = 0x12000, scoped, tag = 'internal scratch']
  %s0 = inlined_call_operand.vmem [shape: f32[2,17,192], index: 0, kind: input, shape index: {}]
  %s1 = inlined_call_operand.vmem [shape: f32[192,32], index: 1, kind: input, shape index: {}]
  %s2 = inlined_call_operand.vmem [shape: f32[1,32], index: 2, kind: input, shape index: {}]
  %s3 = inlined_call_operand.vmem [shape: f32[1,32], index: 3, kind: input, shape index: {}]
  %s4 = inlined_call_operand.vmem [shape: f32[17,32], index: 4, kind: input, shape index: {}]
  %s5 = inlined_call_operand.vmem [shape: f32[1,32], index: 5, kind: input, shape index: {}]
  %s6 = inlined_call_operand.vmem [shape: f32[1,32], index: 6, kind: input, shape index: {}]
  %s7 = inlined_call_operand.vmem [shape: f32[2,1,32], index: 7, kind: input, shape index: {}]
  %s8 = inlined_call_operand.vmem [shape: f32[2,1,32], index: 8, kind: input, shape index: {}]
  %s9 = inlined_call_operand.vmem [shape: f32[2,32,96], index: 9, kind: input, shape index: {}]
  %s10 = inlined_call_operand.vmem [shape: f32[2,1,96], index: 10, kind: input, shape index: {}]
  %s11 = inlined_call_operand.vmem [shape: f32[2,32,32], index: 11, kind: input, shape index: {}]
  %s12 = inlined_call_operand.vmem [shape: f32[2,1,32], index: 12, kind: input, shape index: {}]
  %s13 = inlined_call_operand.vmem [shape: f32[2,1,32], index: 13, kind: input, shape index: {}]
  %s14 = inlined_call_operand.vmem [shape: f32[2,1,32], index: 14, kind: input, shape index: {}]
  %s15 = inlined_call_operand.vmem [shape: f32[2,32,64], index: 15, kind: input, shape index: {}]
  %s16 = inlined_call_operand.vmem [shape: f32[2,1,64], index: 16, kind: input, shape index: {}]
  %s17 = inlined_call_operand.vmem [shape: f32[2,64,32], index: 17, kind: input, shape index: {}]
  %s18 = inlined_call_operand.vmem [shape: f32[2,1,32], index: 18, kind: input, shape index: {}]
  %s19 = inlined_call_operand.vmem [shape: f32[1,32], index: 19, kind: input, shape index: {}]
  %s20 = inlined_call_operand.vmem [shape: f32[1,32], index: 20, kind: input, shape index: {}]
  %s21 = inlined_call_operand.vmem [shape: f32[32,16], index: 21, kind: input, shape index: {}]
  %s22 = inlined_call_operand.hbm [shape: f32[2,1,16], index: 22, kind: output, shape index: {}]
  %s23 = sld [smem:[#allocation0]]
  $region121: #{_lambda_.1} parent=0
    _
  %s25 = ssub.s32 1, %s23
  %s26 = scalar_select 0, %s25, %s23
  $region1: #{_lambda_.1} parent=0
    #allocation2 [shape = 'u8[1024]{0}', space=vmem, size = 0x400, scoped, tag = 'output window, operand 0']
    #allocation3 [shape = 's32[2]{0}', space=sflag, size = 0x8, scoped, tag = 'scoped memory for _lambda_.1']
    %27 = vsyncpa [#allocation3], 0
    %s28 = scalar_lea.sflag [#allocation3], 1
    %29 = vsyncpa %s28, 0
    loop: start=0, step=1, limit=4
    $region2: #{_lambda_.1} parent=1 // loop_pre_header
      _
    $region3: #{_lambda_.1} parent=1 // loop_header
      %s31 = sphi 0, %s35
      %p32 = scmp.ge.s32.totalorder %s31, 4
      %s41 = sphi 0, %s43
      %s44 = sphi 0, %s41
      %s45 = sphi 0, %s44
      %s61 = sphi 0, %s45
      %s65 = sphi 0, %s65
      %s67 = sphi 0, %s65
      %s68 = sphi 0, %s67
      %s82 = sphi 0, %s68
      %s86 = sphi 0, %s86
      %s88 = sphi 0, %s86
      %s89 = sphi 0, %s88
      %s103 = sphi 0, %s89
      %s107 = sphi 0, %s107
      %s109 = sphi 0, %s107
      %s110 = sphi 0, %s109
      %s124 = sphi 0, %s110
      %s128 = sphi 0, %s128
      %s130 = sphi 0, %s128
      %s131 = sphi 0, %s130
      %s145 = sphi 0, %s131
      %s149 = sphi 0, %s149
      %s151 = sphi 0, %s149
      %s152 = sphi 0, %s151
      %s166 = sphi 0, %s152
      %s170 = sphi 0, %s170
      %s172 = sphi 0, %s170
      %s173 = sphi 0, %s172
      %s187 = sphi 0, %s173
      %s191 = sphi 0, %s191
      %s193 = sphi 0, %s191
      %s194 = sphi 0, %s193
      %s208 = sphi 0, %s194
      %s212 = sphi 0, %s212
      %s214 = sphi 0, %s212
      %s215 = sphi 0, %s214
      %s229 = sphi 0, %s215
      %s233 = sphi 0, %s233
      %s235 = sphi 0, %s233
      %s236 = sphi 0, %s235
      %s250 = sphi 0, %s236
      %s254 = sphi 0, %s254
      %s256 = sphi 0, %s254
      %s257 = sphi 0, %s256
      %s271 = sphi 0, %s257
      %s275 = sphi 0, %s275
      %s277 = sphi 0, %s275
      %s278 = sphi 0, %s277
      %s292 = sphi 0, %s278
      %s296 = sphi 0, %s296
      %s298 = sphi 0, %s296
      %s299 = sphi 0, %s298
      %s313 = sphi 0, %s299
      %s317 = sphi 0, %s317
      %s319 = sphi 0, %s317
      %s320 = sphi 0, %s319
      %s334 = sphi 0, %s320
      %s338 = sphi 0, %s338
      %s340 = sphi 0, %s338
      %s341 = sphi 0, %s340
      %s355 = sphi 0, %s341
      %s359 = sphi 0, %s359
      %s361 = sphi 0, %s359
      %s362 = sphi 0, %s361
      %s376 = sphi 0, %s362
      %s380 = sphi 0, %s380
      %s382 = sphi 0, %s380
      %s383 = sphi 0, %s382
      %s397 = sphi 0, %s383
      %s401 = sphi 0, %s401
      %s403 = sphi 0, %s401
      %s404 = sphi 0, %s403
      %s418 = sphi 0, %s404
      %s422 = sphi 0, %s422
      %s424 = sphi 0, %s422
      %s425 = sphi 0, %s424
      %s439 = sphi 0, %s425
      %s443 = sphi 0, %s443
      %s445 = sphi 0, %s443
      %s446 = sphi 0, %s445
      %s460 = sphi 0, %s446
      %s464 = sphi 0, %s464
      %s466 = sphi 0, %s464
      %s467 = sphi 0, %s466
      %s481 = sphi 0, %s467
      %s485 = sphi 0, %s485
      %s487 = sphi 0, %s485
      %s488 = sphi 0, %s487
      %s502 = sphi 0, %s488
      %s508 = sphi 0, %s510
      %s511 = sphi 0, %s508
      %s512 = sphi 0, %s511
      %s528 = sphi 0, %s512
    $region4: #{_lambda_.1} parent=1 // loop_header_branch
      %34 = sbr.rel (%p32) target = $region8
    $region5: #{_lambda_.1} parent=1 // loop_body
      %s36 = ssub.s32 %s31, 1
      %s37 = ssub.s32 %s31, 2
      %s38 = sadd.s32 %s31, 1
      %s39 = ssub.s32 %s31, %s38
      %p40 = scmp.eq.s32.totalorder %s39, 0
      %s42 = sadd.s32 %s41, 1
      %s43 = scalar_select %p40, %s41, %s42
      %p46 = pneg %p40
      %p47 = scmp.eq.s32.totalorder %s31, 1
      %p48 = por %p46, %p47
      %p49 = scmp.ne.s32.totalorder %s41, %s44
      %p50 = scmp.eq.s32.totalorder %s31, 0
      %p51 = por %p49, %p50
      %p52 = scmp.ne.s32.totalorder %s41, %s44
      %p53 = scmp.eq.s32.totalorder %s36, 1
      %p54 = por %p52, %p53
      %p55 = scmp.ne.s32.totalorder %s44, %s45
      %p56 = scmp.eq.s32.totalorder %s36, 0
      %p57 = por %p55, %p56
      %p58 = scmp.ne.s32.totalorder %s44, %s45
      %p59 = scmp.eq.s32.totalorder %s37, 1
      %p60 = por %p58, %p59
      %p62 = scmp.ne.s32.totalorder %s45, %s61
      %p63 = scmp.eq.s32.totalorder %s37, 0
      %p64 = por %p62, %p63
      %s66 = sadd.s32 %s65, 1
      %p69 = scmp.eq.s32.totalorder %s31, 1
      %p70 = scmp.ne.s32.totalorder %s65, %s67
      %p71 = scmp.eq.s32.totalorder %s31, 0
      %p72 = por %p70, %p71
      %p73 = scmp.ne.s32.totalorder %s65, %s67
      %p74 = scmp.eq.s32.totalorder %s36, 1
      %p75 = por %p73, %p74
      %p76 = scmp.ne.s32.totalorder %s67, %s68
      %p77 = scmp.eq.s32.totalorder %s36, 0
      %p78 = por %p76, %p77
      %p79 = scmp.ne.s32.totalorder %s67, %s68
      %p80 = scmp.eq.s32.totalorder %s37, 1
      %p81 = por %p79, %p80
      %p83 = scmp.ne.s32.totalorder %s68, %s82
      %p84 = scmp.eq.s32.totalorder %s37, 0
      %p85 = por %p83, %p84
      %s87 = sadd.s32 %s86, 1
      %p90 = scmp.eq.s32.totalorder %s31, 1
      %p91 = scmp.ne.s32.totalorder %s86, %s88
      %p92 = scmp.eq.s32.totalorder %s31, 0
      %p93 = por %p91, %p92
      %p94 = scmp.ne.s32.totalorder %s86, %s88
      %p95 = scmp.eq.s32.totalorder %s36, 1
      %p96 = por %p94, %p95
      %p97 = scmp.ne.s32.totalorder %s88, %s89
      %p98 = scmp.eq.s32.totalorder %s36, 0
      %p99 = por %p97, %p98
      %p100 = scmp.ne.s32.totalorder %s88, %s89
      %p101 = scmp.eq.s32.totalorder %s37, 1
      %p102 = por %p100, %p101
      %p104 = scmp.ne.s32.totalorder %s89, %s103
      %p105 = scmp.eq.s32.totalorder %s37, 0
      %p106 = por %p104, %p105
      %s108 = sadd.s32 %s107, 1
      %p111 = scmp.eq.s32.totalorder %s31, 1
      %p112 = scmp.ne.s32.totalorder %s107, %s109
      %p113 = scmp.eq.s32.totalorder %s31, 0
      %p114 = por %p112, %p113
      %p115 = scmp.ne.s32.totalorder %s107, %s109
      %p116 = scmp.eq.s32.totalorder %s36, 1
      %p117 = por %p115, %p116
      %p118 = scmp.ne.s32.totalorder %s109, %s110
      %p119 = scmp.eq.s32.totalorder %s36, 0
      %p120 = por %p118, %p119
      %p121 = scmp.ne.s32.totalorder %s109, %s110
      %p122 = scmp.eq.s32.totalorder %s37, 1
      %p123 = por %p121, %p122
      %p125 = scmp.ne.s32.totalorder %s110, %s124
      %p126 = scmp.eq.s32.totalorder %s37, 0
      %p127 = por %p125, %p126
      %s129 = sadd.s32 %s128, 1
      %p132 = scmp.eq.s32.totalorder %s31, 1
      %p133 = scmp.ne.s32.totalorder %s128, %s130
      %p134 = scmp.eq.s32.totalorder %s31, 0
      %p135 = por %p133, %p134
      %p136 = scmp.ne.s32.totalorder %s128, %s130
      %p137 = scmp.eq.s32.totalorder %s36, 1
      %p138 = por %p136, %p137
      %p139 = scmp.ne.s32.totalorder %s130, %s131
      %p140 = scmp.eq.s32.totalorder %s36, 0
      %p141 = por %p139, %p140
      %p142 = scmp.ne.s32.totalorder %s130, %s131
      %p143 = scmp.eq.s32.totalorder %s37, 1
      %p144 = por %p142, %p143
      %p146 = scmp.ne.s32.totalorder %s131, %s145
      %p147 = scmp.eq.s32.totalorder %s37, 0
      %p148 = por %p146, %p147
      %s150 = sadd.s32 %s149, 1
      %p153 = scmp.eq.s32.totalorder %s31, 1
      %p154 = scmp.ne.s32.totalorder %s149, %s151
      %p155 = scmp.eq.s32.totalorder %s31, 0
      %p156 = por %p154, %p155
      %p157 = scmp.ne.s32.totalorder %s149, %s151
      %p158 = scmp.eq.s32.totalorder %s36, 1
      %p159 = por %p157, %p158
      %p160 = scmp.ne.s32.totalorder %s151, %s152
      %p161 = scmp.eq.s32.totalorder %s36, 0
      %p162 = por %p160, %p161
      %p163 = scmp.ne.s32.totalorder %s151, %s152
      %p164 = scmp.eq.s32.totalorder %s37, 1
      %p165 = por %p163, %p164
      %p167 = scmp.ne.s32.totalorder %s152, %s166
      %p168 = scmp.eq.s32.totalorder %s37, 0
      %p169 = por %p167, %p168
      %s171 = sadd.s32 %s170, 1
      %p174 = scmp.eq.s32.totalorder %s31, 1
      %p175 = scmp.ne.s32.totalorder %s170, %s172
      %p176 = scmp.eq.s32.totalorder %s31, 0
      %p177 = por %p175, %p176
      %p178 = scmp.ne.s32.totalorder %s170, %s172
      %p179 = scmp.eq.s32.totalorder %s36, 1
      %p180 = por %p178, %p179
      %p181 = scmp.ne.s32.totalorder %s172, %s173
      %p182 = scmp.eq.s32.totalorder %s36, 0
      %p183 = por %p181, %p182
      %p184 = scmp.ne.s32.totalorder %s172, %s173
      %p185 = scmp.eq.s32.totalorder %s37, 1
      %p186 = por %p184, %p185
      %p188 = scmp.ne.s32.totalorder %s173, %s187
      %p189 = scmp.eq.s32.totalorder %s37, 0
      %p190 = por %p188, %p189
      %s192 = sadd.s32 %s191, 1
      %p195 = scmp.eq.s32.totalorder %s31, 1
      %p196 = scmp.ne.s32.totalorder %s191, %s193
      %p197 = scmp.eq.s32.totalorder %s31, 0
      %p198 = por %p196, %p197
      %p199 = scmp.ne.s32.totalorder %s191, %s193
      %p200 = scmp.eq.s32.totalorder %s36, 1
      %p201 = por %p199, %p200
      %p202 = scmp.ne.s32.totalorder %s193, %s194
      %p203 = scmp.eq.s32.totalorder %s36, 0
      %p204 = por %p202, %p203
      %p205 = scmp.ne.s32.totalorder %s193, %s194
      %p206 = scmp.eq.s32.totalorder %s37, 1
      %p207 = por %p205, %p206
      %p209 = scmp.ne.s32.totalorder %s194, %s208
      %p210 = scmp.eq.s32.totalorder %s37, 0
      %p211 = por %p209, %p210
      %s213 = sadd.s32 %s212, 1
      %p216 = scmp.eq.s32.totalorder %s31, 1
      %p217 = scmp.ne.s32.totalorder %s212, %s214
      %p218 = scmp.eq.s32.totalorder %s31, 0
      %p219 = por %p217, %p218
      %p220 = scmp.ne.s32.totalorder %s212, %s214
      %p221 = scmp.eq.s32.totalorder %s36, 1
      %p222 = por %p220, %p221
      %p223 = scmp.ne.s32.totalorder %s214, %s215
      %p224 = scmp.eq.s32.totalorder %s36, 0
      %p225 = por %p223, %p224
      %p226 = scmp.ne.s32.totalorder %s214, %s215
      %p227 = scmp.eq.s32.totalorder %s37, 1
      %p228 = por %p226, %p227
      %p230 = scmp.ne.s32.totalorder %s215, %s229
      %p231 = scmp.eq.s32.totalorder %s37, 0
      %p232 = por %p230, %p231
      %s234 = sadd.s32 %s233, 1
      %p237 = scmp.eq.s32.totalorder %s31, 1
      %p238 = scmp.ne.s32.totalorder %s233, %s235
      %p239 = scmp.eq.s32.totalorder %s31, 0
      %p240 = por %p238, %p239
      %p241 = scmp.ne.s32.totalorder %s233, %s235
      %p242 = scmp.eq.s32.totalorder %s36, 1
      %p243 = por %p241, %p242
      %p244 = scmp.ne.s32.totalorder %s235, %s236
      %p245 = scmp.eq.s32.totalorder %s36, 0
      %p246 = por %p244, %p245
      %p247 = scmp.ne.s32.totalorder %s235, %s236
      %p248 = scmp.eq.s32.totalorder %s37, 1
      %p249 = por %p247, %p248
      %p251 = scmp.ne.s32.totalorder %s236, %s250
      %p252 = scmp.eq.s32.totalorder %s37, 0
      %p253 = por %p251, %p252
      %s255 = sadd.s32 %s254, 1
      %p258 = scmp.eq.s32.totalorder %s31, 1
      %p259 = scmp.ne.s32.totalorder %s254, %s256
      %p260 = scmp.eq.s32.totalorder %s31, 0
      %p261 = por %p259, %p260
      %p262 = scmp.ne.s32.totalorder %s254, %s256
      %p263 = scmp.eq.s32.totalorder %s36, 1
      %p264 = por %p262, %p263
      %p265 = scmp.ne.s32.totalorder %s256, %s257
      %p266 = scmp.eq.s32.totalorder %s36, 0
      %p267 = por %p265, %p266
      %p268 = scmp.ne.s32.totalorder %s256, %s257
      %p269 = scmp.eq.s32.totalorder %s37, 1
      %p270 = por %p268, %p269
      %p272 = scmp.ne.s32.totalorder %s257, %s271
      %p273 = scmp.eq.s32.totalorder %s37, 0
      %p274 = por %p272, %p273
      %s276 = sadd.s32 %s275, 1
      %p279 = scmp.eq.s32.totalorder %s31, 1
      %p280 = scmp.ne.s32.totalorder %s275, %s277
      %p281 = scmp.eq.s32.totalorder %s31, 0
      %p282 = por %p280, %p281
      %p283 = scmp.ne.s32.totalorder %s275, %s277
      %p284 = scmp.eq.s32.totalorder %s36, 1
      %p285 = por %p283, %p284
      %p286 = scmp.ne.s32.totalorder %s277, %s278
      %p287 = scmp.eq.s32.totalorder %s36, 0
      %p288 = por %p286, %p287
      %p289 = scmp.ne.s32.totalorder %s277, %s278
      %p290 = scmp.eq.s32.totalorder %s37, 1
      %p291 = por %p289, %p290
      %p293 = scmp.ne.s32.totalorder %s278, %s292
      %p294 = scmp.eq.s32.totalorder %s37, 0
      %p295 = por %p293, %p294
      %s297 = sadd.s32 %s296, 1
      %p300 = scmp.eq.s32.totalorder %s31, 1
      %p301 = scmp.ne.s32.totalorder %s296, %s298
      %p302 = scmp.eq.s32.totalorder %s31, 0
      %p303 = por %p301, %p302
      %p304 = scmp.ne.s32.totalorder %s296, %s298
      %p305 = scmp.eq.s32.totalorder %s36, 1
      %p306 = por %p304, %p305
      %p307 = scmp.ne.s32.totalorder %s298, %s299
      %p308 = scmp.eq.s32.totalorder %s36, 0
      %p309 = por %p307, %p308
      %p310 = scmp.ne.s32.totalorder %s298, %s299
      %p311 = scmp.eq.s32.totalorder %s37, 1
      %p312 = por %p310, %p311
      %p314 = scmp.ne.s32.totalorder %s299, %s313
      %p315 = scmp.eq.s32.totalorder %s37, 0
      %p316 = por %p314, %p315
      %s318 = sadd.s32 %s317, 1
      %p321 = scmp.eq.s32.totalorder %s31, 1
      %p322 = scmp.ne.s32.totalorder %s317, %s319
      %p323 = scmp.eq.s32.totalorder %s31, 0
      %p324 = por %p322, %p323
      %p325 = scmp.ne.s32.totalorder %s317, %s319
      %p326 = scmp.eq.s32.totalorder %s36, 1
      %p327 = por %p325, %p326
      %p328 = scmp.ne.s32.totalorder %s319, %s320
      %p329 = scmp.eq.s32.totalorder %s36, 0
      %p330 = por %p328, %p329
      %p331 = scmp.ne.s32.totalorder %s319, %s320
      %p332 = scmp.eq.s32.totalorder %s37, 1
      %p333 = por %p331, %p332
      %p335 = scmp.ne.s32.totalorder %s320, %s334
      %p336 = scmp.eq.s32.totalorder %s37, 0
      %p337 = por %p335, %p336
      %s339 = sadd.s32 %s338, 1
      %p342 = scmp.eq.s32.totalorder %s31, 1
      %p343 = scmp.ne.s32.totalorder %s338, %s340
      %p344 = scmp.eq.s32.totalorder %s31, 0
      %p345 = por %p343, %p344
      %p346 = scmp.ne.s32.totalorder %s338, %s340
      %p347 = scmp.eq.s32.totalorder %s36, 1
      %p348 = por %p346, %p347
      %p349 = scmp.ne.s32.totalorder %s340, %s341
      %p350 = scmp.eq.s32.totalorder %s36, 0
      %p351 = por %p349, %p350
      %p352 = scmp.ne.s32.totalorder %s340, %s341
      %p353 = scmp.eq.s32.totalorder %s37, 1
      %p354 = por %p352, %p353
      %p356 = scmp.ne.s32.totalorder %s341, %s355
      %p357 = scmp.eq.s32.totalorder %s37, 0
      %p358 = por %p356, %p357
      %s360 = sadd.s32 %s359, 1
      %p363 = scmp.eq.s32.totalorder %s31, 1
      %p364 = scmp.ne.s32.totalorder %s359, %s361
      %p365 = scmp.eq.s32.totalorder %s31, 0
      %p366 = por %p364, %p365
      %p367 = scmp.ne.s32.totalorder %s359, %s361
      %p368 = scmp.eq.s32.totalorder %s36, 1
      %p369 = por %p367, %p368
      %p370 = scmp.ne.s32.totalorder %s361, %s362
      %p371 = scmp.eq.s32.totalorder %s36, 0
      %p372 = por %p370, %p371
      %p373 = scmp.ne.s32.totalorder %s361, %s362
      %p374 = scmp.eq.s32.totalorder %s37, 1
      %p375 = por %p373, %p374
      %p377 = scmp.ne.s32.totalorder %s362, %s376
      %p378 = scmp.eq.s32.totalorder %s37, 0
      %p379 = por %p377, %p378
      %s381 = sadd.s32 %s380, 1
      %p384 = scmp.eq.s32.totalorder %s31, 1
      %p385 = scmp.ne.s32.totalorder %s380, %s382
      %p386 = scmp.eq.s32.totalorder %s31, 0
      %p387 = por %p385, %p386
      %p388 = scmp.ne.s32.totalorder %s380, %s382
      %p389 = scmp.eq.s32.totalorder %s36, 1
      %p390 = por %p388, %p389
      %p391 = scmp.ne.s32.totalorder %s382, %s383
      %p392 = scmp.eq.s32.totalorder %s36, 0
      %p393 = por %p391, %p392
      %p394 = scmp.ne.s32.totalorder %s382, %s383
      %p395 = scmp.eq.s32.totalorder %s37, 1
      %p396 = por %p394, %p395
      %p398 = scmp.ne.s32.totalorder %s383, %s397
      %p399 = scmp.eq.s32.totalorder %s37, 0
      %p400 = por %p398, %p399
      %s402 = sadd.s32 %s401, 1
      %p405 = scmp.eq.s32.totalorder %s31, 1
      %p406 = scmp.ne.s32.totalorder %s401, %s403
      %p407 = scmp.eq.s32.totalorder %s31, 0
      %p408 = por %p406, %p407
      %p409 = scmp.ne.s32.totalorder %s401, %s403
      %p410 = scmp.eq.s32.totalorder %s36, 1
      %p411 = por %p409, %p410
      %p412 = scmp.ne.s32.totalorder %s403, %s404
      %p413 = scmp.eq.s32.totalorder %s36, 0
      %p414 = por %p412, %p413
      %p415 = scmp.ne.s32.totalorder %s403, %s404
      %p416 = scmp.eq.s32.totalorder %s37, 1
      %p417 = por %p415, %p416
      %p419 = scmp.ne.s32.totalorder %s404, %s418
      %p420 = scmp.eq.s32.totalorder %s37, 0
      %p421 = por %p419, %p420
      %s423 = sadd.s32 %s422, 1
      %p426 = scmp.eq.s32.totalorder %s31, 1
      %p427 = scmp.ne.s32.totalorder %s422, %s424
      %p428 = scmp.eq.s32.totalorder %s31, 0
      %p429 = por %p427, %p428
      %p430 = scmp.ne.s32.totalorder %s422, %s424
      %p431 = scmp.eq.s32.totalorder %s36, 1
      %p432 = por %p430, %p431
      %p433 = scmp.ne.s32.totalorder %s424, %s425
      %p434 = scmp.eq.s32.totalorder %s36, 0
      %p435 = por %p433, %p434
      %p436 = scmp.ne.s32.totalorder %s424, %s425
      %p437 = scmp.eq.s32.totalorder %s37, 1
      %p438 = por %p436, %p437
      %p440 = scmp.ne.s32.totalorder %s425, %s439
      %p441 = scmp.eq.s32.totalorder %s37, 0
      %p442 = por %p440, %p441
      %s444 = sadd.s32 %s443, 1
      %p447 = scmp.eq.s32.totalorder %s31, 1
      %p448 = scmp.ne.s32.totalorder %s443, %s445
      %p449 = scmp.eq.s32.totalorder %s31, 0
      %p450 = por %p448, %p449
      %p451 = scmp.ne.s32.totalorder %s443, %s445
      %p452 = scmp.eq.s32.totalorder %s36, 1
      %p453 = por %p451, %p452
      %p454 = scmp.ne.s32.totalorder %s445, %s446
      %p455 = scmp.eq.s32.totalorder %s36, 0
      %p456 = por %p454, %p455
      %p457 = scmp.ne.s32.totalorder %s445, %s446
      %p458 = scmp.eq.s32.totalorder %s37, 1
      %p459 = por %p457, %p458
      %p461 = scmp.ne.s32.totalorder %s446, %s460
      %p462 = scmp.eq.s32.totalorder %s37, 0
      %p463 = por %p461, %p462
      %s465 = sadd.s32 %s464, 1
      %p468 = scmp.eq.s32.totalorder %s31, 1
      %p469 = scmp.ne.s32.totalorder %s464, %s466
      %p470 = scmp.eq.s32.totalorder %s31, 0
      %p471 = por %p469, %p470
      %p472 = scmp.ne.s32.totalorder %s464, %s466
      %p473 = scmp.eq.s32.totalorder %s36, 1
      %p474 = por %p472, %p473
      %p475 = scmp.ne.s32.totalorder %s466, %s467
      %p476 = scmp.eq.s32.totalorder %s36, 0
      %p477 = por %p475, %p476
      %p478 = scmp.ne.s32.totalorder %s466, %s467
      %p479 = scmp.eq.s32.totalorder %s37, 1
      %p480 = por %p478, %p479
      %p482 = scmp.ne.s32.totalorder %s467, %s481
      %p483 = scmp.eq.s32.totalorder %s37, 0
      %p484 = por %p482, %p483
      %s486 = sadd.s32 %s485, 1
      %p489 = scmp.eq.s32.totalorder %s31, 1
      %p490 = scmp.ne.s32.totalorder %s485, %s487
      %p491 = scmp.eq.s32.totalorder %s31, 0
      %p492 = por %p490, %p491
      %p493 = scmp.ne.s32.totalorder %s485, %s487
      %p494 = scmp.eq.s32.totalorder %s36, 1
      %p495 = por %p493, %p494
      %p496 = scmp.ne.s32.totalorder %s487, %s488
      %p497 = scmp.eq.s32.totalorder %s36, 0
      %p498 = por %p496, %p497
      %p499 = scmp.ne.s32.totalorder %s487, %s488
      %p500 = scmp.eq.s32.totalorder %s37, 1
      %p501 = por %p499, %p500
      %p503 = scmp.ne.s32.totalorder %s488, %s502
      %p504 = scmp.eq.s32.totalorder %s37, 0
      %p505 = por %p503, %p504
      %s506 = ssub.s32 %s31, %s38
      %p507 = scmp.eq.s32.totalorder %s506, 0
      %s509 = sadd.s32 %s508, 1
      %s510 = scalar_select %p507, %s508, %s509
      %p513 = pneg %p507
      %p514 = scmp.eq.s32.totalorder %s31, 1
      %p515 = por %p513, %p514
      %p516 = scmp.ne.s32.totalorder %s508, %s511
      %p517 = scmp.eq.s32.totalorder %s31, 0
      %p518 = por %p516, %p517
      %p519 = scmp.ne.s32.totalorder %s508, %s511
      %p520 = scmp.eq.s32.totalorder %s36, 1
      %p521 = por %p519, %p520
      %p522 = scmp.ne.s32.totalorder %s511, %s512
      %p523 = scmp.eq.s32.totalorder %s36, 0
      %p524 = por %p522, %p523
      %p525 = scmp.ne.s32.totalorder %s511, %s512
      %p526 = scmp.eq.s32.totalorder %s37, 1
      %p527 = por %p525, %p526
      %p529 = scmp.ne.s32.totalorder %s512, %s528
      %p530 = scmp.eq.s32.totalorder %s37, 0
      %p531 = por %p529, %p530
      %p532 = scmp.le.s32.totalorder 1, %s31
      %p533 = scmp.lt.s32.totalorder %s31, 3
      %p534 = pnand %p532, %p533
      %p535 = pneg %p534
      // Predicated region
      $region9: #{_lambda_.1} parent=5 // pred_check
        _
      $region10: #{_lambda_.1} parent=5 // pred_check_branch
        %537 = sbr.rel (%p534) target = $region12
      $region11: #{_lambda_.1} parent=5 // pred_region
        %s538 = ssub.s32 %s31, 1
        // Predicated region
        $region13: #{_lambda_.1} parent=11 // pred_check
          %p539 = pneg %p78
        $region14: #{_lambda_.1} parent=11 // pred_check_branch
          %541 = sbr.rel (%p539) target = $region16
        $region15: #{_lambda_.1} parent=11 // pred_region
          _
        $region16: #{_lambda_.1} parent=11 // pred_fallthru
          _
        // Predicated region
        $region17: #{_lambda_.1} parent=11 // pred_check
          %p542 = pneg %p99
        $region18: #{_lambda_.1} parent=11 // pred_check_branch
          %544 = sbr.rel (%p542) target = $region20
        $region19: #{_lambda_.1} parent=11 // pred_region
          _
        $region20: #{_lambda_.1} parent=11 // pred_fallthru
          _
        // Predicated region
        $region21: #{_lambda_.1} parent=11 // pred_check
          %p545 = pneg %p120
        $region22: #{_lambda_.1} parent=11 // pred_check_branch
          %547 = sbr.rel (%p545) target = $region24
        $region23: #{_lambda_.1} parent=11 // pred_region
          _
        $region24: #{_lambda_.1} parent=11 // pred_fallthru
          _
        // Predicated region
        $region25: #{_lambda_.1} parent=11 // pred_check
          %p548 = pneg %p141
        $region26: #{_lambda_.1} parent=11 // pred_check_branch
          %550 = sbr.rel (%p548) target = $region28
        $region27: #{_lambda_.1} parent=11 // pred_region
          _
        $region28: #{_lambda_.1} parent=11 // pred_fallthru
          _
        // Predicated region
        $region29: #{_lambda_.1} parent=11 // pred_check
          %p551 = pneg %p162
        $region30: #{_lambda_.1} parent=11 // pred_check_branch
          %553 = sbr.rel (%p551) target = $region32
        $region31: #{_lambda_.1} parent=11 // pred_region
          _
        $region32: #{_lambda_.1} parent=11 // pred_fallthru
          _
        // Predicated region
        $region33: #{_lambda_.1} parent=11 // pred_check
          %p554 = pneg %p183
        $region34: #{_lambda_.1} parent=11 // pred_check_branch
          %556 = sbr.rel (%p554) target = $region36
        $region35: #{_lambda_.1} parent=11 // pred_region
          _
        $region36: #{_lambda_.1} parent=11 // pred_fallthru
          _
        // Predicated region
        $region37: #{_lambda_.1} parent=11 // pred_check
          %p557 = pneg %p204
        $region38: #{_lambda_.1} parent=11 // pred_check_branch
          %559 = sbr.rel (%p557) target = $region40
        $region39: #{_lambda_.1} parent=11 // pred_region
          _
        $region40: #{_lambda_.1} parent=11 // pred_fallthru
          _
        // Predicated region
        $region41: #{_lambda_.1} parent=11 // pred_check
          %p560 = pneg %p225
        $region42: #{_lambda_.1} parent=11 // pred_check_branch
          %562 = sbr.rel (%p560) target = $region44
        $region43: #{_lambda_.1} parent=11 // pred_region
          _
        $region44: #{_lambda_.1} parent=11 // pred_fallthru
          _
        // Predicated region
        $region45: #{_lambda_.1} parent=11 // pred_check
          %p563 = pneg %p246
        $region46: #{_lambda_.1} parent=11 // pred_check_branch
          %565 = sbr.rel (%p563) target = $region48
        $region47: #{_lambda_.1} parent=11 // pred_region
          _
        $region48: #{_lambda_.1} parent=11 // pred_fallthru
          _
        // Predicated region
        $region49: #{_lambda_.1} parent=11 // pred_check
          %p566 = pneg %p267
        $region50: #{_lambda_.1} parent=11 // pred_check_branch
          %568 = sbr.rel (%p566) target = $region52
        $region51: #{_lambda_.1} parent=11 // pred_region
          _
        $region52: #{_lambda_.1} parent=11 // pred_fallthru
          _
        // Predicated region
        $region53: #{_lambda_.1} parent=11 // pred_check
          %p569 = pneg %p288
        $region54: #{_lambda_.1} parent=11 // pred_check_branch
          %571 = sbr.rel (%p569) target = $region56
        $region55: #{_lambda_.1} parent=11 // pred_region
          _
        $region56: #{_lambda_.1} parent=11 // pred_fallthru
          _
        // Predicated region
        $region57: #{_lambda_.1} parent=11 // pred_check
          %p572 = pneg %p309
        $region58: #{_lambda_.1} parent=11 // pred_check_branch
          %574 = sbr.rel (%p572) target = $region60
        $region59: #{_lambda_.1} parent=11 // pred_region
          _
        $region60: #{_lambda_.1} parent=11 // pred_fallthru
          _
        // Predicated region
        $region61: #{_lambda_.1} parent=11 // pred_check
          %p575 = pneg %p330
        $region62: #{_lambda_.1} parent=11 // pred_check_branch
          %577 = sbr.rel (%p575) target = $region64
        $region63: #{_lambda_.1} parent=11 // pred_region
          _
        $region64: #{_lambda_.1} parent=11 // pred_fallthru
          _
        // Predicated region
        $region65: #{_lambda_.1} parent=11 // pred_check
          %p578 = pneg %p351
        $region66: #{_lambda_.1} parent=11 // pred_check_branch
          %580 = sbr.rel (%p578) target = $region68
        $region67: #{_lambda_.1} parent=11 // pred_region
          _
        $region68: #{_lambda_.1} parent=11 // pred_fallthru
          _
        // Predicated region
        $region69: #{_lambda_.1} parent=11 // pred_check
          %p581 = pneg %p372
        $region70: #{_lambda_.1} parent=11 // pred_check_branch
          %583 = sbr.rel (%p581) target = $region72
        $region71: #{_lambda_.1} parent=11 // pred_region
          _
        $region72: #{_lambda_.1} parent=11 // pred_fallthru
          _
        // Predicated region
        $region73: #{_lambda_.1} parent=11 // pred_check
          %p584 = pneg %p393
        $region74: #{_lambda_.1} parent=11 // pred_check_branch
          %586 = sbr.rel (%p584) target = $region76
        $region75: #{_lambda_.1} parent=11 // pred_region
          _
        $region76: #{_lambda_.1} parent=11 // pred_fallthru
          _
        // Predicated region
        $region77: #{_lambda_.1} parent=11 // pred_check
          %p587 = pneg %p414
        $region78: #{_lambda_.1} parent=11 // pred_check_branch
          %589 = sbr.rel (%p587) target = $region80
        $region79: #{_lambda_.1} parent=11 // pred_region
          _
        $region80: #{_lambda_.1} parent=11 // pred_fallthru
          _
        // Predicated region
        $region81: #{_lambda_.1} parent=11 // pred_check
          %p590 = pneg %p435
        $region82: #{_lambda_.1} parent=11 // pred_check_branch
          %592 = sbr.rel (%p590) target = $region84
        $region83: #{_lambda_.1} parent=11 // pred_region
          _
        $region84: #{_lambda_.1} parent=11 // pred_fallthru
          _
        // Predicated region
        $region85: #{_lambda_.1} parent=11 // pred_check
          %p593 = pneg %p456
        $region86: #{_lambda_.1} parent=11 // pred_check_branch
          %595 = sbr.rel (%p593) target = $region88
        $region87: #{_lambda_.1} parent=11 // pred_region
          _
        $region88: #{_lambda_.1} parent=11 // pred_fallthru
          _
        // Predicated region
        $region89: #{_lambda_.1} parent=11 // pred_check
          %p596 = pneg %p477
        $region90: #{_lambda_.1} parent=11 // pred_check_branch
          %598 = sbr.rel (%p596) target = $region92
        $region91: #{_lambda_.1} parent=11 // pred_region
          _
        $region92: #{_lambda_.1} parent=11 // pred_fallthru
          _
        // Predicated region
        $region93: #{_lambda_.1} parent=11 // pred_check
          %p599 = pneg %p498
        $region94: #{_lambda_.1} parent=11 // pred_check_branch
          %601 = sbr.rel (%p599) target = $region96
        $region95: #{_lambda_.1} parent=11 // pred_region
          _
        $region96: #{_lambda_.1} parent=11 // pred_fallthru
          _
      $region12: #{_lambda_.1} parent=5 // pred_fallthru
        _
      %p602 = scmp.lt.s32.totalorder %s31, 2
      // Predicated region
      $region97: #{_lambda_.1} parent=5 // pred_check
        %p603 = pneg %p602
      $region98: #{_lambda_.1} parent=5 // pred_check_branch
        %605 = sbr.rel (%p603) target = $region100
      $region99: #{_lambda_.1} parent=5 // pred_region
        // Predicated region
        $region101: #{_lambda_.1} parent=99 // pred_check
          %p606 = pneg %p51
        $region102: #{_lambda_.1} parent=99 // pred_check_branch
          %608 = sbr.rel (%p606) target = $region104
        $region103: #{_lambda_.1} parent=99 // pred_region
          %p609 = scmp.lt.s32.totalorder %s31, 1
          %s610 = scalar_select %p609, %s31, 1
          %s611 = smul.addr %s610, 6
          %s612 = smul.addr %s611, 8
          %s613 = scalar_lea.vmem %s0, %s612
        $region104: #{_lambda_.1} parent=99 // pred_fallthru
          _
      $region100: #{_lambda_.1} parent=5 // pred_fallthru
        _
      %p614 = scmp.le.s32.totalorder 1, %s31
      %p615 = scmp.lt.s32.totalorder %s31, 3
      %p616 = pnand %p614, %p615
      %p617 = pneg %p616
      // Predicated region
      $region105: #{_lambda_.1} parent=5 // pred_check
        _
      $region106: #{_lambda_.1} parent=5 // pred_check_branch
        %619 = sbr.rel (%p616) target = $region108
      $region107: #{_lambda_.1} parent=5 // pred_region
        %s620 = ssub.s32 %s31, 1
        %p621 = scmp.lt.s32.totalorder %s36, 1
        %s622 = scalar_select %p621, %s36, 1
        %s623 = smul.addr %s622, 6
        %s624 = smul.addr %s623, 8
        %s625 = scalar_lea.vmem %s0, %s624
        %p626 = pneg %p57
        %p627 = pneg %p54
        %p628 = pneg %p78
        %p629 = pneg %p75
        %p630 = pneg %p99
        %p631 = pneg %p96
        %p632 = pneg %p120
        %p633 = pneg %p117
        %p634 = pneg %p141
        %p635 = pneg %p138
        %p636 = pneg %p162
        %p637 = pneg %p159
        %p638 = pneg %p183
        %p639 = pneg %p180
        %p640 = pneg %p204
        %p641 = pneg %p201
        %p642 = pneg %p225
        %p643 = pneg %p222
        %p644 = pneg %p246
        %p645 = pneg %p243
        %p646 = pneg %p267
        %p647 = pneg %p264
        %p648 = pneg %p288
        %p649 = pneg %p285
        %p650 = pneg %p309
        %p651 = pneg %p306
        %p652 = pneg %p330
        %p653 = pneg %p327
        %p654 = pneg %p351
        %p655 = pneg %p348
        %p656 = pneg %p372
        %p657 = pneg %p369
        %p658 = pneg %p393
        %p659 = pneg %p390
        %p660 = pneg %p414
        %p661 = pneg %p411
        %p662 = pneg %p435
        %p663 = pneg %p432
        %p664 = pneg %p456
        %p665 = pneg %p453
        %p666 = pneg %p477
        %p667 = pneg %p474
        %p668 = pneg %p498
        %p669 = pneg %p495
        %p670 = pneg %p524
        %p671 = pneg %p521
        %s672 = sand.u32 %s511, 1
        %s673 = scalar_lea.sflag [#allocation3], %s672
        %s674 = sand.u32 %s511, 1
        %s675 = scalar_lea.vmem [#allocation2], %s674
        %p676 = scmp.lt.s32.totalorder %s36, 1
        %s677 = scalar_select %p676, %s36, 1
        %s678 = smul.addr %s677, 6
        %s679 = smul.addr %s678, 8
        %s680 = scalar_lea.vmem %s0, %s679
        %v681 = vld [vmem:[%s680] sm:$0xff]
        %v682 = vld [vmem:[%s680 + $0x8] sm:$0xff]
        %v683 = vld [vmem:[%s680 + $0x10] sm:$0xff]
        %v684 = vld [vmem:[%s680 + $0x18] sm:$0xff]
        %v685 = vld [vmem:[%s680 + $0x20] sm:$0x1]
        %v686 = vld [vmem:[%s680 + $0x28] sm:$0x1]
        %v687 = vld [vmem:[%s1] sm:$0xff]
        %v688 = vld [vmem:[%s1 + $0x8] sm:$0xff]
        %v689 = vld [vmem:[%s1 + $0x10] sm:$0xff]
        %v690 = vld [vmem:[%s1 + $0x18] sm:$0xff]
        %v691 = vld [vmem:[%s1 + $0x20] sm:$0xff]
        %v692 = vld [vmem:[%s1 + $0x28] sm:$0xff]
        %v693 = vld [vmem:[%s1 + $0x30] sm:$0xff]
        %v694 = vld [vmem:[%s1 + $0x38] sm:$0xff]
        %v695 = vld [vmem:[%s1 + $0x40] sm:$0xff]
        %v696 = vld [vmem:[%s1 + $0x48] sm:$0xff]
        %v697 = vld [vmem:[%s1 + $0x50] sm:$0xff]
        %v698 = vld [vmem:[%s1 + $0x58] sm:$0xff]
        %v699 = vld [vmem:[%s1 + $0x60] sm:$0xff]
        %v700 = vld [vmem:[%s1 + $0x68] sm:$0xff]
        %v701 = vld [vmem:[%s1 + $0x70] sm:$0xff]
        %v702 = vld [vmem:[%s1 + $0x78] sm:$0xff]
        %v703 = vld [vmem:[%s1 + $0x80] sm:$0xff]
        %v704 = vld [vmem:[%s1 + $0x88] sm:$0xff]
        %v705 = vld [vmem:[%s1 + $0x90] sm:$0xff]
        %v706 = vld [vmem:[%s1 + $0x98] sm:$0xff]
        %v707 = vld [vmem:[%s1 + $0xa0] sm:$0xff]
        %v708 = vld [vmem:[%s1 + $0xa8] sm:$0xff]
        %v709 = vld [vmem:[%s1 + $0xb0] sm:$0xff]
        %v710 = vld [vmem:[%s1 + $0xb8] sm:$0xff]
        %v711 = vld [vmem:[%s2] sm:$0x1]
        %v713 = vlaneseq
        %v714 = vshrl.u32 %v713, 7
        %v715 = vsub.s32 0, %v714
        %v716 = vrot.slane %v711, %v715
        %vm718 = vcmask 523264
        %v720 = vsel %vm718, %v682, 0
        %v723 = vsel %vm718, %v684, 0
        %v726 = vsel %vm718, %v686, 0
        %728 = vmatprep.subr.mxu0 0.0
        %729 = vmatpush1.msra.mxu0 %v702
        %730 = vmatprep.subr.mxu0 0.0
        %731 = vmatpush1.msra.mxu0 %v701
        %732 = vmatprep.subr.mxu0 0.0
        %733 = vmatpush1.msra.mxu0 %v700
        %734 = vmatprep.subr.mxu0 0.0
        %735 = vmatpush1.msra.mxu0 %v699
        %736 = vmatprep.subr.mxu0 0.0
        %737 = vmatpush1.msra.mxu0 %v698
        %738 = vmatprep.subr.mxu0 0.0
        %739 = vmatpush1.msra.mxu0 %v697
        %740 = vmatprep.subr.mxu0 0.0
        %741 = vmatpush1.msra.mxu0 %v696
        %742 = vmatprep.subr.mxu0 0.0
        %743 = vmatpush1.msra.mxu0 %v695
        %744 = vmatprep.subr.mxu0 0.0
        %745 = vmatpush1.msra.mxu0 %v694
        %746 = vmatprep.subr.mxu0 0.0
        %747 = vmatpush1.msra.mxu0 %v693
        %748 = vmatprep.subr.mxu0 0.0
        %749 = vmatpush1.msra.mxu0 %v692
        %750 = vmatprep.subr.mxu0 0.0
        %751 = vmatpush1.msra.mxu0 %v691
        %752 = vmatprep.subr.mxu0 0.0
        %753 = vmatpush1.msra.mxu0 %v690
        %754 = vmatprep.subr.mxu0 0.0
        %755 = vmatpush1.msra.mxu0 %v689
        %756 = vmatprep.subr.mxu0 0.0
        %757 = vmatpush1.msra.mxu0 %v688
        %758 = vmatprep.subr.mxu0 0.0
        %759 = vmatpush1.msra.mxu0 %v687
        %760 = vmatprep.subr.mxu0 0.0
        %761 = vmatpush2.msra.mxu0 0.0
        %762 = vmatprep.subr.mxu0 0.0
        %763 = vmatpush2.msra.mxu0 0.0
        %764 = vmatprep.subr.mxu0 0.0
        %765 = vmatpush2.msra.mxu0 0.0
        %766 = vmatprep.subr.mxu0 0.0
        %767 = vmatpush2.msra.mxu0 0.0
        %768 = vmatprep.subr.mxu0 0.0
        %769 = vmatpush2.msra.mxu0 0.0
        %770 = vmatprep.subr.mxu0 0.0
        %771 = vmatpush2.msra.mxu0 0.0
        %772 = vmatprep.subr.mxu0 0.0
        %773 = vmatpush2.msra.mxu0 0.0
        %774 = vmatprep.subr.mxu0 0.0
        %775 = vmatpush2.msra.mxu0 0.0
        %776 = vmatprep.subr.mxu0 0.0
        %777 = vmatpush2.msra.mxu0 %v710
        %778 = vmatprep.subr.mxu0 0.0
        %779 = vmatpush2.msra.mxu0 %v709
        %780 = vmatprep.subr.mxu0 0.0
        %781 = vmatpush2.msra.mxu0 %v708
        %782 = vmatprep.subr.mxu0 0.0
        %783 = vmatpush2.msra.mxu0 %v707
        %784 = vmatprep.subr.mxu0 0.0
        %785 = vmatpush2.msra.mxu0 %v706
        %786 = vmatprep.subr.mxu0 0.0
        %787 = vmatpush2.msra.mxu0 %v705
        %788 = vmatprep.subr.mxu0 0.0
        %789 = vmatpush2.msra.mxu0 %v704
        %790 = vmatprep.subr.mxu0 0.0
        %791 = vmatpush2.msra.mxu0 %v703
        %792 = vmatprep.mubr.f32.mxu0 %v720
        %793 = vmatmul.mubr.f32.gmra.mxu0 %v681
        %v794 = vpop.f32.mrf.mxu0
        %v795 = vadd.f32 %v716, %v794
        %v796 = vpop.f32.mrf.mxu0
        %797 = vmatprep.mubr.f32.mxu0 %v723
        %798 = vmatmul.mubr.f32.gmra.mxu0 %v683
        %v799 = vpop.f32.mrf.mxu0
        %v800 = vadd.f32 %v716, %v799
        %v801 = vpop.f32.mrf.mxu0
        %802 = vmatprep.mubr.f32.mxu0 %v726
        %803 = vmatmul.mubr.f32.gmra.mxu0 %v685
        %v804 = vpop.f32.mrf.mxu0
        %v805 = vadd.f32 %v716, %v804
        %v806 = vpop.f32.mrf.mxu0
        %807 = vdwg.mxu0
        %v808 = vlaneseq
        %v809 = vshrl.u32 %v808, 7
        %v810 = vadd.s32 %v809, 8
        %v811 = vadd.s32 %v809, 16
        %v812 = vld [vmem:[%s3] sm:$0x1]
        %v814 = vlaneseq
        %v815 = vshrl.u32 %v814, 7
        %v816 = vsub.s32 0, %v815
        %v817 = vrot.slane %v812, %v816
        %vm819 = vcmp.eq.s32.totalorder %v809, 0
        %vm820 = vcmp.eq.s32.totalorder %v810, 0
        %vm821 = vcmp.eq.s32.totalorder %v811, 0
        %v822 = vsel %vm819, %v817, %v795
        %v823 = vsel %vm820, %v817, %v800
        %v824 = vsel %vm821, %v817, %v805
        %v825 = vld [vmem:[%s4] sm:$0xff]
        %v826 = vld [vmem:[%s4 + $0x8] sm:$0xff]
        %v827 = vld [vmem:[%s4 + $0x10] sm:$0x1]
        %v828 = vadd.f32 %v822, %v825
        %v829 = vadd.f32 %v823, %v826
        %v830 = vadd.f32 %v824, %v827
        %v831 = vld [vmem:[%s5] sm:$0x1]
        %v832 = vld [vmem:[%s6] sm:$0x1]
        %vm833 = vcmask 261120
        %v834 = vsel %vm833, %v828, 0.0
        %835 = vadd.xlane.f32.xlu0 %v834
        %v836 = vpop.xlane.xlu0 %835
        %v837 = vsel %vm833, %v829, 0.0
        %838 = vadd.xlane.f32.xlu0 %v837
        %v839 = vpop.xlane.xlu0 %838
        %vm840 = vcmask 253952
        %v841 = vsel %vm840, %v830, 0.0
        %842 = vadd.xlane.f32.xlu0 %v841
        %v843 = vpop.xlane.xlu0 %842
        %v844 = vrcp.pop 32.0
        %v845 = vmul.f32 %v836, %v844
        %v846 = vmul.f32 %v839, %v844
        %v847 = vmul.f32 %v843, %v844
        %v848 = vsub.f32 %v828, %v845
        %v849 = vsub.f32 %v829, %v846
        %v850 = vsub.f32 %v830, %v847
        %v851 = vmul.f32 %v848, %v848
        %v852 = vmul.f32 %v849, %v849
        %v853 = vmul.f32 %v850, %v850
        %v854 = vsel %vm833, %v851, 0.0
        %855 = vadd.xlane.f32.xlu0 %v854
        %v856 = vpop.xlane.xlu0 %855
        %v857 = vsel %vm833, %v852, 0.0
        %858 = vadd.xlane.f32.xlu0 %v857
        %v859 = vpop.xlane.xlu0 %858
        %v860 = vsel %vm840, %v853, 0.0
        %861 = vadd.xlane.f32.xlu0 %v860
        %v862 = vpop.xlane.xlu0 %861
        %v863 = vmul.f32 %v856, %v844
        %v864 = vmul.f32 %v859, %v844
        %v865 = vmul.f32 %v862, %v844
        %v866 = vadd.f32 %v863, 1e-05
        %v867 = vadd.f32 %v864, 1e-05
        %v868 = vadd.f32 %v865, 1e-05
        %v869 = vrsqrt.pop %v866
        %v870 = vrsqrt.pop %v867
        %v871 = vrsqrt.pop %v868
        %v872 = vmul.f32 %v848, %v869
        %v873 = vmul.f32 %v849, %v870
        %v874 = vmul.f32 %v850, %v871
        %v876 = vlaneseq
        %v877 = vshrl.u32 %v876, 7
        %v878 = vsub.s32 0, %v877
        %v879 = vrot.slane %v831, %v878
        %v881 = vmul.f32 %v872, %v879
        %v882 = vmul.f32 %v873, %v879
        %v883 = vmul.f32 %v874, %v879
        %v885 = vlaneseq
        %v886 = vshrl.u32 %v885, 7
        %v887 = vsub.s32 0, %v886
        %v888 = vrot.slane %v832, %v887
        %v890 = vadd.f32 %v881, %v888
        %v891 = vadd.f32 %v882, %v888
        %v892 = vadd.f32 %v883, %v888
        %v893 = vld [vmem:[%s7] sm:$0x1]
        %v894 = vld [vmem:[%s8] sm:$0x1]
        %v895 = vsel %vm833, %v890, 0.0
        %896 = vadd.xlane.f32.xlu0 %v895
        %v897 = vpop.xlane.xlu0 %896
        %v898 = vsel %vm833, %v891, 0.0
        %899 = vadd.xlane.f32.xlu0 %v898
        %v900 = vpop.xlane.xlu0 %899
        %v901 = vsel %vm840, %v892, 0.0
        %902 = vadd.xlane.f32.xlu0 %v901
        %v903 = vpop.xlane.xlu0 %902
        %v904 = vmul.f32 %v897, %v844
        %v905 = vmul.f32 %v900, %v844
        %v906 = vmul.f32 %v903, %v844
        %v907 = vsub.f32 %v890, %v904
        %v908 = vsub.f32 %v891, %v905
        %v909 = vsub.f32 %v892, %v906
        %v910 = vmul.f32 %v907, %v907
        %v911 = vmul.f32 %v908, %v908
        %v912 = vmul.f32 %v909, %v909
        %v913 = vsel %vm833, %v910, 0.0
        %914 = vadd.xlane.f32.xlu0 %v913
        %v915 = vpop.xlane.xlu0 %914
        %v916 = vsel %vm833, %v911, 0.0
        %917 = vadd.xlane.f32.xlu0 %v916
        %v918 = vpop.xlane.xlu0 %917
        %v919 = vsel %vm840, %v912, 0.0
        %920 = vadd.xlane.f32.xlu0 %v919
        %v921 = vpop.xlane.xlu0 %920
        %v922 = vmul.f32 %v915, %v844
        %v923 = vmul.f32 %v918, %v844
        %v924 = vmul.f32 %v921, %v844
        %v925 = vadd.f32 %v922, 1e-05
        %v926 = vadd.f32 %v923, 1e-05
        %v927 = vadd.f32 %v924, 1e-05
        %v928 = vrsqrt.pop %v925
        %v929 = vrsqrt.pop %v926
        %v930 = vrsqrt.pop %v927
        %v931 = vmul.f32 %v907, %v928
        %v932 = vmul.f32 %v908, %v929
        %v933 = vmul.f32 %v909, %v930
        %v935 = vlaneseq
        %v936 = vshrl.u32 %v935, 7
        %v937 = vsub.s32 0, %v936
        %v938 = vrot.slane %v893, %v937
        %v940 = vmul.f32 %v931, %v938
        %v941 = vmul.f32 %v932, %v938
        %v942 = vmul.f32 %v933, %v938
        %v944 = vlaneseq
        %v945 = vshrl.u32 %v944, 7
        %v946 = vsub.s32 0, %v945
        %v947 = vrot.slane %v894, %v946
        %v949 = vadd.f32 %v940, %v947
        %v950 = vadd.f32 %v941, %v947
        %v951 = vadd.f32 %v942, %v947
        %v952 = vld [vmem:[%s9] sm:$0xff]
        %v953 = vld [vmem:[%s9 + $0x8] sm:$0xff]
        %v954 = vld [vmem:[%s9 + $0x10] sm:$0xff]
        %v955 = vld [vmem:[%s9 + $0x18] sm:$0xff]
        %v956 = vld [vmem:[%s10] sm:$0x1]
        %v958 = vlaneseq
        %v959 = vshrl.u32 %v958, 7
        %v960 = vsub.s32 0, %v959
        %v961 = vrot.slane %v956, %v960
        %v964 = vsel %vm833, %v949, 0
        %v967 = vsel %vm833, %v950, 0
        %v970 = vsel %vm833, %v951, 0
        %972 = vmatprep.subr.mxu0 0.0
        %973 = vmatpush1.msra.mxu0 0.0
        %974 = vmatprep.subr.mxu0 0.0
        %975 = vmatpush1.msra.mxu0 0.0
        %976 = vmatprep.subr.mxu0 0.0
        %977 = vmatpush1.msra.mxu0 0.0
        %978 = vmatprep.subr.mxu0 0.0
        %979 = vmatpush1.msra.mxu0 0.0
        %980 = vmatprep.subr.mxu0 0.0
        %981 = vmatpush1.msra.mxu0 0.0
        %982 = vmatprep.subr.mxu0 0.0
        %983 = vmatpush1.msra.mxu0 0.0
        %984 = vmatprep.subr.mxu0 0.0
        %985 = vmatpush1.msra.mxu0 0.0
        %986 = vmatprep.subr.mxu0 0.0
        %987 = vmatpush1.msra.mxu0 0.0
        %988 = vmatprep.subr.mxu0 0.0
        %989 = vmatpush1.msra.mxu0 0.0
        %990 = vmatprep.subr.mxu0 0.0
        %991 = vmatpush1.msra.mxu0 0.0
        %992 = vmatprep.subr.mxu0 0.0
        %993 = vmatpush1.msra.mxu0 0.0
        %994 = vmatprep.subr.mxu0 0.0
        %995 = vmatpush1.msra.mxu0 0.0
        %996 = vmatprep.subr.mxu0 0.0
        %997 = vmatpush1.msra.mxu0 %v955
        %998 = vmatprep.subr.mxu0 0.0
        %999 = vmatpush1.msra.mxu0 %v954
        %1000 = vmatprep.subr.mxu0 0.0
        %1001 = vmatpush1.msra.mxu0 %v953
        %1002 = vmatprep.subr.mxu0 0.0
        %1003 = vmatpush1.msra.mxu0 %v952
        %1004 = vmatprep.subr.mxu0 0.0
        %1005 = vmatpush2.msra.mxu0 0.0
        %1006 = vmatprep.subr.mxu0 0.0
        %1007 = vmatpush2.msra.mxu0 0.0
        %1008 = vmatprep.subr.mxu0 0.0
        %1009 = vmatpush2.msra.mxu0 0.0
        %1010 = vmatprep.subr.mxu0 0.0
        %1011 = vmatpush2.msra.mxu0 0.0
        %1012 = vmatprep.subr.mxu0 0.0
        %1013 = vmatpush2.msra.mxu0 0.0
        %1014 = vmatprep.subr.mxu0 0.0
        %1015 = vmatpush2.msra.mxu0 0.0
        %1016 = vmatprep.subr.mxu0 0.0
        %1017 = vmatpush2.msra.mxu0 0.0
        %1018 = vmatprep.subr.mxu0 0.0
        %1019 = vmatpush2.msra.mxu0 0.0
        %1020 = vmatprep.subr.mxu0 0.0
        %1021 = vmatpush2.msra.mxu0 0.0
        %1022 = vmatprep.subr.mxu0 0.0
        %1023 = vmatpush2.msra.mxu0 0.0
        %1024 = vmatprep.subr.mxu0 0.0
        %1025 = vmatpush2.msra.mxu0 0.0
        %1026 = vmatprep.subr.mxu0 0.0
        %1027 = vmatpush2.msra.mxu0 0.0
        %1028 = vmatprep.subr.mxu0 0.0
        %1029 = vmatpush2.msra.mxu0 0.0
        %1030 = vmatprep.subr.mxu0 0.0
        %1031 = vmatpush2.msra.mxu0 0.0
        %1032 = vmatprep.subr.mxu0 0.0
        %1033 = vmatpush2.msra.mxu0 0.0
        %1034 = vmatprep.subr.mxu0 0.0
        %1035 = vmatpush2.msra.mxu0 0.0
        %1036 = vmatprep.mubr.f32.mxu0 0.0
        %1037 = vmatmul.mubr.f32.gmra.mxu0 %v964
        %v1038 = vpop.f32.mrf.mxu0
        %v1039 = vadd.f32 %v961, %v1038
        %v1040 = vpop.f32.mrf.mxu0
        %1041 = vmatprep.mubr.f32.mxu0 0.0
        %1042 = vmatmul.mubr.f32.gmra.mxu0 %v967
        %v1043 = vpop.f32.mrf.mxu0
        %v1044 = vadd.f32 %v961, %v1043
        %v1045 = vpop.f32.mrf.mxu0
        %1046 = vmatprep.mubr.f32.mxu0 0.0
        %1047 = vmatmul.mubr.f32.gmra.mxu0 %v970
        %v1048 = vpop.f32.mrf.mxu0
        %v1049 = vadd.f32 %v961, %v1048
        %v1050 = vpop.f32.mrf.mxu0
        %1051 = vdwg.mxu0
        %v1052 = vld [vmem:[%s11] sm:$0xff]
        %v1053 = vld [vmem:[%s11 + $0x8] sm:$0xff]
        %v1054 = vld [vmem:[%s11 + $0x10] sm:$0xff]
        %v1055 = vld [vmem:[%s11 + $0x18] sm:$0xff]
        %1059 = vrot.lane.b32.xlu0 %v1039, 96
        %v1060 = vpop.permute.xlu0 %1059
        %1061 = vrot.lane.b32.xlu0 %v1044, 96
        %v1062 = vpop.permute.xlu0 %1061
        %1063 = vrot.lane.b32.xlu0 %v1049, 96
        %v1064 = vpop.permute.xlu0 %1063
        %vm1065 = vcmask 64512
        %v1066 = vsel %vm1065, %v1039, 0
        %v1068 = vsel %vm1065, %v1044, 0
        %v1070 = vsel %vm1065, %v1049, 0
        %v1072 = vsel %vm1065, %v1060, 0
        %v1074 = vsel %vm1065, %v1062, 0
        %v1076 = vsel %vm1065, %v1064, 0
        %1078 = vmatprep.subr.mxu0 0.0
        %1079 = vmatpush1.xpose.msra.mxu0 0.0
        %1080 = vmatprep.subr.mxu0 0.0
        %1081 = vmatpush1.xpose.msra.mxu0 0.0
        %1082 = vmatprep.subr.mxu0 0.0
        %1083 = vmatpush1.xpose.msra.mxu0 0.0
        %1084 = vmatprep.subr.mxu0 0.0
        %1085 = vmatpush1.xpose.msra.mxu0 0.0
        %1086 = vmatprep.subr.mxu0 0.0
        %1087 = vmatpush1.xpose.msra.mxu0 0.0
        %1088 = vmatprep.subr.mxu0 0.0
        %1089 = vmatpush1.xpose.msra.mxu0 0.0
        %1090 = vmatprep.subr.mxu0 0.0
        %1091 = vmatpush1.xpose.msra.mxu0 0.0
        %1092 = vmatprep.subr.mxu0 0.0
        %1093 = vmatpush1.xpose.msra.mxu0 0.0
        %1094 = vmatprep.subr.mxu0 0.0
        %1095 = vmatpush1.xpose.msra.mxu0 0.0
        %1096 = vmatprep.subr.mxu0 0.0
        %1097 = vmatpush1.xpose.msra.mxu0 0.0
        %1098 = vmatprep.subr.mxu0 0.0
        %1099 = vmatpush1.xpose.msra.mxu0 0.0
        %1100 = vmatprep.subr.mxu0 0.0
        %1101 = vmatpush1.xpose.msra.mxu0 0.0
        %1102 = vmatprep.subr.mxu0 0.0
        %1103 = vmatpush1.xpose.msra.mxu0 0.0
        %1104 = vmatprep.subr.mxu0 0.0
        %1105 = vmatpush1.xpose.msra.mxu0 %v1076
        %1106 = vmatprep.subr.mxu0 0.0
        %1107 = vmatpush1.xpose.msra.mxu0 %v1074
        %1108 = vmatprep.subr.mxu0 0.0
        %1109 = vmatpush1.xpose.msra.mxu0 %v1072
        %1110 = vmatprep.subr.mxu0 0.0
        %1111 = vmatpush2.xpose.msra.mxu0 0.0
        %1112 = vmatprep.subr.mxu0 0.0
        %1113 = vmatpush2.xpose.msra.mxu0 0.0
        %1114 = vmatprep.subr.mxu0 0.0
        %1115 = vmatpush2.xpose.msra.mxu0 0.0
        %1116 = vmatprep.subr.mxu0 0.0
        %1117 = vmatpush2.xpose.msra.mxu0 0.0
        %1118 = vmatprep.subr.mxu0 0.0
        %1119 = vmatpush2.xpose.msra.mxu0 0.0
        %1120 = vmatprep.subr.mxu0 0.0
        %1121 = vmatpush2.xpose.msra.mxu0 0.0
        %1122 = vmatprep.subr.mxu0 0.0
        %1123 = vmatpush2.xpose.msra.mxu0 0.0
        %1124 = vmatprep.subr.mxu0 0.0
        %1125 = vmatpush2.xpose.msra.mxu0 0.0
        %1126 = vmatprep.subr.mxu0 0.0
        %1127 = vmatpush2.xpose.msra.mxu0 0.0
        %1128 = vmatprep.subr.mxu0 0.0
        %1129 = vmatpush2.xpose.msra.mxu0 0.0
        %1130 = vmatprep.subr.mxu0 0.0
        %1131 = vmatpush2.xpose.msra.mxu0 0.0
        %1132 = vmatprep.subr.mxu0 0.0
        %1133 = vmatpush2.xpose.msra.mxu0 0.0
        %1134 = vmatprep.subr.mxu0 0.0
        %1135 = vmatpush2.xpose.msra.mxu0 0.0
        %1136 = vmatprep.subr.mxu0 0.0
        %1137 = vmatpush2.xpose.msra.mxu0 0.0
        %1138 = vmatprep.subr.mxu0 0.0
        %1139 = vmatpush2.xpose.msra.mxu0 0.0
        %1140 = vmatprep.subr.mxu0 0.0
        %1141 = vmatpush2.xpose.msra.mxu0 0.0
        %1142 = vmatprep.mubr.f32.mxu0 0.0
        %1143 = vmatmul.mubr.f32.gmra.mxu0 %v1066
        %v1144 = vpop.f32.mrf.mxu0
        %v1145 = vadd.f32 0.0, %v1144
        %v1146 = vpop.f32.mrf.mxu0
        %1147 = vmatprep.mubr.f32.mxu0 0.0
        %1148 = vmatmul.mubr.f32.gmra.mxu0 %v1068
        %v1149 = vpop.f32.mrf.mxu0
        %v1150 = vadd.f32 0.0, %v1149
        %v1151 = vpop.f32.mrf.mxu0
        %1152 = vmatprep.mubr.f32.mxu0 0.0
        %1153 = vmatmul.mubr.f32.gmra.mxu0 %v1070
        %v1154 = vpop.f32.mrf.mxu0
        %v1155 = vadd.f32 0.0, %v1154
        %v1156 = vpop.f32.mrf.mxu0
        %1157 = vdwg.mxu0
        %vm1158 = vcmask 138240
        %v1159 = vsel %vm1158, %v1145, -inf
        %1160 = vmax.xlane.f32.xlu0 %v1159
        %v1161 = vpop.xlane.xlu0 %1160
        %v1162 = vsel %vm1158, %v1150, -inf
        %1163 = vmax.xlane.f32.xlu0 %v1162
        %v1164 = vpop.xlane.xlu0 %1163
        %vm1165 = vcmask 131072
        %v1166 = vsel %vm1165, %v1155, -inf
        %1167 = vmax.xlane.f32.xlu0 %v1166
        %v1168 = vpop.xlane.xlu0 %1167
        %v1169 = vsub.f32 %v1145, %v1161
        %v1170 = vsub.f32 %v1150, %v1164
        %v1171 = vsub.f32 %v1155, %v1168
        %v1172 = vmul.f32 %v1169, 1.442695
        %v1173 = vpow.pop %v1172
        %v1174 = vmul.f32 %v1170, 1.442695
        %v1175 = vpow.pop %v1174
        %v1176 = vmul.f32 %v1171, 1.442695
        %v1177 = vpow.pop %v1176
        %v1178 = vsel %vm1158, %v1173, 0.0
        %1179 = vadd.xlane.f32.xlu0 %v1178
        %v1180 = vpop.xlane.xlu0 %1179
        %v1181 = vsel %vm1158, %v1175, 0.0
        %1182 = vadd.xlane.f32.xlu0 %v1181
        %v1183 = vpop.xlane.xlu0 %1182
        %v1184 = vsel %vm1165, %v1177, 0.0
        %1185 = vadd.xlane.f32.xlu0 %v1184
        %v1186 = vpop.xlane.xlu0 %1185
        %v1187 = vrcp.pop %v1180
        %v1188 = vrcp.pop %v1183
        %v1189 = vrcp.pop %v1186
        %v1190 = vmul.f32 %v1173, %v1187
        %v1191 = vmul.f32 %v1175, %v1188
        %v1192 = vmul.f32 %v1177, %v1189
        %1193 = vrot.lane.b32.xlu0 %v1039, 64
        %v1194 = vpop.permute.xlu0 %1193
        %1195 = vrot.lane.b32.xlu0 %v1044, 64
        %v1196 = vpop.permute.xlu0 %1195
        %1197 = vrot.lane.b32.xlu0 %v1049, 64
        %v1198 = vpop.permute.xlu0 %1197
        %v1202 = vsel %vm1158, %v1190, 0
        %v1205 = vsel %vm1158, %v1191, 0
        %v1208 = vsel %vm1158, %v1192, 0
        %vm1210 = vcmask 1040384
        %v1211 = vsel %vm1210, %v1198, 0
        %1213 = vmatprep.subr.mxu0 0.0
        %1214 = vmatpush1.msra.mxu0 0.0
        %1215 = vmatprep.subr.mxu0 0.0
        %1216 = vmatpush1.msra.mxu0 0.0
        %1217 = vmatprep.subr.mxu0 0.0
        %1218 = vmatpush1.msra.mxu0 0.0
        %1219 = vmatprep.subr.mxu0 0.0
        %1220 = vmatpush1.msra.mxu0 0.0
        %1221 = vmatprep.subr.mxu0 0.0
        %1222 = vmatpush1.msra.mxu0 0.0
        %1223 = vmatprep.subr.mxu0 0.0
        %1224 = vmatpush1.msra.mxu0 0.0
        %1225 = vmatprep.subr.mxu0 0.0
        %1226 = vmatpush1.msra.mxu0 0.0
        %1227 = vmatprep.subr.mxu0 0.0
        %1228 = vmatpush1.msra.mxu0 0.0
        %1229 = vmatprep.subr.mxu0 0.0
        %1230 = vmatpush1.msra.mxu0 0.0
        %1231 = vmatprep.subr.mxu0 0.0
        %1232 = vmatpush1.msra.mxu0 0.0
        %1233 = vmatprep.subr.mxu0 0.0
        %1234 = vmatpush1.msra.mxu0 0.0
        %1235 = vmatprep.subr.mxu0 0.0
        %1236 = vmatpush1.msra.mxu0 0.0
        %1237 = vmatprep.subr.mxu0 0.0
        %1238 = vmatpush1.msra.mxu0 0.0
        %1239 = vmatprep.subr.mxu0 0.0
        %1240 = vmatpush1.msra.mxu0 %v1211
        %1241 = vmatprep.subr.mxu0 0.0
        %1242 = vmatpush1.msra.mxu0 %v1196
        %1243 = vmatprep.subr.mxu0 0.0
        %1244 = vmatpush1.msra.mxu0 %v1194
        %1245 = vmatprep.subr.mxu0 0.0
        %1246 = vmatpush2.msra.mxu0 0.0
        %1247 = vmatprep.subr.mxu0 0.0
        %1248 = vmatpush2.msra.mxu0 0.0
        %1249 = vmatprep.subr.mxu0 0.0
        %1250 = vmatpush2.msra.mxu0 0.0
        %1251 = vmatprep.subr.mxu0 0.0
        %1252 = vmatpush2.msra.mxu0 0.0
        %1253 = vmatprep.subr.mxu0 0.0
        %1254 = vmatpush2.msra.mxu0 0.0
        %1255 = vmatprep.subr.mxu0 0.0
        %1256 = vmatpush2.msra.mxu0 0.0
        %1257 = vmatprep.subr.mxu0 0.0
        %1258 = vmatpush2.msra.mxu0 0.0
        %1259 = vmatprep.subr.mxu0 0.0
        %1260 = vmatpush2.msra.mxu0 0.0
        %1261 = vmatprep.subr.mxu0 0.0
        %1262 = vmatpush2.msra.mxu0 0.0
        %1263 = vmatprep.subr.mxu0 0.0
        %1264 = vmatpush2.msra.mxu0 0.0
        %1265 = vmatprep.subr.mxu0 0.0
        %1266 = vmatpush2.msra.mxu0 0.0
        %1267 = vmatprep.subr.mxu0 0.0
        %1268 = vmatpush2.msra.mxu0 0.0
        %1269 = vmatprep.subr.mxu0 0.0
        %1270 = vmatpush2.msra.mxu0 0.0
        %1271 = vmatprep.subr.mxu0 0.0
        %1272 = vmatpush2.msra.mxu0 0.0
        %1273 = vmatprep.subr.mxu0 0.0
        %1274 = vmatpush2.msra.mxu0 0.0
        %1275 = vmatprep.subr.mxu0 0.0
        %1276 = vmatpush2.msra.mxu0 0.0
        %1277 = vmatprep.mubr.f32.mxu0 0.0
        %1278 = vmatmul.mubr.f32.gmra.mxu0 %v1202
        %v1279 = vpop.f32.mrf.mxu0
        %v1280 = vadd.f32 0.0, %v1279
        %v1281 = vpop.f32.mrf.mxu0
        %1282 = vmatprep.mubr.f32.mxu0 0.0
        %1283 = vmatmul.mubr.f32.gmra.mxu0 %v1205
        %v1284 = vpop.f32.mrf.mxu0
        %v1285 = vadd.f32 0.0, %v1284
        %v1286 = vpop.f32.mrf.mxu0
        %1287 = vmatprep.mubr.f32.mxu0 0.0
        %1288 = vmatmul.mubr.f32.gmra.mxu0 %v1208
        %v1289 = vpop.f32.mrf.mxu0
        %v1290 = vadd.f32 0.0, %v1289
        %v1291 = vpop.f32.mrf.mxu0
        %1292 = vdwg.mxu0
        %1293 = vrot.lane.b32.xlu0 %v1039, 120
        %v1294 = vpop.permute.xlu0 %1293
        %1295 = vrot.lane.b32.xlu0 %v1044, 120
        %v1296 = vpop.permute.xlu0 %1295
        %1297 = vrot.lane.b32.xlu0 %v1049, 120
        %v1298 = vpop.permute.xlu0 %1297
        %1299 = vrot.lane.b32.xlu0 %v1039, 88
        %v1300 = vpop.permute.xlu0 %1299
        %1301 = vrot.lane.b32.xlu0 %v1044, 88
        %v1302 = vpop.permute.xlu0 %1301
        %1303 = vrot.lane.b32.xlu0 %v1049, 88
        %v1304 = vpop.permute.xlu0 %1303
        %v1305 = vsel %vm1065, %v1294, 0
        %v1307 = vsel %vm1065, %v1296, 0
        %v1309 = vsel %vm1065, %v1298, 0
        %v1311 = vsel %vm1065, %v1300, 0
        %v1313 = vsel %vm1065, %v1302, 0
        %v1315 = vsel %vm1065, %v1304, 0
        %1317 = vmatprep.subr.mxu0 0.0
        %1318 = vmatpush1.xpose.msra.mxu0 0.0
        %1319 = vmatprep.subr.mxu0 0.0
        %1320 = vmatpush1.xpose.msra.mxu0 0.0
        %1321 = vmatprep.subr.mxu0 0.0
        %1322 = vmatpush1.xpose.msra.mxu0 0.0
        %1323 = vmatprep.subr.mxu0 0.0
        %1324 = vmatpush1.xpose.msra.mxu0 0.0
        %1325 = vmatprep.subr.mxu0 0.0
        %1326 = vmatpush1.xpose.msra.mxu0 0.0
        %1327 = vmatprep.subr.mxu0 0.0
        %1328 = vmatpush1.xpose.msra.mxu0 0.0
        %1329 = vmatprep.subr.mxu0 0.0
        %1330 = vmatpush1.xpose.msra.mxu0 0.0
        %1331 = vmatprep.subr.mxu0 0.0
        %1332 = vmatpush1.xpose.msra.mxu0 0.0
        %1333 = vmatprep.subr.mxu0 0.0
        %1334 = vmatpush1.xpose.msra.mxu0 0.0
        %1335 = vmatprep.subr.mxu0 0.0
        %1336 = vmatpush1.xpose.msra.mxu0 0.0
        %1337 = vmatprep.subr.mxu0 0.0
        %1338 = vmatpush1.xpose.msra.mxu0 0.0
        %1339 = vmatprep.subr.mxu0 0.0
        %1340 = vmatpush1.xpose.msra.mxu0 0.0
        %1341 = vmatprep.subr.mxu0 0.0
        %1342 = vmatpush1.xpose.msra.mxu0 0.0
        %1343 = vmatprep.subr.mxu0 0.0
        %1344 = vmatpush1.xpose.msra.mxu0 %v1315
        %1345 = vmatprep.subr.mxu0 0.0
        %1346 = vmatpush1.xpose.msra.mxu0 %v1313
        %1347 = vmatprep.subr.mxu0 0.0
        %1348 = vmatpush1.xpose.msra.mxu0 %v1311
        %1349 = vmatprep.subr.mxu0 0.0
        %1350 = vmatpush2.xpose.msra.mxu0 0.0
        %1351 = vmatprep.subr.mxu0 0.0
        %1352 = vmatpush2.xpose.msra.mxu0 0.0
        %1353 = vmatprep.subr.mxu0 0.0
        %1354 = vmatpush2.xpose.msra.mxu0 0.0
        %1355 = vmatprep.subr.mxu0 0.0
        %1356 = vmatpush2.xpose.msra.mxu0 0.0
        %1357 = vmatprep.subr.mxu0 0.0
        %1358 = vmatpush2.xpose.msra.mxu0 0.0
        %1359 = vmatprep.subr.mxu0 0.0
        %1360 = vmatpush2.xpose.msra.mxu0 0.0
        %1361 = vmatprep.subr.mxu0 0.0
        %1362 = vmatpush2.xpose.msra.mxu0 0.0
        %1363 = vmatprep.subr.mxu0 0.0
        %1364 = vmatpush2.xpose.msra.mxu0 0.0
        %1365 = vmatprep.subr.mxu0 0.0
        %1366 = vmatpush2.xpose.msra.mxu0 0.0
        %1367 = vmatprep.subr.mxu0 0.0
        %1368 = vmatpush2.xpose.msra.mxu0 0.0
        %1369 = vmatprep.subr.mxu0 0.0
        %1370 = vmatpush2.xpose.msra.mxu0 0.0
        %1371 = vmatprep.subr.mxu0 0.0
        %1372 = vmatpush2.xpose.msra.mxu0 0.0
        %1373 = vmatprep.subr.mxu0 0.0
        %1374 = vmatpush2.xpose.msra.mxu0 0.0
        %1375 = vmatprep.subr.mxu0 0.0
        %1376 = vmatpush2.xpose.msra.mxu0 0.0
        %1377 = vmatprep.subr.mxu0 0.0
        %1378 = vmatpush2.xpose.msra.mxu0 0.0
        %1379 = vmatprep.subr.mxu0 0.0
        %1380 = vmatpush2.xpose.msra.mxu0 0.0
        %1381 = vmatprep.mubr.f32.mxu0 0.0
        %1382 = vmatmul.mubr.f32.gmra.mxu0 %v1305
        %v1383 = vpop.f32.mrf.mxu0
        %v1384 = vadd.f32 0.0, %v1383
        %v1385 = vpop.f32.mrf.mxu0
        %1386 = vmatprep.mubr.f32.mxu0 0.0
        %1387 = vmatmul.mubr.f32.gmra.mxu0 %v1307
        %v1388 = vpop.f32.mrf.mxu0
        %v1389 = vadd.f32 0.0, %v1388
        %v1390 = vpop.f32.mrf.mxu0
        %1391 = vmatprep.mubr.f32.mxu0 0.0
        %1392 = vmatmul.mubr.f32.gmra.mxu0 %v1309
        %v1393 = vpop.f32.mrf.mxu0
        %v1394 = vadd.f32 0.0, %v1393
        %v1395 = vpop.f32.mrf.mxu0
        %1396 = vdwg.mxu0
        %v1397 = vsel %vm1158, %v1384, -inf
        %1398 = vmax.xlane.f32.xlu0 %v1397
        %v1399 = vpop.xlane.xlu0 %1398
        %v1400 = vsel %vm1158, %v1389, -inf
        %1401 = vmax.xlane.f32.xlu0 %v1400
        %v1402 = vpop.xlane.xlu0 %1401
        %v1403 = vsel %vm1165, %v1394, -inf
        %1404 = vmax.xlane.f32.xlu0 %v1403
        %v1405 = vpop.xlane.xlu0 %1404
        %v1406 = vsub.f32 %v1384, %v1399
        %v1407 = vsub.f32 %v1389, %v1402
        %v1408 = vsub.f32 %v1394, %v1405
        %v1409 = vmul.f32 %v1406, 1.442695
        %v1410 = vpow.pop %v1409
        %v1411 = vmul.f32 %v1407, 1.442695
        %v1412 = vpow.pop %v1411
        %v1413 = vmul.f32 %v1408, 1.442695
        %v1414 = vpow.pop %v1413
        %v1415 = vsel %vm1158, %v1410, 0.0
        %1416 = vadd.xlane.f32.xlu0 %v1415
        %v1417 = vpop.xlane.xlu0 %1416
        %v1418 = vsel %vm1158, %v1412, 0.0
        %1419 = vadd.xlane.f32.xlu0 %v1418
        %v1420 = vpop.xlane.xlu0 %1419
        %v1421 = vsel %vm1165, %v1414, 0.0
        %1422 = vadd.xlane.f32.xlu0 %v1421
        %v1423 = vpop.xlane.xlu0 %1422
        %v1424 = vrcp.pop %v1417
        %v1425 = vrcp.pop %v1420
        %v1426 = vrcp.pop %v1423
        %v1427 = vmul.f32 %v1410, %v1424
        %v1428 = vmul.f32 %v1412, %v1425
        %v1429 = vmul.f32 %v1414, %v1426
        %1430 = vrot.lane.b32.xlu0 %v1039, 56
        %v1431 = vpop.permute.xlu0 %1430
        %1432 = vrot.lane.b32.xlu0 %v1044, 56
        %v1433 = vpop.permute.xlu0 %1432
        %1434 = vrot.lane.b32.xlu0 %v1049, 56
        %v1435 = vpop.permute.xlu0 %1434
        %v1439 = vsel %vm1158, %v1427, 0
        %v1442 = vsel %vm1158, %v1428, 0
        %v1445 = vsel %vm1158, %v1429, 0
        %v1447 = vsel %vm1210, %v1435, 0
        %1449 = vmatprep.subr.mxu0 0.0
        %1450 = vmatpush1.msra.mxu0 0.0
        %1451 = vmatprep.subr.mxu0 0.0
        %1452 = vmatpush1.msra.mxu0 0.0
        %1453 = vmatprep.subr.mxu0 0.0
        %1454 = vmatpush1.msra.mxu0 0.0
        %1455 = vmatprep.subr.mxu0 0.0
        %1456 = vmatpush1.msra.mxu0 0.0
        %1457 = vmatprep.subr.mxu0 0.0
        %1458 = vmatpush1.msra.mxu0 0.0
        %1459 = vmatprep.subr.mxu0 0.0
        %1460 = vmatpush1.msra.mxu0 0.0
        %1461 = vmatprep.subr.mxu0 0.0
        %1462 = vmatpush1.msra.mxu0 0.0
        %1463 = vmatprep.subr.mxu0 0.0
        %1464 = vmatpush1.msra.mxu0 0.0
        %1465 = vmatprep.subr.mxu0 0.0
        %1466 = vmatpush1.msra.mxu0 0.0
        %1467 = vmatprep.subr.mxu0 0.0
        %1468 = vmatpush1.msra.mxu0 0.0
        %1469 = vmatprep.subr.mxu0 0.0
        %1470 = vmatpush1.msra.mxu0 0.0
        %1471 = vmatprep.subr.mxu0 0.0
        %1472 = vmatpush1.msra.mxu0 0.0
        %1473 = vmatprep.subr.mxu0 0.0
        %1474 = vmatpush1.msra.mxu0 0.0
        %1475 = vmatprep.subr.mxu0 0.0
        %1476 = vmatpush1.msra.mxu0 %v1447
        %1477 = vmatprep.subr.mxu0 0.0
        %1478 = vmatpush1.msra.mxu0 %v1433
        %1479 = vmatprep.subr.mxu0 0.0
        %1480 = vmatpush1.msra.mxu0 %v1431
        %1481 = vmatprep.subr.mxu0 0.0
        %1482 = vmatpush2.msra.mxu0 0.0
        %1483 = vmatprep.subr.mxu0 0.0
        %1484 = vmatpush2.msra.mxu0 0.0
        %1485 = vmatprep.subr.mxu0 0.0
        %1486 = vmatpush2.msra.mxu0 0.0
        %1487 = vmatprep.subr.mxu0 0.0
        %1488 = vmatpush2.msra.mxu0 0.0
        %1489 = vmatprep.subr.mxu0 0.0
        %1490 = vmatpush2.msra.mxu0 0.0
        %1491 = vmatprep.subr.mxu0 0.0
        %1492 = vmatpush2.msra.mxu0 0.0
        %1493 = vmatprep.subr.mxu0 0.0
        %1494 = vmatpush2.msra.mxu0 0.0
        %1495 = vmatprep.subr.mxu0 0.0
        %1496 = vmatpush2.msra.mxu0 0.0
        %1497 = vmatprep.subr.mxu0 0.0
        %1498 = vmatpush2.msra.mxu0 0.0
        %1499 = vmatprep.subr.mxu0 0.0
        %1500 = vmatpush2.msra.mxu0 0.0
        %1501 = vmatprep.subr.mxu0 0.0
        %1502 = vmatpush2.msra.mxu0 0.0
        %1503 = vmatprep.subr.mxu0 0.0
        %1504 = vmatpush2.msra.mxu0 0.0
        %1505 = vmatprep.subr.mxu0 0.0
        %1506 = vmatpush2.msra.mxu0 0.0
        %1507 = vmatprep.subr.mxu0 0.0
        %1508 = vmatpush2.msra.mxu0 0.0
        %1509 = vmatprep.subr.mxu0 0.0
        %1510 = vmatpush2.msra.mxu0 0.0
        %1511 = vmatprep.subr.mxu0 0.0
        %1512 = vmatpush2.msra.mxu0 0.0
        %1513 = vmatprep.mubr.f32.mxu0 0.0
        %1514 = vmatmul.mubr.f32.gmra.mxu0 %v1439
        %v1515 = vpop.f32.mrf.mxu0
        %v1516 = vadd.f32 0.0, %v1515
        %v1517 = vpop.f32.mrf.mxu0
        %1518 = vmatprep.mubr.f32.mxu0 0.0
        %1519 = vmatmul.mubr.f32.gmra.mxu0 %v1442
        %v1520 = vpop.f32.mrf.mxu0
        %v1521 = vadd.f32 0.0, %v1520
        %v1522 = vpop.f32.mrf.mxu0
        %1523 = vmatprep.mubr.f32.mxu0 0.0
        %1524 = vmatmul.mubr.f32.gmra.mxu0 %v1445
        %v1525 = vpop.f32.mrf.mxu0
        %v1526 = vadd.f32 0.0, %v1525
        %v1527 = vpop.f32.mrf.mxu0
        %1528 = vdwg.mxu0
        %v1530 = vsel %vm1065, %v1516, 0
        %v1533 = vsel %vm1065, %v1521, 0
        %v1536 = vsel %vm1065, %v1526, 0
        %1538 = vmatprep.subr.mxu0 0.0
        %1539 = vmatpush1.msra.mxu0 0.0
        %1540 = vmatprep.subr.mxu0 0.0
        %1541 = vmatpush1.msra.mxu0 0.0
        %1542 = vmatprep.subr.mxu0 0.0
        %1543 = vmatpush1.msra.mxu0 0.0
        %1544 = vmatprep.subr.mxu0 0.0
        %1545 = vmatpush1.msra.mxu0 0.0
        %1546 = vmatprep.subr.mxu0 0.0
        %1547 = vmatpush1.msra.mxu0 0.0
        %1548 = vmatprep.subr.mxu0 0.0
        %1549 = vmatpush1.msra.mxu0 0.0
        %1550 = vmatprep.subr.mxu0 0.0
        %1551 = vmatpush1.msra.mxu0 0.0
        %1552 = vmatprep.subr.mxu0 0.0
        %1553 = vmatpush1.msra.mxu0 0.0
        %1554 = vmatprep.subr.mxu0 0.0
        %1555 = vmatpush1.msra.mxu0 0.0
        %1556 = vmatprep.subr.mxu0 0.0
        %1557 = vmatpush1.msra.mxu0 0.0
        %1558 = vmatprep.subr.mxu0 0.0
        %1559 = vmatpush1.msra.mxu0 0.0
        %1560 = vmatprep.subr.mxu0 0.0
        %1561 = vmatpush1.msra.mxu0 0.0
        %1562 = vmatprep.subr.mxu0 0.0
        %1563 = vmatpush1.msra.mxu0 0.0
        %1564 = vmatprep.subr.mxu0 0.0
        %1565 = vmatpush1.msra.mxu0 0.0
        %1566 = vmatprep.subr.mxu0 0.0
        %1567 = vmatpush1.msra.mxu0 0.0
        %1568 = vmatprep.subr.mxu0 0.0
        %1569 = vmatpush1.msra.mxu0 %v1053
        %1570 = vmatprep.subr.mxu0 0.0
        %1571 = vmatpush2.msra.mxu0 0.0
        %1572 = vmatprep.subr.mxu0 0.0
        %1573 = vmatpush2.msra.mxu0 0.0
        %1574 = vmatprep.subr.mxu0 0.0
        %1575 = vmatpush2.msra.mxu0 0.0
        %1576 = vmatprep.subr.mxu0 0.0
        %1577 = vmatpush2.msra.mxu0 0.0
        %1578 = vmatprep.subr.mxu0 0.0
        %1579 = vmatpush2.msra.mxu0 0.0
        %1580 = vmatprep.subr.mxu0 0.0
        %1581 = vmatpush2.msra.mxu0 0.0
        %1582 = vmatprep.subr.mxu0 0.0
        %1583 = vmatpush2.msra.mxu0 0.0
        %1584 = vmatprep.subr.mxu0 0.0
        %1585 = vmatpush2.msra.mxu0 0.0
        %1586 = vmatprep.subr.mxu0 0.0
        %1587 = vmatpush2.msra.mxu0 0.0
        %1588 = vmatprep.subr.mxu0 0.0
        %1589 = vmatpush2.msra.mxu0 0.0
        %1590 = vmatprep.subr.mxu0 0.0
        %1591 = vmatpush2.msra.mxu0 0.0
        %1592 = vmatprep.subr.mxu0 0.0
        %1593 = vmatpush2.msra.mxu0 0.0
        %1594 = vmatprep.subr.mxu0 0.0
        %1595 = vmatpush2.msra.mxu0 0.0
        %1596 = vmatprep.subr.mxu0 0.0
        %1597 = vmatpush2.msra.mxu0 0.0
        %1598 = vmatprep.subr.mxu0 0.0
        %1599 = vmatpush2.msra.mxu0 0.0
        %1600 = vmatprep.subr.mxu0 0.0
        %1601 = vmatpush2.msra.mxu0 0.0
        %1602 = vmatprep.mubr.f32.mxu0 0.0
        %1603 = vmatmul.mubr.f32.gmra.mxu0 %v1530
        %v1604 = vpop.f32.mrf.mxu0
        %v1605 = vadd.f32 0.0, %v1604
        %v1606 = vpop.f32.mrf.mxu0
        %1607 = vmatprep.mubr.f32.mxu0 0.0
        %1608 = vmatmul.mubr.f32.gmra.mxu0 %v1533
        %v1609 = vpop.f32.mrf.mxu0
        %v1610 = vadd.f32 0.0, %v1609
        %v1611 = vpop.f32.mrf.mxu0
        %1612 = vmatprep.mubr.f32.mxu0 0.0
        %1613 = vmatmul.mubr.f32.gmra.mxu0 %v1536
        %v1614 = vpop.f32.mrf.mxu0
        %v1615 = vadd.f32 0.0, %v1614
        %v1616 = vpop.f32.mrf.mxu0
        %1617 = vdwg.mxu0
        %v1619 = vsel %vm1065, %v1280, 0
        %v1622 = vsel %vm1065, %v1285, 0
        %v1625 = vsel %vm1065, %v1290, 0
        %1627 = vmatprep.subr.mxu0 0.0
        %1628 = vmatpush1.msra.mxu0 0.0
        %1629 = vmatprep.subr.mxu0 0.0
        %1630 = vmatpush1.msra.mxu0 0.0
        %1631 = vmatprep.subr.mxu0 0.0
        %1632 = vmatpush1.msra.mxu0 0.0
        %1633 = vmatprep.subr.mxu0 0.0
        %1634 = vmatpush1.msra.mxu0 0.0
        %1635 = vmatprep.subr.mxu0 0.0
        %1636 = vmatpush1.msra.mxu0 0.0
        %1637 = vmatprep.subr.mxu0 0.0
        %1638 = vmatpush1.msra.mxu0 0.0
        %1639 = vmatprep.subr.mxu0 0.0
        %1640 = vmatpush1.msra.mxu0 0.0
        %1641 = vmatprep.subr.mxu0 0.0
        %1642 = vmatpush1.msra.mxu0 0.0
        %1643 = vmatprep.subr.mxu0 0.0
        %1644 = vmatpush1.msra.mxu0 0.0
        %1645 = vmatprep.subr.mxu0 0.0
        %1646 = vmatpush1.msra.mxu0 0.0
        %1647 = vmatprep.subr.mxu0 0.0
        %1648 = vmatpush1.msra.mxu0 0.0
        %1649 = vmatprep.subr.mxu0 0.0
        %1650 = vmatpush1.msra.mxu0 0.0
        %1651 = vmatprep.subr.mxu0 0.0
        %1652 = vmatpush1.msra.mxu0 0.0
        %1653 = vmatprep.subr.mxu0 0.0
        %1654 = vmatpush1.msra.mxu0 0.0
        %1655 = vmatprep.subr.mxu0 0.0
        %1656 = vmatpush1.msra.mxu0 0.0
        %1657 = vmatprep.subr.mxu0 0.0
        %1658 = vmatpush1.msra.mxu0 %v1052
        %1659 = vmatprep.subr.mxu0 0.0
        %1660 = vmatpush2.msra.mxu0 0.0
        %1661 = vmatprep.subr.mxu0 0.0
        %1662 = vmatpush2.msra.mxu0 0.0
        %1663 = vmatprep.subr.mxu0 0.0
        %1664 = vmatpush2.msra.mxu0 0.0
        %1665 = vmatprep.subr.mxu0 0.0
        %1666 = vmatpush2.msra.mxu0 0.0
        %1667 = vmatprep.subr.mxu0 0.0
        %1668 = vmatpush2.msra.mxu0 0.0
        %1669 = vmatprep.subr.mxu0 0.0
        %1670 = vmatpush2.msra.mxu0 0.0
        %1671 = vmatprep.subr.mxu0 0.0
        %1672 = vmatpush2.msra.mxu0 0.0
        %1673 = vmatprep.subr.mxu0 0.0
        %1674 = vmatpush2.msra.mxu0 0.0
        %1675 = vmatprep.subr.mxu0 0.0
        %1676 = vmatpush2.msra.mxu0 0.0
        %1677 = vmatprep.subr.mxu0 0.0
        %1678 = vmatpush2.msra.mxu0 0.0
        %1679 = vmatprep.subr.mxu0 0.0
        %1680 = vmatpush2.msra.mxu0 0.0
        %1681 = vmatprep.subr.mxu0 0.0
        %1682 = vmatpush2.msra.mxu0 0.0
        %1683 = vmatprep.subr.mxu0 0.0
        %1684 = vmatpush2.msra.mxu0 0.0
        %1685 = vmatprep.subr.mxu0 0.0
        %1686 = vmatpush2.msra.mxu0 0.0
        %1687 = vmatprep.subr.mxu0 0.0
        %1688 = vmatpush2.msra.mxu0 0.0
        %1689 = vmatprep.subr.mxu0 0.0
        %1690 = vmatpush2.msra.mxu0 0.0
        %1691 = vmatprep.mubr.f32.mxu0 0.0
        %1692 = vmatmul.mubr.f32.gmra.mxu0 %v1619
        %v1693 = vpop.f32.mrf.mxu0
        %v1694 = vadd.f32 %v1605, %v1693
        %v1695 = vpop.f32.mrf.mxu0
        %1696 = vmatprep.mubr.f32.mxu0 0.0
        %1697 = vmatmul.mubr.f32.gmra.mxu0 %v1622
        %v1698 = vpop.f32.mrf.mxu0
        %v1699 = vadd.f32 %v1610, %v1698
        %v1700 = vpop.f32.mrf.mxu0
        %1701 = vmatprep.mubr.f32.mxu0 0.0
        %1702 = vmatmul.mubr.f32.gmra.mxu0 %v1625
        %v1703 = vpop.f32.mrf.mxu0
        %v1704 = vadd.f32 %v1615, %v1703
        %v1705 = vpop.f32.mrf.mxu0
        %1706 = vdwg.mxu0
        %1707 = vrot.lane.b32.xlu0 %v1039, 112
        %v1708 = vpop.permute.xlu0 %1707
        %1709 = vrot.lane.b32.xlu0 %v1044, 112
        %v1710 = vpop.permute.xlu0 %1709
        %1711 = vrot.lane.b32.xlu0 %v1049, 112
        %v1712 = vpop.permute.xlu0 %1711
        %1713 = vrot.lane.b32.xlu0 %v1039, 80
        %v1714 = vpop.permute.xlu0 %1713
        %1715 = vrot.lane.b32.xlu0 %v1044, 80
        %v1716 = vpop.permute.xlu0 %1715
        %1717 = vrot.lane.b32.xlu0 %v1049, 80
        %v1718 = vpop.permute.xlu0 %1717
        %v1719 = vsel %vm1065, %v1708, 0
        %v1721 = vsel %vm1065, %v1710, 0
        %v1723 = vsel %vm1065, %v1712, 0
        %v1725 = vsel %vm1065, %v1714, 0
        %v1727 = vsel %vm1065, %v1716, 0
        %v1729 = vsel %vm1065, %v1718, 0
        %1731 = vmatprep.subr.mxu0 0.0
        %1732 = vmatpush1.xpose.msra.mxu0 0.0
        %1733 = vmatprep.subr.mxu0 0.0
        %1734 = vmatpush1.xpose.msra.mxu0 0.0
        %1735 = vmatprep.subr.mxu0 0.0
        %1736 = vmatpush1.xpose.msra.mxu0 0.0
        %1737 = vmatprep.subr.mxu0 0.0
        %1738 = vmatpush1.xpose.msra.mxu0 0.0
        %1739 = vmatprep.subr.mxu0 0.0
        %1740 = vmatpush1.xpose.msra.mxu0 0.0
        %1741 = vmatprep.subr.mxu0 0.0
        %1742 = vmatpush1.xpose.msra.mxu0 0.0
        %1743 = vmatprep.subr.mxu0 0.0
        %1744 = vmatpush1.xpose.msra.mxu0 0.0
        %1745 = vmatprep.subr.mxu0 0.0
        %1746 = vmatpush1.xpose.msra.mxu0 0.0
        %1747 = vmatprep.subr.mxu0 0.0
        %1748 = vmatpush1.xpose.msra.mxu0 0.0
        %1749 = vmatprep.subr.mxu0 0.0
        %1750 = vmatpush1.xpose.msra.mxu0 0.0
        %1751 = vmatprep.subr.mxu0 0.0
        %1752 = vmatpush1.xpose.msra.mxu0 0.0
        %1753 = vmatprep.subr.mxu0 0.0
        %1754 = vmatpush1.xpose.msra.mxu0 0.0
        %1755 = vmatprep.subr.mxu0 0.0
        %1756 = vmatpush1.xpose.msra.mxu0 0.0
        %1757 = vmatprep.subr.mxu0 0.0
        %1758 = vmatpush1.xpose.msra.mxu0 %v1729
        %1759 = vmatprep.subr.mxu0 0.0
        %1760 = vmatpush1.xpose.msra.mxu0 %v1727
        %1761 = vmatprep.subr.mxu0 0.0
        %1762 = vmatpush1.xpose.msra.mxu0 %v1725
        %1763 = vmatprep.subr.mxu0 0.0
        %1764 = vmatpush2.xpose.msra.mxu0 0.0
        %1765 = vmatprep.subr.mxu0 0.0
        %1766 = vmatpush2.xpose.msra.mxu0 0.0
        %1767 = vmatprep.subr.mxu0 0.0
        %1768 = vmatpush2.xpose.msra.mxu0 0.0
        %1769 = vmatprep.subr.mxu0 0.0
        %1770 = vmatpush2.xpose.msra.mxu0 0.0
        %1771 = vmatprep.subr.mxu0 0.0
        %1772 = vmatpush2.xpose.msra.mxu0 0.0
        %1773 = vmatprep.subr.mxu0 0.0
        %1774 = vmatpush2.xpose.msra.mxu0 0.0
        %1775 = vmatprep.subr.mxu0 0.0
        %1776 = vmatpush2.xpose.msra.mxu0 0.0
        %1777 = vmatprep.subr.mxu0 0.0
        %1778 = vmatpush2.xpose.msra.mxu0 0.0
        %1779 = vmatprep.subr.mxu0 0.0
        %1780 = vmatpush2.xpose.msra.mxu0 0.0
        %1781 = vmatprep.subr.mxu0 0.0
        %1782 = vmatpush2.xpose.msra.mxu0 0.0
        %1783 = vmatprep.subr.mxu0 0.0
        %1784 = vmatpush2.xpose.msra.mxu0 0.0
        %1785 = vmatprep.subr.mxu0 0.0
        %1786 = vmatpush2.xpose.msra.mxu0 0.0
        %1787 = vmatprep.subr.mxu0 0.0
        %1788 = vmatpush2.xpose.msra.mxu0 0.0
        %1789 = vmatprep.subr.mxu0 0.0
        %1790 = vmatpush2.xpose.msra.mxu0 0.0
        %1791 = vmatprep.subr.mxu0 0.0
        %1792 = vmatpush2.xpose.msra.mxu0 0.0
        %1793 = vmatprep.subr.mxu0 0.0
        %1794 = vmatpush2.xpose.msra.mxu0 0.0
        %1795 = vmatprep.mubr.f32.mxu0 0.0
        %1796 = vmatmul.mubr.f32.gmra.mxu0 %v1719
        %v1797 = vpop.f32.mrf.mxu0
        %v1798 = vadd.f32 0.0, %v1797
        %v1799 = vpop.f32.mrf.mxu0
        %1800 = vmatprep.mubr.f32.mxu0 0.0
        %1801 = vmatmul.mubr.f32.gmra.mxu0 %v1721
        %v1802 = vpop.f32.mrf.mxu0
        %v1803 = vadd.f32 0.0, %v1802
        %v1804 = vpop.f32.mrf.mxu0
        %1805 = vmatprep.mubr.f32.mxu0 0.0
        %1806 = vmatmul.mubr.f32.gmra.mxu0 %v1723
        %v1807 = vpop.f32.mrf.mxu0
        %v1808 = vadd.f32 0.0, %v1807
        %v1809 = vpop.f32.mrf.mxu0
        %1810 = vdwg.mxu0
        %v1811 = vsel %vm1158, %v1798, -inf
        %1812 = vmax.xlane.f32.xlu0 %v1811
        %v1813 = vpop.xlane.xlu0 %1812
        %v1814 = vsel %vm1158, %v1803, -inf
        %1815 = vmax.xlane.f32.xlu0 %v1814
        %v1816 = vpop.xlane.xlu0 %1815
        %v1817 = vsel %vm1165, %v1808, -inf
        %1818 = vmax.xlane.f32.xlu0 %v1817
        %v1819 = vpop.xlane.xlu0 %1818
        %v1820 = vsub.f32 %v1798, %v1813
        %v1821 = vsub.f32 %v1803, %v1816
        %v1822 = vsub.f32 %v1808, %v1819
        %v1823 = vmul.f32 %v1820, 1.442695
        %v1824 = vpow.pop %v1823
        %v1825 = vmul.f32 %v1821, 1.442695
        %v1826 = vpow.pop %v1825
        %v1827 = vmul.f32 %v1822, 1.442695
        %v1828 = vpow.pop %v1827
        %v1829 = vsel %vm1158, %v1824, 0.0
        %1830 = vadd.xlane.f32.xlu0 %v1829
        %v1831 = vpop.xlane.xlu0 %1830
        %v1832 = vsel %vm1158, %v1826, 0.0
        %1833 = vadd.xlane.f32.xlu0 %v1832
        %v1834 = vpop.xlane.xlu0 %1833
        %v1835 = vsel %vm1165, %v1828, 0.0
        %1836 = vadd.xlane.f32.xlu0 %v1835
        %v1837 = vpop.xlane.xlu0 %1836
        %v1838 = vrcp.pop %v1831
        %v1839 = vrcp.pop %v1834
        %v1840 = vrcp.pop %v1837
        %v1841 = vmul.f32 %v1824, %v1838
        %v1842 = vmul.f32 %v1826, %v1839
        %v1843 = vmul.f32 %v1828, %v1840
        %1844 = vrot.lane.b32.xlu0 %v1039, 48
        %v1845 = vpop.permute.xlu0 %1844
        %1846 = vrot.lane.b32.xlu0 %v1044, 48
        %v1847 = vpop.permute.xlu0 %1846
        %1848 = vrot.lane.b32.xlu0 %v1049, 48
        %v1849 = vpop.permute.xlu0 %1848
        %v1853 = vsel %vm1158, %v1841, 0
        %v1856 = vsel %vm1158, %v1842, 0
        %v1859 = vsel %vm1158, %v1843, 0
        %v1861 = vsel %vm1210, %v1849, 0
        %1863 = vmatprep.subr.mxu0 0.0
        %1864 = vmatpush1.msra.mxu0 0.0
        %1865 = vmatprep.subr.mxu0 0.0
        %1866 = vmatpush1.msra.mxu0 0.0
        %1867 = vmatprep.subr.mxu0 0.0
        %1868 = vmatpush1.msra.mxu0 0.0
        %1869 = vmatprep.subr.mxu0 0.0
        %1870 = vmatpush1.msra.mxu0 0.0
        %1871 = vmatprep.subr.mxu0 0.0
        %1872 = vmatpush1.msra.mxu0 0.0
        %1873 = vmatprep.subr.mxu0 0.0
        %1874 = vmatpush1.msra.mxu0 0.0
        %1875 = vmatprep.subr.mxu0 0.0
        %1876 = vmatpush1.msra.mxu0 0.0
        %1877 = vmatprep.subr.mxu0 0.0
        %1878 = vmatpush1.msra.mxu0 0.0
        %1879 = vmatprep.subr.mxu0 0.0
        %1880 = vmatpush1.msra.mxu0 0.0
        %1881 = vmatprep.subr.mxu0 0.0
        %1882 = vmatpush1.msra.mxu0 0.0
        %1883 = vmatprep.subr.mxu0 0.0
        %1884 = vmatpush1.msra.mxu0 0.0
        %1885 = vmatprep.subr.mxu0 0.0
        %1886 = vmatpush1.msra.mxu0 0.0
        %1887 = vmatprep.subr.mxu0 0.0
        %1888 = vmatpush1.msra.mxu0 0.0
        %1889 = vmatprep.subr.mxu0 0.0
        %1890 = vmatpush1.msra.mxu0 %v1861
        %1891 = vmatprep.subr.mxu0 0.0
        %1892 = vmatpush1.msra.mxu0 %v1847
        %1893 = vmatprep.subr.mxu0 0.0
        %1894 = vmatpush1.msra.mxu0 %v1845
        %1895 = vmatprep.subr.mxu0 0.0
        %1896 = vmatpush2.msra.mxu0 0.0
        %1897 = vmatprep.subr.mxu0 0.0
        %1898 = vmatpush2.msra.mxu0 0.0
        %1899 = vmatprep.subr.mxu0 0.0
        %1900 = vmatpush2.msra.mxu0 0.0
        %1901 = vmatprep.subr.mxu0 0.0
        %1902 = vmatpush2.msra.mxu0 0.0
        %1903 = vmatprep.subr.mxu0 0.0
        %1904 = vmatpush2.msra.mxu0 0.0
        %1905 = vmatprep.subr.mxu0 0.0
        %1906 = vmatpush2.msra.mxu0 0.0
        %1907 = vmatprep.subr.mxu0 0.0
        %1908 = vmatpush2.msra.mxu0 0.0
        %1909 = vmatprep.subr.mxu0 0.0
        %1910 = vmatpush2.msra.mxu0 0.0
        %1911 = vmatprep.subr.mxu0 0.0
        %1912 = vmatpush2.msra.mxu0 0.0
        %1913 = vmatprep.subr.mxu0 0.0
        %1914 = vmatpush2.msra.mxu0 0.0
        %1915 = vmatprep.subr.mxu0 0.0
        %1916 = vmatpush2.msra.mxu0 0.0
        %1917 = vmatprep.subr.mxu0 0.0
        %1918 = vmatpush2.msra.mxu0 0.0
        %1919 = vmatprep.subr.mxu0 0.0
        %1920 = vmatpush2.msra.mxu0 0.0
        %1921 = vmatprep.subr.mxu0 0.0
        %1922 = vmatpush2.msra.mxu0 0.0
        %1923 = vmatprep.subr.mxu0 0.0
        %1924 = vmatpush2.msra.mxu0 0.0
        %1925 = vmatprep.subr.mxu0 0.0
        %1926 = vmatpush2.msra.mxu0 0.0
        %1927 = vmatprep.mubr.f32.mxu0 0.0
        %1928 = vmatmul.mubr.f32.gmra.mxu0 %v1853
        %v1929 = vpop.f32.mrf.mxu0
        %v1930 = vadd.f32 0.0, %v1929
        %v1931 = vpop.f32.mrf.mxu0
        %1932 = vmatprep.mubr.f32.mxu0 0.0
        %1933 = vmatmul.mubr.f32.gmra.mxu0 %v1856
        %v1934 = vpop.f32.mrf.mxu0
        %v1935 = vadd.f32 0.0, %v1934
        %v1936 = vpop.f32.mrf.mxu0
        %1937 = vmatprep.mubr.f32.mxu0 0.0
        %1938 = vmatmul.mubr.f32.gmra.mxu0 %v1859
        %v1939 = vpop.f32.mrf.mxu0
        %v1940 = vadd.f32 0.0, %v1939
        %v1941 = vpop.f32.mrf.mxu0
        %1942 = vdwg.mxu0
        %v1944 = vsel %vm1065, %v1930, 0
        %v1947 = vsel %vm1065, %v1935, 0
        %v1950 = vsel %vm1065, %v1940, 0
        %1952 = vmatprep.subr.mxu0 0.0
        %1953 = vmatpush1.msra.mxu0 0.0
        %1954 = vmatprep.subr.mxu0 0.0
        %1955 = vmatpush1.msra.mxu0 0.0
        %1956 = vmatprep.subr.mxu0 0.0
        %1957 = vmatpush1.msra.mxu0 0.0
        %1958 = vmatprep.subr.mxu0 0.0
        %1959 = vmatpush1.msra.mxu0 0.0
        %1960 = vmatprep.subr.mxu0 0.0
        %1961 = vmatpush1.msra.mxu0 0.0
        %1962 = vmatprep.subr.mxu0 0.0
        %1963 = vmatpush1.msra.mxu0 0.0
        %1964 = vmatprep.subr.mxu0 0.0
        %1965 = vmatpush1.msra.mxu0 0.0
        %1966 = vmatprep.subr.mxu0 0.0
        %1967 = vmatpush1.msra.mxu0 0.0
        %1968 = vmatprep.subr.mxu0 0.0
        %1969 = vmatpush1.msra.mxu0 0.0
        %1970 = vmatprep.subr.mxu0 0.0
        %1971 = vmatpush1.msra.mxu0 0.0
        %1972 = vmatprep.subr.mxu0 0.0
        %1973 = vmatpush1.msra.mxu0 0.0
        %1974 = vmatprep.subr.mxu0 0.0
        %1975 = vmatpush1.msra.mxu0 0.0
        %1976 = vmatprep.subr.mxu0 0.0
        %1977 = vmatpush1.msra.mxu0 0.0
        %1978 = vmatprep.subr.mxu0 0.0
        %1979 = vmatpush1.msra.mxu0 0.0
        %1980 = vmatprep.subr.mxu0 0.0
        %1981 = vmatpush1.msra.mxu0 0.0
        %1982 = vmatprep.subr.mxu0 0.0
        %1983 = vmatpush1.msra.mxu0 %v1054
        %1984 = vmatprep.subr.mxu0 0.0
        %1985 = vmatpush2.msra.mxu0 0.0
        %1986 = vmatprep.subr.mxu0 0.0
        %1987 = vmatpush2.msra.mxu0 0.0
        %1988 = vmatprep.subr.mxu0 0.0
        %1989 = vmatpush2.msra.mxu0 0.0
        %1990 = vmatprep.subr.mxu0 0.0
        %1991 = vmatpush2.msra.mxu0 0.0
        %1992 = vmatprep.subr.mxu0 0.0
        %1993 = vmatpush2.msra.mxu0 0.0
        %1994 = vmatprep.subr.mxu0 0.0
        %1995 = vmatpush2.msra.mxu0 0.0
        %1996 = vmatprep.subr.mxu0 0.0
        %1997 = vmatpush2.msra.mxu0 0.0
        %1998 = vmatprep.subr.mxu0 0.0
        %1999 = vmatpush2.msra.mxu0 0.0
        %2000 = vmatprep.subr.mxu0 0.0
        %2001 = vmatpush2.msra.mxu0 0.0
        %2002 = vmatprep.subr.mxu0 0.0
        %2003 = vmatpush2.msra.mxu0 0.0
        %2004 = vmatprep.subr.mxu0 0.0
        %2005 = vmatpush2.msra.mxu0 0.0
        %2006 = vmatprep.subr.mxu0 0.0
        %2007 = vmatpush2.msra.mxu0 0.0
        %2008 = vmatprep.subr.mxu0 0.0
        %2009 = vmatpush2.msra.mxu0 0.0
        %2010 = vmatprep.subr.mxu0 0.0
        %2011 = vmatpush2.msra.mxu0 0.0
        %2012 = vmatprep.subr.mxu0 0.0
        %2013 = vmatpush2.msra.mxu0 0.0
        %2014 = vmatprep.subr.mxu0 0.0
        %2015 = vmatpush2.msra.mxu0 0.0
        %2016 = vmatprep.mubr.f32.mxu0 0.0
        %2017 = vmatmul.mubr.f32.gmra.mxu0 %v1944
        %v2018 = vpop.f32.mrf.mxu0
        %v2019 = vadd.f32 0.0, %v2018
        %v2020 = vpop.f32.mrf.mxu0
        %2021 = vmatprep.mubr.f32.mxu0 0.0
        %2022 = vmatmul.mubr.f32.gmra.mxu0 %v1947
        %v2023 = vpop.f32.mrf.mxu0
        %v2024 = vadd.f32 0.0, %v2023
        %v2025 = vpop.f32.mrf.mxu0
        %2026 = vmatprep.mubr.f32.mxu0 0.0
        %2027 = vmatmul.mubr.f32.gmra.mxu0 %v1950
        %v2028 = vpop.f32.mrf.mxu0
        %v2029 = vadd.f32 0.0, %v2028
        %v2030 = vpop.f32.mrf.mxu0
        %2031 = vdwg.mxu0
        %v2032 = vadd.f32 %v1694, %v2019
        %v2033 = vadd.f32 %v1699, %v2024
        %v2034 = vadd.f32 %v1704, %v2029
        %2035 = vrot.lane.b32.xlu0 %v1039, 104
        %v2036 = vpop.permute.xlu0 %2035
        %2037 = vrot.lane.b32.xlu0 %v1044, 104
        %v2038 = vpop.permute.xlu0 %2037
        %2039 = vrot.lane.b32.xlu0 %v1049, 104
        %v2040 = vpop.permute.xlu0 %2039
        %2041 = vrot.lane.b32.xlu0 %v1039, 72
        %v2042 = vpop.permute.xlu0 %2041
        %2043 = vrot.lane.b32.xlu0 %v1044, 72
        %v2044 = vpop.permute.xlu0 %2043
        %2045 = vrot.lane.b32.xlu0 %v1049, 72
        %v2046 = vpop.permute.xlu0 %2045
        %v2047 = vsel %vm1065, %v2036, 0
        %v2049 = vsel %vm1065, %v2038, 0
        %v2051 = vsel %vm1065, %v2040, 0
        %v2053 = vsel %vm1065, %v2042, 0
        %v2055 = vsel %vm1065, %v2044, 0
        %v2057 = vsel %vm1065, %v2046, 0
        %2059 = vmatprep.subr.mxu0 0.0
        %2060 = vmatpush1.xpose.msra.mxu0 0.0
        %2061 = vmatprep.subr.mxu0 0.0
        %2062 = vmatpush1.xpose.msra.mxu0 0.0
        %2063 = vmatprep.subr.mxu0 0.0
        %2064 = vmatpush1.xpose.msra.mxu0 0.0
        %2065 = vmatprep.subr.mxu0 0.0
        %2066 = vmatpush1.xpose.msra.mxu0 0.0
        %2067 = vmatprep.subr.mxu0 0.0
        %2068 = vmatpush1.xpose.msra.mxu0 0.0
        %2069 = vmatprep.subr.mxu0 0.0
        %2070 = vmatpush1.xpose.msra.mxu0 0.0
        %2071 = vmatprep.subr.mxu0 0.0
        %2072 = vmatpush1.xpose.msra.mxu0 0.0
        %2073 = vmatprep.subr.mxu0 0.0
        %2074 = vmatpush1.xpose.msra.mxu0 0.0
        %2075 = vmatprep.subr.mxu0 0.0
        %2076 = vmatpush1.xpose.msra.mxu0 0.0
        %2077 = vmatprep.subr.mxu0 0.0
        %2078 = vmatpush1.xpose.msra.mxu0 0.0
        %2079 = vmatprep.subr.mxu0 0.0
        %2080 = vmatpush1.xpose.msra.mxu0 0.0
        %2081 = vmatprep.subr.mxu0 0.0
        %2082 = vmatpush1.xpose.msra.mxu0 0.0
        %2083 = vmatprep.subr.mxu0 0.0
        %2084 = vmatpush1.xpose.msra.mxu0 0.0
        %2085 = vmatprep.subr.mxu0 0.0
        %2086 = vmatpush1.xpose.msra.mxu0 %v2057
        %2087 = vmatprep.subr.mxu0 0.0
        %2088 = vmatpush1.xpose.msra.mxu0 %v2055
        %2089 = vmatprep.subr.mxu0 0.0
        %2090 = vmatpush1.xpose.msra.mxu0 %v2053
        %2091 = vmatprep.subr.mxu0 0.0
        %2092 = vmatpush2.xpose.msra.mxu0 0.0
        %2093 = vmatprep.subr.mxu0 0.0
        %2094 = vmatpush2.xpose.msra.mxu0 0.0
        %2095 = vmatprep.subr.mxu0 0.0
        %2096 = vmatpush2.xpose.msra.mxu0 0.0
        %2097 = vmatprep.subr.mxu0 0.0
        %2098 = vmatpush2.xpose.msra.mxu0 0.0
        %2099 = vmatprep.subr.mxu0 0.0
        %2100 = vmatpush2.xpose.msra.mxu0 0.0
        %2101 = vmatprep.subr.mxu0 0.0
        %2102 = vmatpush2.xpose.msra.mxu0 0.0
        %2103 = vmatprep.subr.mxu0 0.0
        %2104 = vmatpush2.xpose.msra.mxu0 0.0
        %2105 = vmatprep.subr.mxu0 0.0
        %2106 = vmatpush2.xpose.msra.mxu0 0.0
        %2107 = vmatprep.subr.mxu0 0.0
        %2108 = vmatpush2.xpose.msra.mxu0 0.0
        %2109 = vmatprep.subr.mxu0 0.0
        %2110 = vmatpush2.xpose.msra.mxu0 0.0
        %2111 = vmatprep.subr.mxu0 0.0
        %2112 = vmatpush2.xpose.msra.mxu0 0.0
        %2113 = vmatprep.subr.mxu0 0.0
        %2114 = vmatpush2.xpose.msra.mxu0 0.0
        %2115 = vmatprep.subr.mxu0 0.0
        %2116 = vmatpush2.xpose.msra.mxu0 0.0
        %2117 = vmatprep.subr.mxu0 0.0
        %2118 = vmatpush2.xpose.msra.mxu0 0.0
        %2119 = vmatprep.subr.mxu0 0.0
        %2120 = vmatpush2.xpose.msra.mxu0 0.0
        %2121 = vmatprep.subr.mxu0 0.0
        %2122 = vmatpush2.xpose.msra.mxu0 0.0
        %2123 = vmatprep.mubr.f32.mxu0 0.0
        %2124 = vmatmul.mubr.f32.gmra.mxu0 %v2047
        %v2125 = vpop.f32.mrf.mxu0
        %v2126 = vadd.f32 0.0, %v2125
        %v2127 = vpop.f32.mrf.mxu0
        %2128 = vmatprep.mubr.f32.mxu0 0.0
        %2129 = vmatmul.mubr.f32.gmra.mxu0 %v2049
        %v2130 = vpop.f32.mrf.mxu0
        %v2131 = vadd.f32 0.0, %v2130
        %v2132 = vpop.f32.mrf.mxu0
        %2133 = vmatprep.mubr.f32.mxu0 0.0
        %2134 = vmatmul.mubr.f32.gmra.mxu0 %v2051
        %v2135 = vpop.f32.mrf.mxu0
        %v2136 = vadd.f32 0.0, %v2135
        %v2137 = vpop.f32.mrf.mxu0
        %2138 = vdwg.mxu0
        %v2139 = vsel %vm1158, %v2126, -inf
        %2140 = vmax.xlane.f32.xlu0 %v2139
        %v2141 = vpop.xlane.xlu0 %2140
        %v2142 = vsel %vm1158, %v2131, -inf
        %2143 = vmax.xlane.f32.xlu0 %v2142
        %v2144 = vpop.xlane.xlu0 %2143
        %v2145 = vsel %vm1165, %v2136, -inf
        %2146 = vmax.xlane.f32.xlu0 %v2145
        %v2147 = vpop.xlane.xlu0 %2146
        %v2148 = vsub.f32 %v2126, %v2141
        %v2149 = vsub.f32 %v2131, %v2144
        %v2150 = vsub.f32 %v2136, %v2147
        %v2151 = vmul.f32 %v2148, 1.442695
        %v2152 = vpow.pop %v2151
        %v2153 = vmul.f32 %v2149, 1.442695
        %v2154 = vpow.pop %v2153
        %v2155 = vmul.f32 %v2150, 1.442695
        %v2156 = vpow.pop %v2155
        %v2157 = vsel %vm1158, %v2152, 0.0
        %2158 = vadd.xlane.f32.xlu0 %v2157
        %v2159 = vpop.xlane.xlu0 %2158
        %v2160 = vsel %vm1158, %v2154, 0.0
        %2161 = vadd.xlane.f32.xlu0 %v2160
        %v2162 = vpop.xlane.xlu0 %2161
        %v2163 = vsel %vm1165, %v2156, 0.0
        %2164 = vadd.xlane.f32.xlu0 %v2163
        %v2165 = vpop.xlane.xlu0 %2164
        %v2166 = vrcp.pop %v2159
        %v2167 = vrcp.pop %v2162
        %v2168 = vrcp.pop %v2165
        %v2169 = vmul.f32 %v2152, %v2166
        %v2170 = vmul.f32 %v2154, %v2167
        %v2171 = vmul.f32 %v2156, %v2168
        %2172 = vrot.lane.b32.xlu0 %v1039, 40
        %v2173 = vpop.permute.xlu0 %2172
        %2174 = vrot.lane.b32.xlu0 %v1044, 40
        %v2175 = vpop.permute.xlu0 %2174
        %2176 = vrot.lane.b32.xlu0 %v1049, 40
        %v2177 = vpop.permute.xlu0 %2176
        %v2181 = vsel %vm1158, %v2169, 0
        %v2184 = vsel %vm1158, %v2170, 0
        %v2187 = vsel %vm1158, %v2171, 0
        %v2189 = vsel %vm1210, %v2177, 0
        %2191 = vmatprep.subr.mxu0 0.0
        %2192 = vmatpush1.msra.mxu0 0.0
        %2193 = vmatprep.subr.mxu0 0.0
        %2194 = vmatpush1.msra.mxu0 0.0
        %2195 = vmatprep.subr.mxu0 0.0
        %2196 = vmatpush1.msra.mxu0 0.0
        %2197 = vmatprep.subr.mxu0 0.0
        %2198 = vmatpush1.msra.mxu0 0.0
        %2199 = vmatprep.subr.mxu0 0.0
        %2200 = vmatpush1.msra.mxu0 0.0
        %2201 = vmatprep.subr.mxu0 0.0
        %2202 = vmatpush1.msra.mxu0 0.0
        %2203 = vmatprep.subr.mxu0 0.0
        %2204 = vmatpush1.msra.mxu0 0.0
        %2205 = vmatprep.subr.mxu0 0.0
        %2206 = vmatpush1.msra.mxu0 0.0
        %2207 = vmatprep.subr.mxu0 0.0
        %2208 = vmatpush1.msra.mxu0 0.0
        %2209 = vmatprep.subr.mxu0 0.0
        %2210 = vmatpush1.msra.mxu0 0.0
        %2211 = vmatprep.subr.mxu0 0.0
        %2212 = vmatpush1.msra.mxu0 0.0
        %2213 = vmatprep.subr.mxu0 0.0
        %2214 = vmatpush1.msra.mxu0 0.0
        %2215 = vmatprep.subr.mxu0 0.0
        %2216 = vmatpush1.msra.mxu0 0.0
        %2217 = vmatprep.subr.mxu0 0.0
        %2218 = vmatpush1.msra.mxu0 %v2189
        %2219 = vmatprep.subr.mxu0 0.0
        %2220 = vmatpush1.msra.mxu0 %v2175
        %2221 = vmatprep.subr.mxu0 0.0
        %2222 = vmatpush1.msra.mxu0 %v2173
        %2223 = vmatprep.subr.mxu0 0.0
        %2224 = vmatpush2.msra.mxu0 0.0
        %2225 = vmatprep.subr.mxu0 0.0
        %2226 = vmatpush2.msra.mxu0 0.0
        %2227 = vmatprep.subr.mxu0 0.0
        %2228 = vmatpush2.msra.mxu0 0.0
        %2229 = vmatprep.subr.mxu0 0.0
        %2230 = vmatpush2.msra.mxu0 0.0
        %2231 = vmatprep.subr.mxu0 0.0
        %2232 = vmatpush2.msra.mxu0 0.0
        %2233 = vmatprep.subr.mxu0 0.0
        %2234 = vmatpush2.msra.mxu0 0.0
        %2235 = vmatprep.subr.mxu0 0.0
        %2236 = vmatpush2.msra.mxu0 0.0
        %2237 = vmatprep.subr.mxu0 0.0
        %2238 = vmatpush2.msra.mxu0 0.0
        %2239 = vmatprep.subr.mxu0 0.0
        %2240 = vmatpush2.msra.mxu0 0.0
        %2241 = vmatprep.subr.mxu0 0.0
        %2242 = vmatpush2.msra.mxu0 0.0
        %2243 = vmatprep.subr.mxu0 0.0
        %2244 = vmatpush2.msra.mxu0 0.0
        %2245 = vmatprep.subr.mxu0 0.0
        %2246 = vmatpush2.msra.mxu0 0.0
        %2247 = vmatprep.subr.mxu0 0.0
        %2248 = vmatpush2.msra.mxu0 0.0
        %2249 = vmatprep.subr.mxu0 0.0
        %2250 = vmatpush2.msra.mxu0 0.0
        %2251 = vmatprep.subr.mxu0 0.0
        %2252 = vmatpush2.msra.mxu0 0.0
        %2253 = vmatprep.subr.mxu0 0.0
        %2254 = vmatpush2.msra.mxu0 0.0
        %2255 = vmatprep.mubr.f32.mxu0 0.0
        %2256 = vmatmul.mubr.f32.gmra.mxu0 %v2181
        %v2257 = vpop.f32.mrf.mxu0
        %v2258 = vadd.f32 0.0, %v2257
        %v2259 = vpop.f32.mrf.mxu0
        %2260 = vmatprep.mubr.f32.mxu0 0.0
        %2261 = vmatmul.mubr.f32.gmra.mxu0 %v2184
        %v2262 = vpop.f32.mrf.mxu0
        %v2263 = vadd.f32 0.0, %v2262
        %v2264 = vpop.f32.mrf.mxu0
        %2265 = vmatprep.mubr.f32.mxu0 0.0
        %2266 = vmatmul.mubr.f32.gmra.mxu0 %v2187
        %v2267 = vpop.f32.mrf.mxu0
        %v2268 = vadd.f32 0.0, %v2267
        %v2269 = vpop.f32.mrf.mxu0
        %2270 = vdwg.mxu0
        %v2272 = vsel %vm1065, %v2258, 0
        %v2275 = vsel %vm1065, %v2263, 0
        %v2278 = vsel %vm1065, %v2268, 0
        %2280 = vmatprep.subr.mxu0 0.0
        %2281 = vmatpush1.msra.mxu0 0.0
        %2282 = vmatprep.subr.mxu0 0.0
        %2283 = vmatpush1.msra.mxu0 0.0
        %2284 = vmatprep.subr.mxu0 0.0
        %2285 = vmatpush1.msra.mxu0 0.0
        %2286 = vmatprep.subr.mxu0 0.0
        %2287 = vmatpush1.msra.mxu0 0.0
        %2288 = vmatprep.subr.mxu0 0.0
        %2289 = vmatpush1.msra.mxu0 0.0
        %2290 = vmatprep.subr.mxu0 0.0
        %2291 = vmatpush1.msra.mxu0 0.0
        %2292 = vmatprep.subr.mxu0 0.0
        %2293 = vmatpush1.msra.mxu0 0.0
        %2294 = vmatprep.subr.mxu0 0.0
        %2295 = vmatpush1.msra.mxu0 0.0
        %2296 = vmatprep.subr.mxu0 0.0
        %2297 = vmatpush1.msra.mxu0 0.0
        %2298 = vmatprep.subr.mxu0 0.0
        %2299 = vmatpush1.msra.mxu0 0.0
        %2300 = vmatprep.subr.mxu0 0.0
        %2301 = vmatpush1.msra.mxu0 0.0
        %2302 = vmatprep.subr.mxu0 0.0
        %2303 = vmatpush1.msra.mxu0 0.0
        %2304 = vmatprep.subr.mxu0 0.0
        %2305 = vmatpush1.msra.mxu0 0.0
        %2306 = vmatprep.subr.mxu0 0.0
        %2307 = vmatpush1.msra.mxu0 0.0
        %2308 = vmatprep.subr.mxu0 0.0
        %2309 = vmatpush1.msra.mxu0 0.0
        %2310 = vmatprep.subr.mxu0 0.0
        %2311 = vmatpush1.msra.mxu0 %v1055
        %2312 = vmatprep.subr.mxu0 0.0
        %2313 = vmatpush2.msra.mxu0 0.0
        %2314 = vmatprep.subr.mxu0 0.0
        %2315 = vmatpush2.msra.mxu0 0.0
        %2316 = vmatprep.subr.mxu0 0.0
        %2317 = vmatpush2.msra.mxu0 0.0
        %2318 = vmatprep.subr.mxu0 0.0
        %2319 = vmatpush2.msra.mxu0 0.0
        %2320 = vmatprep.subr.mxu0 0.0
        %2321 = vmatpush2.msra.mxu0 0.0
        %2322 = vmatprep.subr.mxu0 0.0
        %2323 = vmatpush2.msra.mxu0 0.0
        %2324 = vmatprep.subr.mxu0 0.0
        %2325 = vmatpush2.msra.mxu0 0.0
        %2326 = vmatprep.subr.mxu0 0.0
        %2327 = vmatpush2.msra.mxu0 0.0
        %2328 = vmatprep.subr.mxu0 0.0
        %2329 = vmatpush2.msra.mxu0 0.0
        %2330 = vmatprep.subr.mxu0 0.0
        %2331 = vmatpush2.msra.mxu0 0.0
        %2332 = vmatprep.subr.mxu0 0.0
        %2333 = vmatpush2.msra.mxu0 0.0
        %2334 = vmatprep.subr.mxu0 0.0
        %2335 = vmatpush2.msra.mxu0 0.0
        %2336 = vmatprep.subr.mxu0 0.0
        %2337 = vmatpush2.msra.mxu0 0.0
        %2338 = vmatprep.subr.mxu0 0.0
        %2339 = vmatpush2.msra.mxu0 0.0
        %2340 = vmatprep.subr.mxu0 0.0
        %2341 = vmatpush2.msra.mxu0 0.0
        %2342 = vmatprep.subr.mxu0 0.0
        %2343 = vmatpush2.msra.mxu0 0.0
        %2344 = vmatprep.mubr.f32.mxu0 0.0
        %2345 = vmatmul.mubr.f32.gmra.mxu0 %v2272
        %v2346 = vpop.f32.mrf.mxu0
        %v2347 = vadd.f32 0.0, %v2346
        %v2348 = vpop.f32.mrf.mxu0
        %2349 = vmatprep.mubr.f32.mxu0 0.0
        %2350 = vmatmul.mubr.f32.gmra.mxu0 %v2275
        %v2351 = vpop.f32.mrf.mxu0
        %v2352 = vadd.f32 0.0, %v2351
        %v2353 = vpop.f32.mrf.mxu0
        %2354 = vmatprep.mubr.f32.mxu0 0.0
        %2355 = vmatmul.mubr.f32.gmra.mxu0 %v2278
        %v2356 = vpop.f32.mrf.mxu0
        %v2357 = vadd.f32 0.0, %v2356
        %v2358 = vpop.f32.mrf.mxu0
        %2359 = vdwg.mxu0
        %v2360 = vadd.f32 %v2032, %v2347
        %v2361 = vadd.f32 %v2033, %v2352
        %v2362 = vadd.f32 %v2034, %v2357
        %v2363 = vadd.f32 %v890, %v2360
        %v2364 = vadd.f32 %v891, %v2361
        %v2365 = vadd.f32 %v892, %v2362
        %v2366 = vld [vmem:[%s12] sm:$0x1]
        %v2368 = vlaneseq
        %v2369 = vshrl.u32 %v2368, 7
        %v2370 = vsub.s32 0, %v2369
        %v2371 = vrot.slane %v2366, %v2370
        %v2373 = vadd.f32 %v2363, %v2371
        %v2374 = vadd.f32 %v2364, %v2371
        %v2375 = vadd.f32 %v2365, %v2371
        %v2376 = vld [vmem:[%s13] sm:$0x1]
        %v2377 = vld [vmem:[%s14] sm:$0x1]
        %v2378 = vsel %vm833, %v2373, 0.0
        %2379 = vadd.xlane.f32.xlu0 %v2378
        %v2380 = vpop.xlane.xlu0 %2379
        %v2381 = vsel %vm833, %v2374, 0.0
        %2382 = vadd.xlane.f32.xlu0 %v2381
        %v2383 = vpop.xlane.xlu0 %2382
        %v2384 = vsel %vm840, %v2375, 0.0
        %2385 = vadd.xlane.f32.xlu0 %v2384
        %v2386 = vpop.xlane.xlu0 %2385
        %v2387 = vmul.f32 %v2380, %v844
        %v2388 = vmul.f32 %v2383, %v844
        %v2389 = vmul.f32 %v2386, %v844
        %v2390 = vsub.f32 %v2373, %v2387
        %v2391 = vsub.f32 %v2374, %v2388
        %v2392 = vsub.f32 %v2375, %v2389
        %v2393 = vmul.f32 %v2390, %v2390
        %v2394 = vmul.f32 %v2391, %v2391
        %v2395 = vmul.f32 %v2392, %v2392
        %v2396 = vsel %vm833, %v2393, 0.0
        %2397 = vadd.xlane.f32.xlu0 %v2396
        %v2398 = vpop.xlane.xlu0 %2397
        %v2399 = vsel %vm833, %v2394, 0.0
        %2400 = vadd.xlane.f32.xlu0 %v2399
        %v2401 = vpop.xlane.xlu0 %2400
        %v2402 = vsel %vm840, %v2395, 0.0
        %2403 = vadd.xlane.f32.xlu0 %v2402
        %v2404 = vpop.xlane.xlu0 %2403
        %v2405 = vmul.f32 %v2398, %v844
        %v2406 = vmul.f32 %v2401, %v844
        %v2407 = vmul.f32 %v2404, %v844
        %v2408 = vadd.f32 %v2405, 1e-05
        %v2409 = vadd.f32 %v2406, 1e-05
        %v2410 = vadd.f32 %v2407, 1e-05
        %v2411 = vrsqrt.pop %v2408
        %v2412 = vrsqrt.pop %v2409
        %v2413 = vrsqrt.pop %v2410
        %v2414 = vmul.f32 %v2390, %v2411
        %v2415 = vmul.f32 %v2391, %v2412
        %v2416 = vmul.f32 %v2392, %v2413
        %v2418 = vlaneseq
        %v2419 = vshrl.u32 %v2418, 7
        %v2420 = vsub.s32 0, %v2419
        %v2421 = vrot.slane %v2376, %v2420
        %v2423 = vmul.f32 %v2414, %v2421
        %v2424 = vmul.f32 %v2415, %v2421
        %v2425 = vmul.f32 %v2416, %v2421
        %v2427 = vlaneseq
        %v2428 = vshrl.u32 %v2427, 7
        %v2429 = vsub.s32 0, %v2428
        %v2430 = vrot.slane %v2377, %v2429
        %v2432 = vadd.f32 %v2423, %v2430
        %v2433 = vadd.f32 %v2424, %v2430
        %v2434 = vadd.f32 %v2425, %v2430
        %v2435 = vld [vmem:[%s15] sm:$0xff]
        %v2436 = vld [vmem:[%s15 + $0x8] sm:$0xff]
        %v2437 = vld [vmem:[%s15 + $0x10] sm:$0xff]
        %v2438 = vld [vmem:[%s15 + $0x18] sm:$0xff]
        %v2439 = vld [vmem:[%s16] sm:$0x1]
        %v2441 = vlaneseq
        %v2442 = vshrl.u32 %v2441, 7
        %v2443 = vsub.s32 0, %v2442
        %v2444 = vrot.slane %v2439, %v2443
        %v2447 = vsel %vm833, %v2432, 0
        %v2450 = vsel %vm833, %v2433, 0
        %v2453 = vsel %vm833, %v2434, 0
        %2455 = vmatprep.subr.mxu0 0.0
        %2456 = vmatpush1.msra.mxu0 0.0
        %2457 = vmatprep.subr.mxu0 0.0
        %2458 = vmatpush1.msra.mxu0 0.0
        %2459 = vmatprep.subr.mxu0 0.0
        %2460 = vmatpush1.msra.mxu0 0.0
        %2461 = vmatprep.subr.mxu0 0.0
        %2462 = vmatpush1.msra.mxu0 0.0
        %2463 = vmatprep.subr.mxu0 0.0
        %2464 = vmatpush1.msra.mxu0 0.0
        %2465 = vmatprep.subr.mxu0 0.0
        %2466 = vmatpush1.msra.mxu0 0.0
        %2467 = vmatprep.subr.mxu0 0.0
        %2468 = vmatpush1.msra.mxu0 0.0
        %2469 = vmatprep.subr.mxu0 0.0
        %2470 = vmatpush1.msra.mxu0 0.0
        %2471 = vmatprep.subr.mxu0 0.0
        %2472 = vmatpush1.msra.mxu0 0.0
        %2473 = vmatprep.subr.mxu0 0.0
        %2474 = vmatpush1.msra.mxu0 0.0
        %2475 = vmatprep.subr.mxu0 0.0
        %2476 = vmatpush1.msra.mxu0 0.0
        %2477 = vmatprep.subr.mxu0 0.0
        %2478 = vmatpush1.msra.mxu0 0.0
        %2479 = vmatprep.subr.mxu0 0.0
        %2480 = vmatpush1.msra.mxu0 %v2438
        %2481 = vmatprep.subr.mxu0 0.0
        %2482 = vmatpush1.msra.mxu0 %v2437
        %2483 = vmatprep.subr.mxu0 0.0
        %2484 = vmatpush1.msra.mxu0 %v2436
        %2485 = vmatprep.subr.mxu0 0.0
        %2486 = vmatpush1.msra.mxu0 %v2435
        %2487 = vmatprep.subr.mxu0 0.0
        %2488 = vmatpush2.msra.mxu0 0.0
        %2489 = vmatprep.subr.mxu0 0.0
        %2490 = vmatpush2.msra.mxu0 0.0
        %2491 = vmatprep.subr.mxu0 0.0
        %2492 = vmatpush2.msra.mxu0 0.0
        %2493 = vmatprep.subr.mxu0 0.0
        %2494 = vmatpush2.msra.mxu0 0.0
        %2495 = vmatprep.subr.mxu0 0.0
        %2496 = vmatpush2.msra.mxu0 0.0
        %2497 = vmatprep.subr.mxu0 0.0
        %2498 = vmatpush2.msra.mxu0 0.0
        %2499 = vmatprep.subr.mxu0 0.0
        %2500 = vmatpush2.msra.mxu0 0.0
        %2501 = vmatprep.subr.mxu0 0.0
        %2502 = vmatpush2.msra.mxu0 0.0
        %2503 = vmatprep.subr.mxu0 0.0
        %2504 = vmatpush2.msra.mxu0 0.0
        %2505 = vmatprep.subr.mxu0 0.0
        %2506 = vmatpush2.msra.mxu0 0.0
        %2507 = vmatprep.subr.mxu0 0.0
        %2508 = vmatpush2.msra.mxu0 0.0
        %2509 = vmatprep.subr.mxu0 0.0
        %2510 = vmatpush2.msra.mxu0 0.0
        %2511 = vmatprep.subr.mxu0 0.0
        %2512 = vmatpush2.msra.mxu0 0.0
        %2513 = vmatprep.subr.mxu0 0.0
        %2514 = vmatpush2.msra.mxu0 0.0
        %2515 = vmatprep.subr.mxu0 0.0
        %2516 = vmatpush2.msra.mxu0 0.0
        %2517 = vmatprep.subr.mxu0 0.0
        %2518 = vmatpush2.msra.mxu0 0.0
        %2519 = vmatprep.mubr.f32.mxu0 0.0
        %2520 = vmatmul.mubr.f32.gmra.mxu0 %v2447
        %v2521 = vpop.f32.mrf.mxu0
        %v2522 = vadd.f32 %v2444, %v2521
        %v2523 = vpop.f32.mrf.mxu0
        %2524 = vmatprep.mubr.f32.mxu0 0.0
        %2525 = vmatmul.mubr.f32.gmra.mxu0 %v2450
        %v2526 = vpop.f32.mrf.mxu0
        %v2527 = vadd.f32 %v2444, %v2526
        %v2528 = vpop.f32.mrf.mxu0
        %2529 = vmatprep.mubr.f32.mxu0 0.0
        %2530 = vmatmul.mubr.f32.gmra.mxu0 %v2453
        %v2531 = vpop.f32.mrf.mxu0
        %v2532 = vadd.f32 %v2444, %v2531
        %v2533 = vpop.f32.mrf.mxu0
        %2534 = vdwg.mxu0
        %v2535 = vmul.f32 %v2522, 1.702
        %v2536 = vmul.f32 %v2527, 1.702
        %v2537 = vmul.f32 %v2532, 1.702
        %v2538 = vxor.u32 %v2535, 2147483648
        %v2539 = vxor.u32 %v2536, 2147483648
        %v2540 = vxor.u32 %v2537, 2147483648
        %v2541 = vmul.f32 %v2538, 1.442695
        %v2542 = vpow.pop %v2541
        %v2543 = vmul.f32 %v2539, 1.442695
        %v2544 = vpow.pop %v2543
        %v2545 = vmul.f32 %v2540, 1.442695
        %v2546 = vpow.pop %v2545
        %v2547 = vadd.f32 %v2542, 1.0
        %v2548 = vadd.f32 %v2544, 1.0
        %v2549 = vadd.f32 %v2546, 1.0
        %v2550 = vrcp.pop %v2547
        %v2551 = vmul.f32 1.0, %v2550
        %v2552 = vrcp.pop %v2548
        %v2553 = vmul.f32 1.0, %v2552
        %v2554 = vrcp.pop %v2549
        %v2555 = vmul.f32 1.0, %v2554
        %v2556 = vmul.f32 %v2522, %v2551
        %v2557 = vmul.f32 %v2527, %v2553
        %v2558 = vmul.f32 %v2532, %v2555
        %v2559 = vld [vmem:[%s17] sm:$0xff]
        %v2560 = vld [vmem:[%s17 + $0x8] sm:$0xff]
        %v2561 = vld [vmem:[%s17 + $0x10] sm:$0xff]
        %v2562 = vld [vmem:[%s17 + $0x18] sm:$0xff]
        %v2563 = vld [vmem:[%s17 + $0x20] sm:$0xff]
        %v2564 = vld [vmem:[%s17 + $0x28] sm:$0xff]
        %v2565 = vld [vmem:[%s17 + $0x30] sm:$0xff]
        %v2566 = vld [vmem:[%s17 + $0x38] sm:$0xff]
        %v2567 = vld [vmem:[%s18] sm:$0x1]
        %v2569 = vlaneseq
        %v2570 = vshrl.u32 %v2569, 7
        %v2571 = vsub.s32 0, %v2570
        %v2572 = vrot.slane %v2567, %v2571
        %v2575 = vsel %vm718, %v2556, 0
        %v2578 = vsel %vm718, %v2557, 0
        %v2581 = vsel %vm718, %v2558, 0
        %2583 = vmatprep.subr.mxu0 0.0
        %2584 = vmatpush1.msra.mxu0 0.0
        %2585 = vmatprep.subr.mxu0 0.0
        %2586 = vmatpush1.msra.mxu0 0.0
        %2587 = vmatprep.subr.mxu0 0.0
        %2588 = vmatpush1.msra.mxu0 0.0
        %2589 = vmatprep.subr.mxu0 0.0
        %2590 = vmatpush1.msra.mxu0 0.0
        %2591 = vmatprep.subr.mxu0 0.0
        %2592 = vmatpush1.msra.mxu0 0.0
        %2593 = vmatprep.subr.mxu0 0.0
        %2594 = vmatpush1.msra.mxu0 0.0
        %2595 = vmatprep.subr.mxu0 0.0
        %2596 = vmatpush1.msra.mxu0 0.0
        %2597 = vmatprep.subr.mxu0 0.0
        %2598 = vmatpush1.msra.mxu0 0.0
        %2599 = vmatprep.subr.mxu0 0.0
        %2600 = vmatpush1.msra.mxu0 %v2566
        %2601 = vmatprep.subr.mxu0 0.0
        %2602 = vmatpush1.msra.mxu0 %v2565
        %2603 = vmatprep.subr.mxu0 0.0
        %2604 = vmatpush1.msra.mxu0 %v2564
        %2605 = vmatprep.subr.mxu0 0.0
        %2606 = vmatpush1.msra.mxu0 %v2563
        %2607 = vmatprep.subr.mxu0 0.0
        %2608 = vmatpush1.msra.mxu0 %v2562
        %2609 = vmatprep.subr.mxu0 0.0
        %2610 = vmatpush1.msra.mxu0 %v2561
        %2611 = vmatprep.subr.mxu0 0.0
        %2612 = vmatpush1.msra.mxu0 %v2560
        %2613 = vmatprep.subr.mxu0 0.0
        %2614 = vmatpush1.msra.mxu0 %v2559
        %2615 = vmatprep.subr.mxu0 0.0
        %2616 = vmatpush2.msra.mxu0 0.0
        %2617 = vmatprep.subr.mxu0 0.0
        %2618 = vmatpush2.msra.mxu0 0.0
        %2619 = vmatprep.subr.mxu0 0.0
        %2620 = vmatpush2.msra.mxu0 0.0
        %2621 = vmatprep.subr.mxu0 0.0
        %2622 = vmatpush2.msra.mxu0 0.0
        %2623 = vmatprep.subr.mxu0 0.0
        %2624 = vmatpush2.msra.mxu0 0.0
        %2625 = vmatprep.subr.mxu0 0.0
        %2626 = vmatpush2.msra.mxu0 0.0
        %2627 = vmatprep.subr.mxu0 0.0
        %2628 = vmatpush2.msra.mxu0 0.0
        %2629 = vmatprep.subr.mxu0 0.0
        %2630 = vmatpush2.msra.mxu0 0.0
        %2631 = vmatprep.subr.mxu0 0.0
        %2632 = vmatpush2.msra.mxu0 0.0
        %2633 = vmatprep.subr.mxu0 0.0
        %2634 = vmatpush2.msra.mxu0 0.0
        %2635 = vmatprep.subr.mxu0 0.0
        %2636 = vmatpush2.msra.mxu0 0.0
        %2637 = vmatprep.subr.mxu0 0.0
        %2638 = vmatpush2.msra.mxu0 0.0
        %2639 = vmatprep.subr.mxu0 0.0
        %2640 = vmatpush2.msra.mxu0 0.0
        %2641 = vmatprep.subr.mxu0 0.0
        %2642 = vmatpush2.msra.mxu0 0.0
        %2643 = vmatprep.subr.mxu0 0.0
        %2644 = vmatpush2.msra.mxu0 0.0
        %2645 = vmatprep.subr.mxu0 0.0
        %2646 = vmatpush2.msra.mxu0 0.0
        %2647 = vmatprep.mubr.f32.mxu0 0.0
        %2648 = vmatmul.mubr.f32.gmra.mxu0 %v2575
        %v2649 = vpop.f32.mrf.mxu0
        %v2650 = vadd.f32 %v2572, %v2649
        %v2651 = vpop.f32.mrf.mxu0
        %2652 = vmatprep.mubr.f32.mxu0 0.0
        %2653 = vmatmul.mubr.f32.gmra.mxu0 %v2578
        %v2654 = vpop.f32.mrf.mxu0
        %v2655 = vadd.f32 %v2572, %v2654
        %v2656 = vpop.f32.mrf.mxu0
        %2657 = vmatprep.mubr.f32.mxu0 0.0
        %2658 = vmatmul.mubr.f32.gmra.mxu0 %v2581
        %v2659 = vpop.f32.mrf.mxu0
        %v2660 = vadd.f32 %v2572, %v2659
        %v2661 = vpop.f32.mrf.mxu0
        %2662 = vdwg.mxu0
        %v2663 = vadd.f32 %v2373, %v2650
        %v2664 = vadd.f32 %v2374, %v2655
        %v2665 = vadd.f32 %v2375, %v2660
        %s2666 = scalar_lea.vmem %s7, 1
        %v2667 = vld [vmem:[%s2666] sm:$0x1]
        %s2668 = scalar_lea.vmem %s8, 1
        %v2669 = vld [vmem:[%s2668] sm:$0x1]
        %v2670 = vsel %vm833, %v2663, 0.0
        %2671 = vadd.xlane.f32.xlu0 %v2670
        %v2672 = vpop.xlane.xlu0 %2671
        %v2673 = vsel %vm833, %v2664, 0.0
        %2674 = vadd.xlane.f32.xlu0 %v2673
        %v2675 = vpop.xlane.xlu0 %2674
        %v2676 = vsel %vm840, %v2665, 0.0
        %2677 = vadd.xlane.f32.xlu0 %v2676
        %v2678 = vpop.xlane.xlu0 %2677
        %v2679 = vmul.f32 %v2672, %v844
        %v2680 = vmul.f32 %v2675, %v844
        %v2681 = vmul.f32 %v2678, %v844
        %v2682 = vsub.f32 %v2663, %v2679
        %v2683 = vsub.f32 %v2664, %v2680
        %v2684 = vsub.f32 %v2665, %v2681
        %v2685 = vmul.f32 %v2682, %v2682
        %v2686 = vmul.f32 %v2683, %v2683
        %v2687 = vmul.f32 %v2684, %v2684
        %v2688 = vsel %vm833, %v2685, 0.0
        %2689 = vadd.xlane.f32.xlu0 %v2688
        %v2690 = vpop.xlane.xlu0 %2689
        %v2691 = vsel %vm833, %v2686, 0.0
        %2692 = vadd.xlane.f32.xlu0 %v2691
        %v2693 = vpop.xlane.xlu0 %2692
        %v2694 = vsel %vm840, %v2687, 0.0
        %2695 = vadd.xlane.f32.xlu0 %v2694
        %v2696 = vpop.xlane.xlu0 %2695
        %v2697 = vmul.f32 %v2690, %v844
        %v2698 = vmul.f32 %v2693, %v844
        %v2699 = vmul.f32 %v2696, %v844
        %v2700 = vadd.f32 %v2697, 1e-05
        %v2701 = vadd.f32 %v2698, 1e-05
        %v2702 = vadd.f32 %v2699, 1e-05
        %v2703 = vrsqrt.pop %v2700
        %v2704 = vrsqrt.pop %v2701
        %v2705 = vrsqrt.pop %v2702
        %v2706 = vmul.f32 %v2682, %v2703
        %v2707 = vmul.f32 %v2683, %v2704
        %v2708 = vmul.f32 %v2684, %v2705
        %v2710 = vlaneseq
        %v2711 = vshrl.u32 %v2710, 7
        %v2712 = vsub.s32 0, %v2711
        %v2713 = vrot.slane %v2667, %v2712
        %v2715 = vmul.f32 %v2706, %v2713
        %v2716 = vmul.f32 %v2707, %v2713
        %v2717 = vmul.f32 %v2708, %v2713
        %v2719 = vlaneseq
        %v2720 = vshrl.u32 %v2719, 7
        %v2721 = vsub.s32 0, %v2720
        %v2722 = vrot.slane %v2669, %v2721
        %v2724 = vadd.f32 %v2715, %v2722
        %v2725 = vadd.f32 %v2716, %v2722
        %v2726 = vadd.f32 %v2717, %v2722
        %s2727 = scalar_lea.vmem %s9, 32
        %v2728 = vld [vmem:[%s2727] sm:$0xff]
        %v2729 = vld [vmem:[%s2727 + $0x8] sm:$0xff]
        %v2730 = vld [vmem:[%s2727 + $0x10] sm:$0xff]
        %v2731 = vld [vmem:[%s2727 + $0x18] sm:$0xff]
        %s2732 = scalar_lea.vmem %s10, 1
        %v2733 = vld [vmem:[%s2732] sm:$0x1]
        %v2735 = vlaneseq
        %v2736 = vshrl.u32 %v2735, 7
        %v2737 = vsub.s32 0, %v2736
        %v2738 = vrot.slane %v2733, %v2737
        %v2741 = vsel %vm833, %v2724, 0
        %v2744 = vsel %vm833, %v2725, 0
        %v2747 = vsel %vm833, %v2726, 0
        %2749 = vmatprep.subr.mxu0 0.0
        %2750 = vmatpush1.msra.mxu0 0.0
        %2751 = vmatprep.subr.mxu0 0.0
        %2752 = vmatpush1.msra.mxu0 0.0
        %2753 = vmatprep.subr.mxu0 0.0
        %2754 = vmatpush1.msra.mxu0 0.0
        %2755 = vmatprep.subr.mxu0 0.0
        %2756 = vmatpush1.msra.mxu0 0.0
        %2757 = vmatprep.subr.mxu0 0.0
        %2758 = vmatpush1.msra.mxu0 0.0
        %2759 = vmatprep.subr.mxu0 0.0
        %2760 = vmatpush1.msra.mxu0 0.0
        %2761 = vmatprep.subr.mxu0 0.0
        %2762 = vmatpush1.msra.mxu0 0.0
        %2763 = vmatprep.subr.mxu0 0.0
        %2764 = vmatpush1.msra.mxu0 0.0
        %2765 = vmatprep.subr.mxu0 0.0
        %2766 = vmatpush1.msra.mxu0 0.0
        %2767 = vmatprep.subr.mxu0 0.0
        %2768 = vmatpush1.msra.mxu0 0.0
        %2769 = vmatprep.subr.mxu0 0.0
        %2770 = vmatpush1.msra.mxu0 0.0
        %2771 = vmatprep.subr.mxu0 0.0
        %2772 = vmatpush1.msra.mxu0 0.0
        %2773 = vmatprep.subr.mxu0 0.0
        %2774 = vmatpush1.msra.mxu0 %v2731
        %2775 = vmatprep.subr.mxu0 0.0
        %2776 = vmatpush1.msra.mxu0 %v2730
        %2777 = vmatprep.subr.mxu0 0.0
        %2778 = vmatpush1.msra.mxu0 %v2729
        %2779 = vmatprep.subr.mxu0 0.0
        %2780 = vmatpush1.msra.mxu0 %v2728
        %2781 = vmatprep.subr.mxu0 0.0
        %2782 = vmatpush2.msra.mxu0 0.0
        %2783 = vmatprep.subr.mxu0 0.0
        %2784 = vmatpush2.msra.mxu0 0.0
        %2785 = vmatprep.subr.mxu0 0.0
        %2786 = vmatpush2.msra.mxu0 0.0
        %2787 = vmatprep.subr.mxu0 0.0
        %2788 = vmatpush2.msra.mxu0 0.0
        %2789 = vmatprep.subr.mxu0 0.0
        %2790 = vmatpush2.msra.mxu0 0.0
        %2791 = vmatprep.subr.mxu0 0.0
        %2792 = vmatpush2.msra.mxu0 0.0
        %2793 = vmatprep.subr.mxu0 0.0
        %2794 = vmatpush2.msra.mxu0 0.0
        %2795 = vmatprep.subr.mxu0 0.0
        %2796 = vmatpush2.msra.mxu0 0.0
        %2797 = vmatprep.subr.mxu0 0.0
        %2798 = vmatpush2.msra.mxu0 0.0
        %2799 = vmatprep.subr.mxu0 0.0
        %2800 = vmatpush2.msra.mxu0 0.0
        %2801 = vmatprep.subr.mxu0 0.0
        %2802 = vmatpush2.msra.mxu0 0.0
        %2803 = vmatprep.subr.mxu0 0.0
        %2804 = vmatpush2.msra.mxu0 0.0
        %2805 = vmatprep.subr.mxu0 0.0
        %2806 = vmatpush2.msra.mxu0 0.0
        %2807 = vmatprep.subr.mxu0 0.0
        %2808 = vmatpush2.msra.mxu0 0.0
        %2809 = vmatprep.subr.mxu0 0.0
        %2810 = vmatpush2.msra.mxu0 0.0
        %2811 = vmatprep.subr.mxu0 0.0
        %2812 = vmatpush2.msra.mxu0 0.0
        %2813 = vmatprep.mubr.f32.mxu0 0.0
        %2814 = vmatmul.mubr.f32.gmra.mxu0 %v2741
        %v2815 = vpop.f32.mrf.mxu0
        %v2816 = vadd.f32 %v2738, %v2815
        %v2817 = vpop.f32.mrf.mxu0
        %2818 = vmatprep.mubr.f32.mxu0 0.0
        %2819 = vmatmul.mubr.f32.gmra.mxu0 %v2744
        %v2820 = vpop.f32.mrf.mxu0
        %v2821 = vadd.f32 %v2738, %v2820
        %v2822 = vpop.f32.mrf.mxu0
        %2823 = vmatprep.mubr.f32.mxu0 0.0
        %2824 = vmatmul.mubr.f32.gmra.mxu0 %v2747
        %v2825 = vpop.f32.mrf.mxu0
        %v2826 = vadd.f32 %v2738, %v2825
        %v2827 = vpop.f32.mrf.mxu0
        %2828 = vdwg.mxu0
        %s2829 = scalar_lea.vmem %s11, 32
        %v2830 = vld [vmem:[%s2829] sm:$0xff]
        %v2831 = vld [vmem:[%s2829 + $0x8] sm:$0xff]
        %v2832 = vld [vmem:[%s2829 + $0x10] sm:$0xff]
        %v2833 = vld [vmem:[%s2829 + $0x18] sm:$0xff]
        %2837 = vrot.lane.b32.xlu0 %v2816, 96
        %v2838 = vpop.permute.xlu0 %2837
        %2839 = vrot.lane.b32.xlu0 %v2821, 96
        %v2840 = vpop.permute.xlu0 %2839
        %2841 = vrot.lane.b32.xlu0 %v2826, 96
        %v2842 = vpop.permute.xlu0 %2841
        %v2843 = vsel %vm1065, %v2816, 0
        %v2845 = vsel %vm1065, %v2821, 0
        %v2847 = vsel %vm1065, %v2826, 0
        %v2849 = vsel %vm1065, %v2838, 0
        %v2851 = vsel %vm1065, %v2840, 0
        %v2853 = vsel %vm1065, %v2842, 0
        %2855 = vmatprep.subr.mxu0 0.0
        %2856 = vmatpush1.xpose.msra.mxu0 0.0
        %2857 = vmatprep.subr.mxu0 0.0
        %2858 = vmatpush1.xpose.msra.mxu0 0.0
        %2859 = vmatprep.subr.mxu0 0.0
        %2860 = vmatpush1.xpose.msra.mxu0 0.0
        %2861 = vmatprep.subr.mxu0 0.0
        %2862 = vmatpush1.xpose.msra.mxu0 0.0
        %2863 = vmatprep.subr.mxu0 0.0
        %2864 = vmatpush1.xpose.msra.mxu0 0.0
        %2865 = vmatprep.subr.mxu0 0.0
        %2866 = vmatpush1.xpose.msra.mxu0 0.0
        %2867 = vmatprep.subr.mxu0 0.0
        %2868 = vmatpush1.xpose.msra.mxu0 0.0
        %2869 = vmatprep.subr.mxu0 0.0
        %2870 = vmatpush1.xpose.msra.mxu0 0.0
        %2871 = vmatprep.subr.mxu0 0.0
        %2872 = vmatpush1.xpose.msra.mxu0 0.0
        %2873 = vmatprep.subr.mxu0 0.0
        %2874 = vmatpush1.xpose.msra.mxu0 0.0
        %2875 = vmatprep.subr.mxu0 0.0
        %2876 = vmatpush1.xpose.msra.mxu0 0.0
        %2877 = vmatprep.subr.mxu0 0.0
        %2878 = vmatpush1.xpose.msra.mxu0 0.0
        %2879 = vmatprep.subr.mxu0 0.0
        %2880 = vmatpush1.xpose.msra.mxu0 0.0
        %2881 = vmatprep.subr.mxu0 0.0
        %2882 = vmatpush1.xpose.msra.mxu0 %v2853
        %2883 = vmatprep.subr.mxu0 0.0
        %2884 = vmatpush1.xpose.msra.mxu0 %v2851
        %2885 = vmatprep.subr.mxu0 0.0
        %2886 = vmatpush1.xpose.msra.mxu0 %v2849
        %2887 = vmatprep.subr.mxu0 0.0
        %2888 = vmatpush2.xpose.msra.mxu0 0.0
        %2889 = vmatprep.subr.mxu0 0.0
        %2890 = vmatpush2.xpose.msra.mxu0 0.0
        %2891 = vmatprep.subr.mxu0 0.0
        %2892 = vmatpush2.xpose.msra.mxu0 0.0
        %2893 = vmatprep.subr.mxu0 0.0
        %2894 = vmatpush2.xpose.msra.mxu0 0.0
        %2895 = vmatprep.subr.mxu0 0.0
        %2896 = vmatpush2.xpose.msra.mxu0 0.0
        %2897 = vmatprep.subr.mxu0 0.0
        %2898 = vmatpush2.xpose.msra.mxu0 0.0
        %2899 = vmatprep.subr.mxu0 0.0
        %2900 = vmatpush2.xpose.msra.mxu0 0.0
        %2901 = vmatprep.subr.mxu0 0.0
        %2902 = vmatpush2.xpose.msra.mxu0 0.0
        %2903 = vmatprep.subr.mxu0 0.0
        %2904 = vmatpush2.xpose.msra.mxu0 0.0
        %2905 = vmatprep.subr.mxu0 0.0
        %2906 = vmatpush2.xpose.msra.mxu0 0.0
        %2907 = vmatprep.subr.mxu0 0.0
        %2908 = vmatpush2.xpose.msra.mxu0 0.0
        %2909 = vmatprep.subr.mxu0 0.0
        %2910 = vmatpush2.xpose.msra.mxu0 0.0
        %2911 = vmatprep.subr.mxu0 0.0
        %2912 = vmatpush2.xpose.msra.mxu0 0.0
        %2913 = vmatprep.subr.mxu0 0.0
        %2914 = vmatpush2.xpose.msra.mxu0 0.0
        %2915 = vmatprep.subr.mxu0 0.0
        %2916 = vmatpush2.xpose.msra.mxu0 0.0
        %2917 = vmatprep.subr.mxu0 0.0
        %2918 = vmatpush2.xpose.msra.mxu0 0.0
        %2919 = vmatprep.mubr.f32.mxu0 0.0
        %2920 = vmatmul.mubr.f32.gmra.mxu0 %v2843
        %v2921 = vpop.f32.mrf.mxu0
        %v2922 = vadd.f32 0.0, %v2921
        %v2923 = vpop.f32.mrf.mxu0
        %2924 = vmatprep.mubr.f32.mxu0 0.0
        %2925 = vmatmul.mubr.f32.gmra.mxu0 %v2845
        %v2926 = vpop.f32.mrf.mxu0
        %v2927 = vadd.f32 0.0, %v2926
        %v2928 = vpop.f32.mrf.mxu0
        %2929 = vmatprep.mubr.f32.mxu0 0.0
        %2930 = vmatmul.mubr.f32.gmra.mxu0 %v2847
        %v2931 = vpop.f32.mrf.mxu0
        %v2932 = vadd.f32 0.0, %v2931
        %v2933 = vpop.f32.mrf.mxu0
        %2934 = vdwg.mxu0
        %v2935 = vsel %vm1158, %v2922, -inf
        %2936 = vmax.xlane.f32.xlu0 %v2935
        %v2937 = vpop.xlane.xlu0 %2936
        %v2938 = vsel %vm1158, %v2927, -inf
        %2939 = vmax.xlane.f32.xlu0 %v2938
        %v2940 = vpop.xlane.xlu0 %2939
        %v2941 = vsel %vm1165, %v2932, -inf
        %2942 = vmax.xlane.f32.xlu0 %v2941
        %v2943 = vpop.xlane.xlu0 %2942
        %v2944 = vsub.f32 %v2922, %v2937
        %v2945 = vsub.f32 %v2927, %v2940
        %v2946 = vsub.f32 %v2932, %v2943
        %v2947 = vmul.f32 %v2944, 1.442695
        %v2948 = vpow.pop %v2947
        %v2949 = vmul.f32 %v2945, 1.442695
        %v2950 = vpow.pop %v2949
        %v2951 = vmul.f32 %v2946, 1.442695
        %v2952 = vpow.pop %v2951
        %v2953 = vsel %vm1158, %v2948, 0.0
        %2954 = vadd.xlane.f32.xlu0 %v2953
        %v2955 = vpop.xlane.xlu0 %2954
        %v2956 = vsel %vm1158, %v2950, 0.0
        %2957 = vadd.xlane.f32.xlu0 %v2956
        %v2958 = vpop.xlane.xlu0 %2957
        %v2959 = vsel %vm1165, %v2952, 0.0
        %2960 = vadd.xlane.f32.xlu0 %v2959
        %v2961 = vpop.xlane.xlu0 %2960
        %v2962 = vrcp.pop %v2955
        %v2963 = vrcp.pop %v2958
        %v2964 = vrcp.pop %v2961
        %v2965 = vmul.f32 %v2948, %v2962
        %v2966 = vmul.f32 %v2950, %v2963
        %v2967 = vmul.f32 %v2952, %v2964
        %2968 = vrot.lane.b32.xlu0 %v2816, 64
        %v2969 = vpop.permute.xlu0 %2968
        %2970 = vrot.lane.b32.xlu0 %v2821, 64
        %v2971 = vpop.permute.xlu0 %2970
        %2972 = vrot.lane.b32.xlu0 %v2826, 64
        %v2973 = vpop.permute.xlu0 %2972
        %v2977 = vsel %vm1158, %v2965, 0
        %v2980 = vsel %vm1158, %v2966, 0
        %v2983 = vsel %vm1158, %v2967, 0
        %v2985 = vsel %vm1210, %v2973, 0
        %2987 = vmatprep.subr.mxu0 0.0
        %2988 = vmatpush1.msra.mxu0 0.0
        %2989 = vmatprep.subr.mxu0 0.0
        %2990 = vmatpush1.msra.mxu0 0.0
        %2991 = vmatprep.subr.mxu0 0.0
        %2992 = vmatpush1.msra.mxu0 0.0
        %2993 = vmatprep.subr.mxu0 0.0
        %2994 = vmatpush1.msra.mxu0 0.0
        %2995 = vmatprep.subr.mxu0 0.0
        %2996 = vmatpush1.msra.mxu0 0.0
        %2997 = vmatprep.subr.mxu0 0.0
        %2998 = vmatpush1.msra.mxu0 0.0
        %2999 = vmatprep.subr.mxu0 0.0
        %3000 = vmatpush1.msra.mxu0 0.0
        %3001 = vmatprep.subr.mxu0 0.0
        %3002 = vmatpush1.msra.mxu0 0.0
        %3003 = vmatprep.subr.mxu0 0.0
        %3004 = vmatpush1.msra.mxu0 0.0
        %3005 = vmatprep.subr.mxu0 0.0
        %3006 = vmatpush1.msra.mxu0 0.0
        %3007 = vmatprep.subr.mxu0 0.0
        %3008 = vmatpush1.msra.mxu0 0.0
        %3009 = vmatprep.subr.mxu0 0.0
        %3010 = vmatpush1.msra.mxu0 0.0
        %3011 = vmatprep.subr.mxu0 0.0
        %3012 = vmatpush1.msra.mxu0 0.0
        %3013 = vmatprep.subr.mxu0 0.0
        %3014 = vmatpush1.msra.mxu0 %v2985
        %3015 = vmatprep.subr.mxu0 0.0
        %3016 = vmatpush1.msra.mxu0 %v2971
        %3017 = vmatprep.subr.mxu0 0.0
        %3018 = vmatpush1.msra.mxu0 %v2969
        %3019 = vmatprep.subr.mxu0 0.0
        %3020 = vmatpush2.msra.mxu0 0.0
        %3021 = vmatprep.subr.mxu0 0.0
        %3022 = vmatpush2.msra.mxu0 0.0
        %3023 = vmatprep.subr.mxu0 0.0
        %3024 = vmatpush2.msra.mxu0 0.0
        %3025 = vmatprep.subr.mxu0 0.0
        %3026 = vmatpush2.msra.mxu0 0.0
        %3027 = vmatprep.subr.mxu0 0.0
        %3028 = vmatpush2.msra.mxu0 0.0
        %3029 = vmatprep.subr.mxu0 0.0
        %3030 = vmatpush2.msra.mxu0 0.0
        %3031 = vmatprep.subr.mxu0 0.0
        %3032 = vmatpush2.msra.mxu0 0.0
        %3033 = vmatprep.subr.mxu0 0.0
        %3034 = vmatpush2.msra.mxu0 0.0
        %3035 = vmatprep.subr.mxu0 0.0
        %3036 = vmatpush2.msra.mxu0 0.0
        %3037 = vmatprep.subr.mxu0 0.0
        %3038 = vmatpush2.msra.mxu0 0.0
        %3039 = vmatprep.subr.mxu0 0.0
        %3040 = vmatpush2.msra.mxu0 0.0
        %3041 = vmatprep.subr.mxu0 0.0
        %3042 = vmatpush2.msra.mxu0 0.0
        %3043 = vmatprep.subr.mxu0 0.0
        %3044 = vmatpush2.msra.mxu0 0.0
        %3045 = vmatprep.subr.mxu0 0.0
        %3046 = vmatpush2.msra.mxu0 0.0
        %3047 = vmatprep.subr.mxu0 0.0
        %3048 = vmatpush2.msra.mxu0 0.0
        %3049 = vmatprep.subr.mxu0 0.0
        %3050 = vmatpush2.msra.mxu0 0.0
        %3051 = vmatprep.mubr.f32.mxu0 0.0
        %3052 = vmatmul.mubr.f32.gmra.mxu0 %v2977
        %v3053 = vpop.f32.mrf.mxu0
        %v3054 = vadd.f32 0.0, %v3053
        %v3055 = vpop.f32.mrf.mxu0
        %3056 = vmatprep.mubr.f32.mxu0 0.0
        %3057 = vmatmul.mubr.f32.gmra.mxu0 %v2980
        %v3058 = vpop.f32.mrf.mxu0
        %v3059 = vadd.f32 0.0, %v3058
        %v3060 = vpop.f32.mrf.mxu0
        %3061 = vmatprep.mubr.f32.mxu0 0.0
        %3062 = vmatmul.mubr.f32.gmra.mxu0 %v2983
        %v3063 = vpop.f32.mrf.mxu0
        %v3064 = vadd.f32 0.0, %v3063
        %v3065 = vpop.f32.mrf.mxu0
        %3066 = vdwg.mxu0
        %3067 = vrot.lane.b32.xlu0 %v2816, 120
        %v3068 = vpop.permute.xlu0 %3067
        %3069 = vrot.lane.b32.xlu0 %v2821, 120
        %v3070 = vpop.permute.xlu0 %3069
        %3071 = vrot.lane.b32.xlu0 %v2826, 120
        %v3072 = vpop.permute.xlu0 %3071
        %3073 = vrot.lane.b32.xlu0 %v2816, 88
        %v3074 = vpop.permute.xlu0 %3073
        %3075 = vrot.lane.b32.xlu0 %v2821, 88
        %v3076 = vpop.permute.xlu0 %3075
        %3077 = vrot.lane.b32.xlu0 %v2826, 88
        %v3078 = vpop.permute.xlu0 %3077
        %v3079 = vsel %vm1065, %v3068, 0
        %v3081 = vsel %vm1065, %v3070, 0
        %v3083 = vsel %vm1065, %v3072, 0
        %v3085 = vsel %vm1065, %v3074, 0
        %v3087 = vsel %vm1065, %v3076, 0
        %v3089 = vsel %vm1065, %v3078, 0
        %3091 = vmatprep.subr.mxu0 0.0
        %3092 = vmatpush1.xpose.msra.mxu0 0.0
        %3093 = vmatprep.subr.mxu0 0.0
        %3094 = vmatpush1.xpose.msra.mxu0 0.0
        %3095 = vmatprep.subr.mxu0 0.0
        %3096 = vmatpush1.xpose.msra.mxu0 0.0
        %3097 = vmatprep.subr.mxu0 0.0
        %3098 = vmatpush1.xpose.msra.mxu0 0.0
        %3099 = vmatprep.subr.mxu0 0.0
        %3100 = vmatpush1.xpose.msra.mxu0 0.0
        %3101 = vmatprep.subr.mxu0 0.0
        %3102 = vmatpush1.xpose.msra.mxu0 0.0
        %3103 = vmatprep.subr.mxu0 0.0
        %3104 = vmatpush1.xpose.msra.mxu0 0.0
        %3105 = vmatprep.subr.mxu0 0.0
        %3106 = vmatpush1.xpose.msra.mxu0 0.0
        %3107 = vmatprep.subr.mxu0 0.0
        %3108 = vmatpush1.xpose.msra.mxu0 0.0
        %3109 = vmatprep.subr.mxu0 0.0
        %3110 = vmatpush1.xpose.msra.mxu0 0.0
        %3111 = vmatprep.subr.mxu0 0.0
        %3112 = vmatpush1.xpose.msra.mxu0 0.0
        %3113 = vmatprep.subr.mxu0 0.0
        %3114 = vmatpush1.xpose.msra.mxu0 0.0
        %3115 = vmatprep.subr.mxu0 0.0
        %3116 = vmatpush1.xpose.msra.mxu0 0.0
        %3117 = vmatprep.subr.mxu0 0.0
        %3118 = vmatpush1.xpose.msra.mxu0 %v3089
        %3119 = vmatprep.subr.mxu0 0.0
        %3120 = vmatpush1.xpose.msra.mxu0 %v3087
        %3121 = vmatprep.subr.mxu0 0.0
        %3122 = vmatpush1.xpose.msra.mxu0 %v3085
        %3123 = vmatprep.subr.mxu0 0.0
        %3124 = vmatpush2.xpose.msra.mxu0 0.0
        %3125 = vmatprep.subr.mxu0 0.0
        %3126 = vmatpush2.xpose.msra.mxu0 0.0
        %3127 = vmatprep.subr.mxu0 0.0
        %3128 = vmatpush2.xpose.msra.mxu0 0.0
        %3129 = vmatprep.subr.mxu0 0.0
        %3130 = vmatpush2.xpose.msra.mxu0 0.0
        %3131 = vmatprep.subr.mxu0 0.0
        %3132 = vmatpush2.xpose.msra.mxu0 0.0
        %3133 = vmatprep.subr.mxu0 0.0
        %3134 = vmatpush2.xpose.msra.mxu0 0.0
        %3135 = vmatprep.subr.mxu0 0.0
        %3136 = vmatpush2.xpose.msra.mxu0 0.0
        %3137 = vmatprep.subr.mxu0 0.0
        %3138 = vmatpush2.xpose.msra.mxu0 0.0
        %3139 = vmatprep.subr.mxu0 0.0
        %3140 = vmatpush2.xpose.msra.mxu0 0.0
        %3141 = vmatprep.subr.mxu0 0.0
        %3142 = vmatpush2.xpose.msra.mxu0 0.0
        %3143 = vmatprep.subr.mxu0 0.0
        %3144 = vmatpush2.xpose.msra.mxu0 0.0
        %3145 = vmatprep.subr.mxu0 0.0
        %3146 = vmatpush2.xpose.msra.mxu0 0.0
        %3147 = vmatprep.subr.mxu0 0.0
        %3148 = vmatpush2.xpose.msra.mxu0 0.0
        %3149 = vmatprep.subr.mxu0 0.0
        %3150 = vmatpush2.xpose.msra.mxu0 0.0
        %3151 = vmatprep.subr.mxu0 0.0
        %3152 = vmatpush2.xpose.msra.mxu0 0.0
        %3153 = vmatprep.subr.mxu0 0.0
        %3154 = vmatpush2.xpose.msra.mxu0 0.0
        %3155 = vmatprep.mubr.f32.mxu0 0.0
        %3156 = vmatmul.mubr.f32.gmra.mxu0 %v3079
        %v3157 = vpop.f32.mrf.mxu0
        %v3158 = vadd.f32 0.0, %v3157
        %v3159 = vpop.f32.mrf.mxu0
        %3160 = vmatprep.mubr.f32.mxu0 0.0
        %3161 = vmatmul.mubr.f32.gmra.mxu0 %v3081
        %v3162 = vpop.f32.mrf.mxu0
        %v3163 = vadd.f32 0.0, %v3162
        %v3164 = vpop.f32.mrf.mxu0
        %3165 = vmatprep.mubr.f32.mxu0 0.0
        %3166 = vmatmul.mubr.f32.gmra.mxu0 %v3083
        %v3167 = vpop.f32.mrf.mxu0
        %v3168 = vadd.f32 0.0, %v3167
        %v3169 = vpop.f32.mrf.mxu0
        %3170 = vdwg.mxu0
        %v3171 = vsel %vm1158, %v3158, -inf
        %3172 = vmax.xlane.f32.xlu0 %v3171
        %v3173 = vpop.xlane.xlu0 %3172
        %v3174 = vsel %vm1158, %v3163, -inf
        %3175 = vmax.xlane.f32.xlu0 %v3174
        %v3176 = vpop.xlane.xlu0 %3175
        %v3177 = vsel %vm1165, %v3168, -inf
        %3178 = vmax.xlane.f32.xlu0 %v3177
        %v3179 = vpop.xlane.xlu0 %3178
        %v3180 = vsub.f32 %v3158, %v3173
        %v3181 = vsub.f32 %v3163, %v3176
        %v3182 = vsub.f32 %v3168, %v3179
        %v3183 = vmul.f32 %v3180, 1.442695
        %v3184 = vpow.pop %v3183
        %v3185 = vmul.f32 %v3181, 1.442695
        %v3186 = vpow.pop %v3185
        %v3187 = vmul.f32 %v3182, 1.442695
        %v3188 = vpow.pop %v3187
        %v3189 = vsel %vm1158, %v3184, 0.0
        %3190 = vadd.xlane.f32.xlu0 %v3189
        %v3191 = vpop.xlane.xlu0 %3190
        %v3192 = vsel %vm1158, %v3186, 0.0
        %3193 = vadd.xlane.f32.xlu0 %v3192
        %v3194 = vpop.xlane.xlu0 %3193
        %v3195 = vsel %vm1165, %v3188, 0.0
        %3196 = vadd.xlane.f32.xlu0 %v3195
        %v3197 = vpop.xlane.xlu0 %3196
        %v3198 = vrcp.pop %v3191
        %v3199 = vrcp.pop %v3194
        %v3200 = vrcp.pop %v3197
        %v3201 = vmul.f32 %v3184, %v3198
        %v3202 = vmul.f32 %v3186, %v3199
        %v3203 = vmul.f32 %v3188, %v3200
        %3204 = vrot.lane.b32.xlu0 %v2816, 56
        %v3205 = vpop.permute.xlu0 %3204
        %3206 = vrot.lane.b32.xlu0 %v2821, 56
        %v3207 = vpop.permute.xlu0 %3206
        %3208 = vrot.lane.b32.xlu0 %v2826, 56
        %v3209 = vpop.permute.xlu0 %3208
        %v3213 = vsel %vm1158, %v3201, 0
        %v3216 = vsel %vm1158, %v3202, 0
        %v3219 = vsel %vm1158, %v3203, 0
        %v3221 = vsel %vm1210, %v3209, 0
        %3223 = vmatprep.subr.mxu0 0.0
        %3224 = vmatpush1.msra.mxu0 0.0
        %3225 = vmatprep.subr.mxu0 0.0
        %3226 = vmatpush1.msra.mxu0 0.0
        %3227 = vmatprep.subr.mxu0 0.0
        %3228 = vmatpush1.msra.mxu0 0.0
        %3229 = vmatprep.subr.mxu0 0.0
        %3230 = vmatpush1.msra.mxu0 0.0
        %3231 = vmatprep.subr.mxu0 0.0
        %3232 = vmatpush1.msra.mxu0 0.0
        %3233 = vmatprep.subr.mxu0 0.0
        %3234 = vmatpush1.msra.mxu0 0.0
        %3235 = vmatprep.subr.mxu0 0.0
        %3236 = vmatpush1.msra.mxu0 0.0
        %3237 = vmatprep.subr.mxu0 0.0
        %3238 = vmatpush1.msra.mxu0 0.0
        %3239 = vmatprep.subr.mxu0 0.0
        %3240 = vmatpush1.msra.mxu0 0.0
        %3241 = vmatprep.subr.mxu0 0.0
        %3242 = vmatpush1.msra.mxu0 0.0
        %3243 = vmatprep.subr.mxu0 0.0
        %3244 = vmatpush1.msra.mxu0 0.0
        %3245 = vmatprep.subr.mxu0 0.0
        %3246 = vmatpush1.msra.mxu0 0.0
        %3247 = vmatprep.subr.mxu0 0.0
        %3248 = vmatpush1.msra.mxu0 0.0
        %3249 = vmatprep.subr.mxu0 0.0
        %3250 = vmatpush1.msra.mxu0 %v3221
        %3251 = vmatprep.subr.mxu0 0.0
        %3252 = vmatpush1.msra.mxu0 %v3207
        %3253 = vmatprep.subr.mxu0 0.0
        %3254 = vmatpush1.msra.mxu0 %v3205
        %3255 = vmatprep.subr.mxu0 0.0
        %3256 = vmatpush2.msra.mxu0 0.0
        %3257 = vmatprep.subr.mxu0 0.0
        %3258 = vmatpush2.msra.mxu0 0.0
        %3259 = vmatprep.subr.mxu0 0.0
        %3260 = vmatpush2.msra.mxu0 0.0
        %3261 = vmatprep.subr.mxu0 0.0
        %3262 = vmatpush2.msra.mxu0 0.0
        %3263 = vmatprep.subr.mxu0 0.0
        %3264 = vmatpush2.msra.mxu0 0.0
        %3265 = vmatprep.subr.mxu0 0.0
        %3266 = vmatpush2.msra.mxu0 0.0
        %3267 = vmatprep.subr.mxu0 0.0
        %3268 = vmatpush2.msra.mxu0 0.0
        %3269 = vmatprep.subr.mxu0 0.0
        %3270 = vmatpush2.msra.mxu0 0.0
        %3271 = vmatprep.subr.mxu0 0.0
        %3272 = vmatpush2.msra.mxu0 0.0
        %3273 = vmatprep.subr.mxu0 0.0
        %3274 = vmatpush2.msra.mxu0 0.0
        %3275 = vmatprep.subr.mxu0 0.0
        %3276 = vmatpush2.msra.mxu0 0.0
        %3277 = vmatprep.subr.mxu0 0.0
        %3278 = vmatpush2.msra.mxu0 0.0
        %3279 = vmatprep.subr.mxu0 0.0
        %3280 = vmatpush2.msra.mxu0 0.0
        %3281 = vmatprep.subr.mxu0 0.0
        %3282 = vmatpush2.msra.mxu0 0.0
        %3283 = vmatprep.subr.mxu0 0.0
        %3284 = vmatpush2.msra.mxu0 0.0
        %3285 = vmatprep.subr.mxu0 0.0
        %3286 = vmatpush2.msra.mxu0 0.0
        %3287 = vmatprep.mubr.f32.mxu0 0.0
        %3288 = vmatmul.mubr.f32.gmra.mxu0 %v3213
        %v3289 = vpop.f32.mrf.mxu0
        %v3290 = vadd.f32 0.0, %v3289
        %v3291 = vpop.f32.mrf.mxu0
        %3292 = vmatprep.mubr.f32.mxu0 0.0
        %3293 = vmatmul.mubr.f32.gmra.mxu0 %v3216
        %v3294 = vpop.f32.mrf.mxu0
        %v3295 = vadd.f32 0.0, %v3294
        %v3296 = vpop.f32.mrf.mxu0
        %3297 = vmatprep.mubr.f32.mxu0 0.0
        %3298 = vmatmul.mubr.f32.gmra.mxu0 %v3219
        %v3299 = vpop.f32.mrf.mxu0
        %v3300 = vadd.f32 0.0, %v3299
        %v3301 = vpop.f32.mrf.mxu0
        %3302 = vdwg.mxu0
        %v3304 = vsel %vm1065, %v3290, 0
        %v3307 = vsel %vm1065, %v3295, 0
        %v3310 = vsel %vm1065, %v3300, 0
        %3312 = vmatprep.subr.mxu0 0.0
        %3313 = vmatpush1.msra.mxu0 0.0
        %3314 = vmatprep.subr.mxu0 0.0
        %3315 = vmatpush1.msra.mxu0 0.0
        %3316 = vmatprep.subr.mxu0 0.0
        %3317 = vmatpush1.msra.mxu0 0.0
        %3318 = vmatprep.subr.mxu0 0.0
        %3319 = vmatpush1.msra.mxu0 0.0
        %3320 = vmatprep.subr.mxu0 0.0
        %3321 = vmatpush1.msra.mxu0 0.0
        %3322 = vmatprep.subr.mxu0 0.0
        %3323 = vmatpush1.msra.mxu0 0.0
        %3324 = vmatprep.subr.mxu0 0.0
        %3325 = vmatpush1.msra.mxu0 0.0
        %3326 = vmatprep.subr.mxu0 0.0
        %3327 = vmatpush1.msra.mxu0 0.0
        %3328 = vmatprep.subr.mxu0 0.0
        %3329 = vmatpush1.msra.mxu0 0.0
        %3330 = vmatprep.subr.mxu0 0.0
        %3331 = vmatpush1.msra.mxu0 0.0
        %3332 = vmatprep.subr.mxu0 0.0
        %3333 = vmatpush1.msra.mxu0 0.0
        %3334 = vmatprep.subr.mxu0 0.0
        %3335 = vmatpush1.msra.mxu0 0.0
        %3336 = vmatprep.subr.mxu0 0.0
        %3337 = vmatpush1.msra.mxu0 0.0
        %3338 = vmatprep.subr.mxu0 0.0
        %3339 = vmatpush1.msra.mxu0 0.0
        %3340 = vmatprep.subr.mxu0 0.0
        %3341 = vmatpush1.msra.mxu0 0.0
        %3342 = vmatprep.subr.mxu0 0.0
        %3343 = vmatpush1.msra.mxu0 %v2831
        %3344 = vmatprep.subr.mxu0 0.0
        %3345 = vmatpush2.msra.mxu0 0.0
        %3346 = vmatprep.subr.mxu0 0.0
        %3347 = vmatpush2.msra.mxu0 0.0
        %3348 = vmatprep.subr.mxu0 0.0
        %3349 = vmatpush2.msra.mxu0 0.0
        %3350 = vmatprep.subr.mxu0 0.0
        %3351 = vmatpush2.msra.mxu0 0.0
        %3352 = vmatprep.subr.mxu0 0.0
        %3353 = vmatpush2.msra.mxu0 0.0
        %3354 = vmatprep.subr.mxu0 0.0
        %3355 = vmatpush2.msra.mxu0 0.0
        %3356 = vmatprep.subr.mxu0 0.0
        %3357 = vmatpush2.msra.mxu0 0.0
        %3358 = vmatprep.subr.mxu0 0.0
        %3359 = vmatpush2.msra.mxu0 0.0
        %3360 = vmatprep.subr.mxu0 0.0
        %3361 = vmatpush2.msra.mxu0 0.0
        %3362 = vmatprep.subr.mxu0 0.0
        %3363 = vmatpush2.msra.mxu0 0.0
        %3364 = vmatprep.subr.mxu0 0.0
        %3365 = vmatpush2.msra.mxu0 0.0
        %3366 = vmatprep.subr.mxu0 0.0
        %3367 = vmatpush2.msra.mxu0 0.0
        %3368 = vmatprep.subr.mxu0 0.0
        %3369 = vmatpush2.msra.mxu0 0.0
        %3370 = vmatprep.subr.mxu0 0.0
        %3371 = vmatpush2.msra.mxu0 0.0
        %3372 = vmatprep.subr.mxu0 0.0
        %3373 = vmatpush2.msra.mxu0 0.0
        %3374 = vmatprep.subr.mxu0 0.0
        %3375 = vmatpush2.msra.mxu0 0.0
        %3376 = vmatprep.mubr.f32.mxu0 0.0
        %3377 = vmatmul.mubr.f32.gmra.mxu0 %v3304
        %v3378 = vpop.f32.mrf.mxu0
        %v3379 = vadd.f32 0.0, %v3378
        %v3380 = vpop.f32.mrf.mxu0
        %3381 = vmatprep.mubr.f32.mxu0 0.0
        %3382 = vmatmul.mubr.f32.gmra.mxu0 %v3307
        %v3383 = vpop.f32.mrf.mxu0
        %v3384 = vadd.f32 0.0, %v3383
        %v3385 = vpop.f32.mrf.mxu0
        %3386 = vmatprep.mubr.f32.mxu0 0.0
        %3387 = vmatmul.mubr.f32.gmra.mxu0 %v3310
        %v3388 = vpop.f32.mrf.mxu0
        %v3389 = vadd.f32 0.0, %v3388
        %v3390 = vpop.f32.mrf.mxu0
        %3391 = vdwg.mxu0
        %v3393 = vsel %vm1065, %v3054, 0
        %v3396 = vsel %vm1065, %v3059, 0
        %v3399 = vsel %vm1065, %v3064, 0
        %3401 = vmatprep.subr.mxu0 0.0
        %3402 = vmatpush1.msra.mxu0 0.0
        %3403 = vmatprep.subr.mxu0 0.0
        %3404 = vmatpush1.msra.mxu0 0.0
        %3405 = vmatprep.subr.mxu0 0.0
        %3406 = vmatpush1.msra.mxu0 0.0
        %3407 = vmatprep.subr.mxu0 0.0
        %3408 = vmatpush1.msra.mxu0 0.0
        %3409 = vmatprep.subr.mxu0 0.0
        %3410 = vmatpush1.msra.mxu0 0.0
        %3411 = vmatprep.subr.mxu0 0.0
        %3412 = vmatpush1.msra.mxu0 0.0
        %3413 = vmatprep.subr.mxu0 0.0
        %3414 = vmatpush1.msra.mxu0 0.0
        %3415 = vmatprep.subr.mxu0 0.0
        %3416 = vmatpush1.msra.mxu0 0.0
        %3417 = vmatprep.subr.mxu0 0.0
        %3418 = vmatpush1.msra.mxu0 0.0
        %3419 = vmatprep.subr.mxu0 0.0
        %3420 = vmatpush1.msra.mxu0 0.0
        %3421 = vmatprep.subr.mxu0 0.0
        %3422 = vmatpush1.msra.mxu0 0.0
        %3423 = vmatprep.subr.mxu0 0.0
        %3424 = vmatpush1.msra.mxu0 0.0
        %3425 = vmatprep.subr.mxu0 0.0
        %3426 = vmatpush1.msra.mxu0 0.0
        %3427 = vmatprep.subr.mxu0 0.0
        %3428 = vmatpush1.msra.mxu0 0.0
        %3429 = vmatprep.subr.mxu0 0.0
        %3430 = vmatpush1.msra.mxu0 0.0
        %3431 = vmatprep.subr.mxu0 0.0
        %3432 = vmatpush1.msra.mxu0 %v2830
        %3433 = vmatprep.subr.mxu0 0.0
        %3434 = vmatpush2.msra.mxu0 0.0
        %3435 = vmatprep.subr.mxu0 0.0
        %3436 = vmatpush2.msra.mxu0 0.0
        %3437 = vmatprep.subr.mxu0 0.0
        %3438 = vmatpush2.msra.mxu0 0.0
        %3439 = vmatprep.subr.mxu0 0.0
        %3440 = vmatpush2.msra.mxu0 0.0
        %3441 = vmatprep.subr.mxu0 0.0
        %3442 = vmatpush2.msra.mxu0 0.0
        %3443 = vmatprep.subr.mxu0 0.0
        %3444 = vmatpush2.msra.mxu0 0.0
        %3445 = vmatprep.subr.mxu0 0.0
        %3446 = vmatpush2.msra.mxu0 0.0
        %3447 = vmatprep.subr.mxu0 0.0
        %3448 = vmatpush2.msra.mxu0 0.0
        %3449 = vmatprep.subr.mxu0 0.0
        %3450 = vmatpush2.msra.mxu0 0.0
        %3451 = vmatprep.subr.mxu0 0.0
        %3452 = vmatpush2.msra.mxu0 0.0
        %3453 = vmatprep.subr.mxu0 0.0
        %3454 = vmatpush2.msra.mxu0 0.0
        %3455 = vmatprep.subr.mxu0 0.0
        %3456 = vmatpush2.msra.mxu0 0.0
        %3457 = vmatprep.subr.mxu0 0.0
        %3458 = vmatpush2.msra.mxu0 0.0
        %3459 = vmatprep.subr.mxu0 0.0
        %3460 = vmatpush2.msra.mxu0 0.0
        %3461 = vmatprep.subr.mxu0 0.0
        %3462 = vmatpush2.msra.mxu0 0.0
        %3463 = vmatprep.subr.mxu0 0.0
        %3464 = vmatpush2.msra.mxu0 0.0
        %3465 = vmatprep.mubr.f32.mxu0 0.0
        %3466 = vmatmul.mubr.f32.gmra.mxu0 %v3393
        %v3467 = vpop.f32.mrf.mxu0
        %v3468 = vadd.f32 %v3379, %v3467
        %v3469 = vpop.f32.mrf.mxu0
        %3470 = vmatprep.mubr.f32.mxu0 0.0
        %3471 = vmatmul.mubr.f32.gmra.mxu0 %v3396
        %v3472 = vpop.f32.mrf.mxu0
        %v3473 = vadd.f32 %v3384, %v3472
        %v3474 = vpop.f32.mrf.mxu0
        %3475 = vmatprep.mubr.f32.mxu0 0.0
        %3476 = vmatmul.mubr.f32.gmra.mxu0 %v3399
        %v3477 = vpop.f32.mrf.mxu0
        %v3478 = vadd.f32 %v3389, %v3477
        %v3479 = vpop.f32.mrf.mxu0
        %3480 = vdwg.mxu0
        %3481 = vrot.lane.b32.xlu0 %v2816, 112
        %v3482 = vpop.permute.xlu0 %3481
        %3483 = vrot.lane.b32.xlu0 %v2821, 112
        %v3484 = vpop.permute.xlu0 %3483
        %3485 = vrot.lane.b32.xlu0 %v2826, 112
        %v3486 = vpop.permute.xlu0 %3485
        %3487 = vrot.lane.b32.xlu0 %v2816, 80
        %v3488 = vpop.permute.xlu0 %3487
        %3489 = vrot.lane.b32.xlu0 %v2821, 80
        %v3490 = vpop.permute.xlu0 %3489
        %3491 = vrot.lane.b32.xlu0 %v2826, 80
        %v3492 = vpop.permute.xlu0 %3491
        %v3493 = vsel %vm1065, %v3482, 0
        %v3495 = vsel %vm1065, %v3484, 0
        %v3497 = vsel %vm1065, %v3486, 0
        %v3499 = vsel %vm1065, %v3488, 0
        %v3501 = vsel %vm1065, %v3490, 0
        %v3503 = vsel %vm1065, %v3492, 0
        %3505 = vmatprep.subr.mxu0 0.0
        %3506 = vmatpush1.xpose.msra.mxu0 0.0
        %3507 = vmatprep.subr.mxu0 0.0
        %3508 = vmatpush1.xpose.msra.mxu0 0.0
        %3509 = vmatprep.subr.mxu0 0.0
        %3510 = vmatpush1.xpose.msra.mxu0 0.0
        %3511 = vmatprep.subr.mxu0 0.0
        %3512 = vmatpush1.xpose.msra.mxu0 0.0
        %3513 = vmatprep.subr.mxu0 0.0
        %3514 = vmatpush1.xpose.msra.mxu0 0.0
        %3515 = vmatprep.subr.mxu0 0.0
        %3516 = vmatpush1.xpose.msra.mxu0 0.0
        %3517 = vmatprep.subr.mxu0 0.0
        %3518 = vmatpush1.xpose.msra.mxu0 0.0
        %3519 = vmatprep.subr.mxu0 0.0
        %3520 = vmatpush1.xpose.msra.mxu0 0.0
        %3521 = vmatprep.subr.mxu0 0.0
        %3522 = vmatpush1.xpose.msra.mxu0 0.0
        %3523 = vmatprep.subr.mxu0 0.0
        %3524 = vmatpush1.xpose.msra.mxu0 0.0
        %3525 = vmatprep.subr.mxu0 0.0
        %3526 = vmatpush1.xpose.msra.mxu0 0.0
        %3527 = vmatprep.subr.mxu0 0.0
        %3528 = vmatpush1.xpose.msra.mxu0 0.0
        %3529 = vmatprep.subr.mxu0 0.0
        %3530 = vmatpush1.xpose.msra.mxu0 0.0
        %3531 = vmatprep.subr.mxu0 0.0
        %3532 = vmatpush1.xpose.msra.mxu0 %v3503
        %3533 = vmatprep.subr.mxu0 0.0
        %3534 = vmatpush1.xpose.msra.mxu0 %v3501
        %3535 = vmatprep.subr.mxu0 0.0
        %3536 = vmatpush1.xpose.msra.mxu0 %v3499
        %3537 = vmatprep.subr.mxu0 0.0
        %3538 = vmatpush2.xpose.msra.mxu0 0.0
        %3539 = vmatprep.subr.mxu0 0.0
        %3540 = vmatpush2.xpose.msra.mxu0 0.0
        %3541 = vmatprep.subr.mxu0 0.0
        %3542 = vmatpush2.xpose.msra.mxu0 0.0
        %3543 = vmatprep.subr.mxu0 0.0
        %3544 = vmatpush2.xpose.msra.mxu0 0.0
        %3545 = vmatprep.subr.mxu0 0.0
        %3546 = vmatpush2.xpose.msra.mxu0 0.0
        %3547 = vmatprep.subr.mxu0 0.0
        %3548 = vmatpush2.xpose.msra.mxu0 0.0
        %3549 = vmatprep.subr.mxu0 0.0
        %3550 = vmatpush2.xpose.msra.mxu0 0.0
        %3551 = vmatprep.subr.mxu0 0.0
        %3552 = vmatpush2.xpose.msra.mxu0 0.0
        %3553 = vmatprep.subr.mxu0 0.0
        %3554 = vmatpush2.xpose.msra.mxu0 0.0
        %3555 = vmatprep.subr.mxu0 0.0
        %3556 = vmatpush2.xpose.msra.mxu0 0.0
        %3557 = vmatprep.subr.mxu0 0.0
        %3558 = vmatpush2.xpose.msra.mxu0 0.0
        %3559 = vmatprep.subr.mxu0 0.0
        %3560 = vmatpush2.xpose.msra.mxu0 0.0
        %3561 = vmatprep.subr.mxu0 0.0
        %3562 = vmatpush2.xpose.msra.mxu0 0.0
        %3563 = vmatprep.subr.mxu0 0.0
        %3564 = vmatpush2.xpose.msra.mxu0 0.0
        %3565 = vmatprep.subr.mxu0 0.0
        %3566 = vmatpush2.xpose.msra.mxu0 0.0
        %3567 = vmatprep.subr.mxu0 0.0
        %3568 = vmatpush2.xpose.msra.mxu0 0.0
        %3569 = vmatprep.mubr.f32.mxu0 0.0
        %3570 = vmatmul.mubr.f32.gmra.mxu0 %v3493
        %v3571 = vpop.f32.mrf.mxu0
        %v3572 = vadd.f32 0.0, %v3571
        %v3573 = vpop.f32.mrf.mxu0
        %3574 = vmatprep.mubr.f32.mxu0 0.0
        %3575 = vmatmul.mubr.f32.gmra.mxu0 %v3495
        %v3576 = vpop.f32.mrf.mxu0
        %v3577 = vadd.f32 0.0, %v3576
        %v3578 = vpop.f32.mrf.mxu0
        %3579 = vmatprep.mubr.f32.mxu0 0.0
        %3580 = vmatmul.mubr.f32.gmra.mxu0 %v3497
        %v3581 = vpop.f32.mrf.mxu0
        %v3582 = vadd.f32 0.0, %v3581
        %v3583 = vpop.f32.mrf.mxu0
        %3584 = vdwg.mxu0
        %v3585 = vsel %vm1158, %v3572, -inf
        %3586 = vmax.xlane.f32.xlu0 %v3585
        %v3587 = vpop.xlane.xlu0 %3586
        %v3588 = vsel %vm1158, %v3577, -inf
        %3589 = vmax.xlane.f32.xlu0 %v3588
        %v3590 = vpop.xlane.xlu0 %3589
        %v3591 = vsel %vm1165, %v3582, -inf
        %3592 = vmax.xlane.f32.xlu0 %v3591
        %v3593 = vpop.xlane.xlu0 %3592
        %v3594 = vsub.f32 %v3572, %v3587
        %v3595 = vsub.f32 %v3577, %v3590
        %v3596 = vsub.f32 %v3582, %v3593
        %v3597 = vmul.f32 %v3594, 1.442695
        %v3598 = vpow.pop %v3597
        %v3599 = vmul.f32 %v3595, 1.442695
        %v3600 = vpow.pop %v3599
        %v3601 = vmul.f32 %v3596, 1.442695
        %v3602 = vpow.pop %v3601
        %v3603 = vsel %vm1158, %v3598, 0.0
        %3604 = vadd.xlane.f32.xlu0 %v3603
        %v3605 = vpop.xlane.xlu0 %3604
        %v3606 = vsel %vm1158, %v3600, 0.0
        %3607 = vadd.xlane.f32.xlu0 %v3606
        %v3608 = vpop.xlane.xlu0 %3607
        %v3609 = vsel %vm1165, %v3602, 0.0
        %3610 = vadd.xlane.f32.xlu0 %v3609
        %v3611 = vpop.xlane.xlu0 %3610
        %v3612 = vrcp.pop %v3605
        %v3613 = vrcp.pop %v3608
        %v3614 = vrcp.pop %v3611
        %v3615 = vmul.f32 %v3598, %v3612
        %v3616 = vmul.f32 %v3600, %v3613
        %v3617 = vmul.f32 %v3602, %v3614
        %3618 = vrot.lane.b32.xlu0 %v2816, 48
        %v3619 = vpop.permute.xlu0 %3618
        %3620 = vrot.lane.b32.xlu0 %v2821, 48
        %v3621 = vpop.permute.xlu0 %3620
        %3622 = vrot.lane.b32.xlu0 %v2826, 48
        %v3623 = vpop.permute.xlu0 %3622
        %v3627 = vsel %vm1158, %v3615, 0
        %v3630 = vsel %vm1158, %v3616, 0
        %v3633 = vsel %vm1158, %v3617, 0
        %v3635 = vsel %vm1210, %v3623, 0
        %3637 = vmatprep.subr.mxu0 0.0
        %3638 = vmatpush1.msra.mxu0 0.0
        %3639 = vmatprep.subr.mxu0 0.0
        %3640 = vmatpush1.msra.mxu0 0.0
        %3641 = vmatprep.subr.mxu0 0.0
        %3642 = vmatpush1.msra.mxu0 0.0
        %3643 = vmatprep.subr.mxu0 0.0
        %3644 = vmatpush1.msra.mxu0 0.0
        %3645 = vmatprep.subr.mxu0 0.0
        %3646 = vmatpush1.msra.mxu0 0.0
        %3647 = vmatprep.subr.mxu0 0.0
        %3648 = vmatpush1.msra.mxu0 0.0
        %3649 = vmatprep.subr.mxu0 0.0
        %3650 = vmatpush1.msra.mxu0 0.0
        %3651 = vmatprep.subr.mxu0 0.0
        %3652 = vmatpush1.msra.mxu0 0.0
        %3653 = vmatprep.subr.mxu0 0.0
        %3654 = vmatpush1.msra.mxu0 0.0
        %3655 = vmatprep.subr.mxu0 0.0
        %3656 = vmatpush1.msra.mxu0 0.0
        %3657 = vmatprep.subr.mxu0 0.0
        %3658 = vmatpush1.msra.mxu0 0.0
        %3659 = vmatprep.subr.mxu0 0.0
        %3660 = vmatpush1.msra.mxu0 0.0
        %3661 = vmatprep.subr.mxu0 0.0
        %3662 = vmatpush1.msra.mxu0 0.0
        %3663 = vmatprep.subr.mxu0 0.0
        %3664 = vmatpush1.msra.mxu0 %v3635
        %3665 = vmatprep.subr.mxu0 0.0
        %3666 = vmatpush1.msra.mxu0 %v3621
        %3667 = vmatprep.subr.mxu0 0.0
        %3668 = vmatpush1.msra.mxu0 %v3619
        %3669 = vmatprep.subr.mxu0 0.0
        %3670 = vmatpush2.msra.mxu0 0.0
        %3671 = vmatprep.subr.mxu0 0.0
        %3672 = vmatpush2.msra.mxu0 0.0
        %3673 = vmatprep.subr.mxu0 0.0
        %3674 = vmatpush2.msra.mxu0 0.0
        %3675 = vmatprep.subr.mxu0 0.0
        %3676 = vmatpush2.msra.mxu0 0.0
        %3677 = vmatprep.subr.mxu0 0.0
        %3678 = vmatpush2.msra.mxu0 0.0
        %3679 = vmatprep.subr.mxu0 0.0
        %3680 = vmatpush2.msra.mxu0 0.0
        %3681 = vmatprep.subr.mxu0 0.0
        %3682 = vmatpush2.msra.mxu0 0.0
        %3683 = vmatprep.subr.mxu0 0.0
        %3684 = vmatpush2.msra.mxu0 0.0
        %3685 = vmatprep.subr.mxu0 0.0
        %3686 = vmatpush2.msra.mxu0 0.0
        %3687 = vmatprep.subr.mxu0 0.0
        %3688 = vmatpush2.msra.mxu0 0.0
        %3689 = vmatprep.subr.mxu0 0.0
        %3690 = vmatpush2.msra.mxu0 0.0
        %3691 = vmatprep.subr.mxu0 0.0
        %3692 = vmatpush2.msra.mxu0 0.0
        %3693 = vmatprep.subr.mxu0 0.0
        %3694 = vmatpush2.msra.mxu0 0.0
        %3695 = vmatprep.subr.mxu0 0.0
        %3696 = vmatpush2.msra.mxu0 0.0
        %3697 = vmatprep.subr.mxu0 0.0
        %3698 = vmatpush2.msra.mxu0 0.0
        %3699 = vmatprep.subr.mxu0 0.0
        %3700 = vmatpush2.msra.mxu0 0.0
        %3701 = vmatprep.mubr.f32.mxu0 0.0
        %3702 = vmatmul.mubr.f32.gmra.mxu0 %v3627
        %v3703 = vpop.f32.mrf.mxu0
        %v3704 = vadd.f32 0.0, %v3703
        %v3705 = vpop.f32.mrf.mxu0
        %3706 = vmatprep.mubr.f32.mxu0 0.0
        %3707 = vmatmul.mubr.f32.gmra.mxu0 %v3630
        %v3708 = vpop.f32.mrf.mxu0
        %v3709 = vadd.f32 0.0, %v3708
        %v3710 = vpop.f32.mrf.mxu0
        %3711 = vmatprep.mubr.f32.mxu0 0.0
        %3712 = vmatmul.mubr.f32.gmra.mxu0 %v3633
        %v3713 = vpop.f32.mrf.mxu0
        %v3714 = vadd.f32 0.0, %v3713
        %v3715 = vpop.f32.mrf.mxu0
        %3716 = vdwg.mxu0
        %v3718 = vsel %vm1065, %v3704, 0
        %v3721 = vsel %vm1065, %v3709, 0
        %v3724 = vsel %vm1065, %v3714, 0
        %3726 = vmatprep.subr.mxu0 0.0
        %3727 = vmatpush1.msra.mxu0 0.0
        %3728 = vmatprep.subr.mxu0 0.0
        %3729 = vmatpush1.msra.mxu0 0.0
        %3730 = vmatprep.subr.mxu0 0.0
        %3731 = vmatpush1.msra.mxu0 0.0
        %3732 = vmatprep.subr.mxu0 0.0
        %3733 = vmatpush1.msra.mxu0 0.0
        %3734 = vmatprep.subr.mxu0 0.0
        %3735 = vmatpush1.msra.mxu0 0.0
        %3736 = vmatprep.subr.mxu0 0.0
        %3737 = vmatpush1.msra.mxu0 0.0
        %3738 = vmatprep.subr.mxu0 0.0
        %3739 = vmatpush1.msra.mxu0 0.0
        %3740 = vmatprep.subr.mxu0 0.0
        %3741 = vmatpush1.msra.mxu0 0.0
        %3742 = vmatprep.subr.mxu0 0.0
        %3743 = vmatpush1.msra.mxu0 0.0
        %3744 = vmatprep.subr.mxu0 0.0
        %3745 = vmatpush1.msra.mxu0 0.0
        %3746 = vmatprep.subr.mxu0 0.0
        %3747 = vmatpush1.msra.mxu0 0.0
        %3748 = vmatprep.subr.mxu0 0.0
        %3749 = vmatpush1.msra.mxu0 0.0
        %3750 = vmatprep.subr.mxu0 0.0
        %3751 = vmatpush1.msra.mxu0 0.0
        %3752 = vmatprep.subr.mxu0 0.0
        %3753 = vmatpush1.msra.mxu0 0.0
        %3754 = vmatprep.subr.mxu0 0.0
        %3755 = vmatpush1.msra.mxu0 0.0
        %3756 = vmatprep.subr.mxu0 0.0
        %3757 = vmatpush1.msra.mxu0 %v2832
        %3758 = vmatprep.subr.mxu0 0.0
        %3759 = vmatpush2.msra.mxu0 0.0
        %3760 = vmatprep.subr.mxu0 0.0
        %3761 = vmatpush2.msra.mxu0 0.0
        %3762 = vmatprep.subr.mxu0 0.0
        %3763 = vmatpush2.msra.mxu0 0.0
        %3764 = vmatprep.subr.mxu0 0.0
        %3765 = vmatpush2.msra.mxu0 0.0
        %3766 = vmatprep.subr.mxu0 0.0
        %3767 = vmatpush2.msra.mxu0 0.0
        %3768 = vmatprep.subr.mxu0 0.0
        %3769 = vmatpush2.msra.mxu0 0.0
        %3770 = vmatprep.subr.mxu0 0.0
        %3771 = vmatpush2.msra.mxu0 0.0
        %3772 = vmatprep.subr.mxu0 0.0
        %3773 = vmatpush2.msra.mxu0 0.0
        %3774 = vmatprep.subr.mxu0 0.0
        %3775 = vmatpush2.msra.mxu0 0.0
        %3776 = vmatprep.subr.mxu0 0.0
        %3777 = vmatpush2.msra.mxu0 0.0
        %3778 = vmatprep.subr.mxu0 0.0
        %3779 = vmatpush2.msra.mxu0 0.0
        %3780 = vmatprep.subr.mxu0 0.0
        %3781 = vmatpush2.msra.mxu0 0.0
        %3782 = vmatprep.subr.mxu0 0.0
        %3783 = vmatpush2.msra.mxu0 0.0
        %3784 = vmatprep.subr.mxu0 0.0
        %3785 = vmatpush2.msra.mxu0 0.0
        %3786 = vmatprep.subr.mxu0 0.0
        %3787 = vmatpush2.msra.mxu0 0.0
        %3788 = vmatprep.subr.mxu0 0.0
        %3789 = vmatpush2.msra.mxu0 0.0
        %3790 = vmatprep.mubr.f32.mxu0 0.0
        %3791 = vmatmul.mubr.f32.gmra.mxu0 %v3718
        %v3792 = vpop.f32.mrf.mxu0
        %v3793 = vadd.f32 0.0, %v3792
        %v3794 = vpop.f32.mrf.mxu0
        %3795 = vmatprep.mubr.f32.mxu0 0.0
        %3796 = vmatmul.mubr.f32.gmra.mxu0 %v3721
        %v3797 = vpop.f32.mrf.mxu0
        %v3798 = vadd.f32 0.0, %v3797
        %v3799 = vpop.f32.mrf.mxu0
        %3800 = vmatprep.mubr.f32.mxu0 0.0
        %3801 = vmatmul.mubr.f32.gmra.mxu0 %v3724
        %v3802 = vpop.f32.mrf.mxu0
        %v3803 = vadd.f32 0.0, %v3802
        %v3804 = vpop.f32.mrf.mxu0
        %3805 = vdwg.mxu0
        %v3806 = vadd.f32 %v3468, %v3793
        %v3807 = vadd.f32 %v3473, %v3798
        %v3808 = vadd.f32 %v3478, %v3803
        %3809 = vrot.lane.b32.xlu0 %v2816, 104
        %v3810 = vpop.permute.xlu0 %3809
        %3811 = vrot.lane.b32.xlu0 %v2821, 104
        %v3812 = vpop.permute.xlu0 %3811
        %3813 = vrot.lane.b32.xlu0 %v2826, 104
        %v3814 = vpop.permute.xlu0 %3813
        %3815 = vrot.lane.b32.xlu0 %v2816, 72
        %v3816 = vpop.permute.xlu0 %3815
        %3817 = vrot.lane.b32.xlu0 %v2821, 72
        %v3818 = vpop.permute.xlu0 %3817
        %3819 = vrot.lane.b32.xlu0 %v2826, 72
        %v3820 = vpop.permute.xlu0 %3819
        %v3821 = vsel %vm1065, %v3810, 0
        %v3823 = vsel %vm1065, %v3812, 0
        %v3825 = vsel %vm1065, %v3814, 0
        %v3827 = vsel %vm1065, %v3816, 0
        %v3829 = vsel %vm1065, %v3818, 0
        %v3831 = vsel %vm1065, %v3820, 0
        %3833 = vmatprep.subr.mxu0 0.0
        %3834 = vmatpush1.xpose.msra.mxu0 0.0
        %3835 = vmatprep.subr.mxu0 0.0
        %3836 = vmatpush1.xpose.msra.mxu0 0.0
        %3837 = vmatprep.subr.mxu0 0.0
        %3838 = vmatpush1.xpose.msra.mxu0 0.0
        %3839 = vmatprep.subr.mxu0 0.0
        %3840 = vmatpush1.xpose.msra.mxu0 0.0
        %3841 = vmatprep.subr.mxu0 0.0
        %3842 = vmatpush1.xpose.msra.mxu0 0.0
        %3843 = vmatprep.subr.mxu0 0.0
        %3844 = vmatpush1.xpose.msra.mxu0 0.0
        %3845 = vmatprep.subr.mxu0 0.0
        %3846 = vmatpush1.xpose.msra.mxu0 0.0
        %3847 = vmatprep.subr.mxu0 0.0
        %3848 = vmatpush1.xpose.msra.mxu0 0.0
        %3849 = vmatprep.subr.mxu0 0.0
        %3850 = vmatpush1.xpose.msra.mxu0 0.0
        %3851 = vmatprep.subr.mxu0 0.0
        %3852 = vmatpush1.xpose.msra.mxu0 0.0
        %3853 = vmatprep.subr.mxu0 0.0
        %3854 = vmatpush1.xpose.msra.mxu0 0.0
        %3855 = vmatprep.subr.mxu0 0.0
        %3856 = vmatpush1.xpose.msra.mxu0 0.0
        %3857 = vmatprep.subr.mxu0 0.0
        %3858 = vmatpush1.xpose.msra.mxu0 0.0
        %3859 = vmatprep.subr.mxu0 0.0
        %3860 = vmatpush1.xpose.msra.mxu0 %v3831
        %3861 = vmatprep.subr.mxu0 0.0
        %3862 = vmatpush1.xpose.msra.mxu0 %v3829
        %3863 = vmatprep.subr.mxu0 0.0
        %3864 = vmatpush1.xpose.msra.mxu0 %v3827
        %3865 = vmatprep.subr.mxu0 0.0
        %3866 = vmatpush2.xpose.msra.mxu0 0.0
        %3867 = vmatprep.subr.mxu0 0.0
        %3868 = vmatpush2.xpose.msra.mxu0 0.0
        %3869 = vmatprep.subr.mxu0 0.0
        %3870 = vmatpush2.xpose.msra.mxu0 0.0
        %3871 = vmatprep.subr.mxu0 0.0
        %3872 = vmatpush2.xpose.msra.mxu0 0.0
        %3873 = vmatprep.subr.mxu0 0.0
        %3874 = vmatpush2.xpose.msra.mxu0 0.0
        %3875 = vmatprep.subr.mxu0 0.0
        %3876 = vmatpush2.xpose.msra.mxu0 0.0
        %3877 = vmatprep.subr.mxu0 0.0
        %3878 = vmatpush2.xpose.msra.mxu0 0.0
        %3879 = vmatprep.subr.mxu0 0.0
        %3880 = vmatpush2.xpose.msra.mxu0 0.0
        %3881 = vmatprep.subr.mxu0 0.0
        %3882 = vmatpush2.xpose.msra.mxu0 0.0
        %3883 = vmatprep.subr.mxu0 0.0
        %3884 = vmatpush2.xpose.msra.mxu0 0.0
        %3885 = vmatprep.subr.mxu0 0.0
        %3886 = vmatpush2.xpose.msra.mxu0 0.0
        %3887 = vmatprep.subr.mxu0 0.0
        %3888 = vmatpush2.xpose.msra.mxu0 0.0
        %3889 = vmatprep.subr.mxu0 0.0
        %3890 = vmatpush2.xpose.msra.mxu0 0.0
        %3891 = vmatprep.subr.mxu0 0.0
        %3892 = vmatpush2.xpose.msra.mxu0 0.0
        %3893 = vmatprep.subr.mxu0 0.0
        %3894 = vmatpush2.xpose.msra.mxu0 0.0
        %3895 = vmatprep.subr.mxu0 0.0
        %3896 = vmatpush2.xpose.msra.mxu0 0.0
        %3897 = vmatprep.mubr.f32.mxu0 0.0
        %3898 = vmatmul.mubr.f32.gmra.mxu0 %v3821
        %v3899 = vpop.f32.mrf.mxu0
        %v3900 = vadd.f32 0.0, %v3899
        %v3901 = vpop.f32.mrf.mxu0
        %3902 = vmatprep.mubr.f32.mxu0 0.0
        %3903 = vmatmul.mubr.f32.gmra.mxu0 %v3823
        %v3904 = vpop.f32.mrf.mxu0
        %v3905 = vadd.f32 0.0, %v3904
        %v3906 = vpop.f32.mrf.mxu0
        %3907 = vmatprep.mubr.f32.mxu0 0.0
        %3908 = vmatmul.mubr.f32.gmra.mxu0 %v3825
        %v3909 = vpop.f32.mrf.mxu0
        %v3910 = vadd.f32 0.0, %v3909
        %v3911 = vpop.f32.mrf.mxu0
        %3912 = vdwg.mxu0
        %v3913 = vsel %vm1158, %v3900, -inf
        %3914 = vmax.xlane.f32.xlu0 %v3913
        %v3915 = vpop.xlane.xlu0 %3914
        %v3916 = vsel %vm1158, %v3905, -inf
        %3917 = vmax.xlane.f32.xlu0 %v3916
        %v3918 = vpop.xlane.xlu0 %3917
        %v3919 = vsel %vm1165, %v3910, -inf
        %3920 = vmax.xlane.f32.xlu0 %v3919
        %v3921 = vpop.xlane.xlu0 %3920
        %v3922 = vsub.f32 %v3900, %v3915
        %v3923 = vsub.f32 %v3905, %v3918
        %v3924 = vsub.f32 %v3910, %v3921
        %v3925 = vmul.f32 %v3922, 1.442695
        %v3926 = vpow.pop %v3925
        %v3927 = vmul.f32 %v3923, 1.442695
        %v3928 = vpow.pop %v3927
        %v3929 = vmul.f32 %v3924, 1.442695
        %v3930 = vpow.pop %v3929
        %v3931 = vsel %vm1158, %v3926, 0.0
        %3932 = vadd.xlane.f32.xlu0 %v3931
        %v3933 = vpop.xlane.xlu0 %3932
        %v3934 = vsel %vm1158, %v3928, 0.0
        %3935 = vadd.xlane.f32.xlu0 %v3934
        %v3936 = vpop.xlane.xlu0 %3935
        %v3937 = vsel %vm1165, %v3930, 0.0
        %3938 = vadd.xlane.f32.xlu0 %v3937
        %v3939 = vpop.xlane.xlu0 %3938
        %v3940 = vrcp.pop %v3933
        %v3941 = vrcp.pop %v3936
        %v3942 = vrcp.pop %v3939
        %v3943 = vmul.f32 %v3926, %v3940
        %v3944 = vmul.f32 %v3928, %v3941
        %v3945 = vmul.f32 %v3930, %v3942
        %3946 = vrot.lane.b32.xlu0 %v2816, 40
        %v3947 = vpop.permute.xlu0 %3946
        %3948 = vrot.lane.b32.xlu0 %v2821, 40
        %v3949 = vpop.permute.xlu0 %3948
        %3950 = vrot.lane.b32.xlu0 %v2826, 40
        %v3951 = vpop.permute.xlu0 %3950
        %v3955 = vsel %vm1158, %v3943, 0
        %v3958 = vsel %vm1158, %v3944, 0
        %v3961 = vsel %vm1158, %v3945, 0
        %v3963 = vsel %vm1210, %v3951, 0
        %3965 = vmatprep.subr.mxu0 0.0
        %3966 = vmatpush1.msra.mxu0 0.0
        %3967 = vmatprep.subr.mxu0 0.0
        %3968 = vmatpush1.msra.mxu0 0.0
        %3969 = vmatprep.subr.mxu0 0.0
        %3970 = vmatpush1.msra.mxu0 0.0
        %3971 = vmatprep.subr.mxu0 0.0
        %3972 = vmatpush1.msra.mxu0 0.0
        %3973 = vmatprep.subr.mxu0 0.0
        %3974 = vmatpush1.msra.mxu0 0.0
        %3975 = vmatprep.subr.mxu0 0.0
        %3976 = vmatpush1.msra.mxu0 0.0
        %3977 = vmatprep.subr.mxu0 0.0
        %3978 = vmatpush1.msra.mxu0 0.0
        %3979 = vmatprep.subr.mxu0 0.0
        %3980 = vmatpush1.msra.mxu0 0.0
        %3981 = vmatprep.subr.mxu0 0.0
        %3982 = vmatpush1.msra.mxu0 0.0
        %3983 = vmatprep.subr.mxu0 0.0
        %3984 = vmatpush1.msra.mxu0 0.0
        %3985 = vmatprep.subr.mxu0 0.0
        %3986 = vmatpush1.msra.mxu0 0.0
        %3987 = vmatprep.subr.mxu0 0.0
        %3988 = vmatpush1.msra.mxu0 0.0
        %3989 = vmatprep.subr.mxu0 0.0
        %3990 = vmatpush1.msra.mxu0 0.0
        %3991 = vmatprep.subr.mxu0 0.0
        %3992 = vmatpush1.msra.mxu0 %v3963
        %3993 = vmatprep.subr.mxu0 0.0
        %3994 = vmatpush1.msra.mxu0 %v3949
        %3995 = vmatprep.subr.mxu0 0.0
        %3996 = vmatpush1.msra.mxu0 %v3947
        %3997 = vmatprep.subr.mxu0 0.0
        %3998 = vmatpush2.msra.mxu0 0.0
        %3999 = vmatprep.subr.mxu0 0.0
        %4000 = vmatpush2.msra.mxu0 0.0
        %4001 = vmatprep.subr.mxu0 0.0
        %4002 = vmatpush2.msra.mxu0 0.0
        %4003 = vmatprep.subr.mxu0 0.0
        %4004 = vmatpush2.msra.mxu0 0.0
        %4005 = vmatprep.subr.mxu0 0.0
        %4006 = vmatpush2.msra.mxu0 0.0
        %4007 = vmatprep.subr.mxu0 0.0
        %4008 = vmatpush2.msra.mxu0 0.0
        %4009 = vmatprep.subr.mxu0 0.0
        %4010 = vmatpush2.msra.mxu0 0.0
        %4011 = vmatprep.subr.mxu0 0.0
        %4012 = vmatpush2.msra.mxu0 0.0
        %4013 = vmatprep.subr.mxu0 0.0
        %4014 = vmatpush2.msra.mxu0 0.0
        %4015 = vmatprep.subr.mxu0 0.0
        %4016 = vmatpush2.msra.mxu0 0.0
        %4017 = vmatprep.subr.mxu0 0.0
        %4018 = vmatpush2.msra.mxu0 0.0
        %4019 = vmatprep.subr.mxu0 0.0
        %4020 = vmatpush2.msra.mxu0 0.0
        %4021 = vmatprep.subr.mxu0 0.0
        %4022 = vmatpush2.msra.mxu0 0.0
        %4023 = vmatprep.subr.mxu0 0.0
        %4024 = vmatpush2.msra.mxu0 0.0
        %4025 = vmatprep.subr.mxu0 0.0
        %4026 = vmatpush2.msra.mxu0 0.0
        %4027 = vmatprep.subr.mxu0 0.0
        %4028 = vmatpush2.msra.mxu0 0.0
        %4029 = vmatprep.mubr.f32.mxu0 0.0
        %4030 = vmatmul.mubr.f32.gmra.mxu0 %v3955
        %v4031 = vpop.f32.mrf.mxu0
        %v4032 = vadd.f32 0.0, %v4031
        %v4033 = vpop.f32.mrf.mxu0
        %4034 = vmatprep.mubr.f32.mxu0 0.0
        %4035 = vmatmul.mubr.f32.gmra.mxu0 %v3958
        %v4036 = vpop.f32.mrf.mxu0
        %v4037 = vadd.f32 0.0, %v4036
        %v4038 = vpop.f32.mrf.mxu0
        %4039 = vmatprep.mubr.f32.mxu0 0.0
        %4040 = vmatmul.mubr.f32.gmra.mxu0 %v3961
        %v4041 = vpop.f32.mrf.mxu0
        %v4042 = vadd.f32 0.0, %v4041
        %v4043 = vpop.f32.mrf.mxu0
        %4044 = vdwg.mxu0
        %v4046 = vsel %vm1065, %v4032, 0
        %v4049 = vsel %vm1065, %v4037, 0
        %v4052 = vsel %vm1065, %v4042, 0
        %4054 = vmatprep.subr.mxu0 0.0
        %4055 = vmatpush1.msra.mxu0 0.0
        %4056 = vmatprep.subr.mxu0 0.0
        %4057 = vmatpush1.msra.mxu0 0.0
        %4058 = vmatprep.subr.mxu0 0.0
        %4059 = vmatpush1.msra.mxu0 0.0
        %4060 = vmatprep.subr.mxu0 0.0
        %4061 = vmatpush1.msra.mxu0 0.0
        %4062 = vmatprep.subr.mxu0 0.0
        %4063 = vmatpush1.msra.mxu0 0.0
        %4064 = vmatprep.subr.mxu0 0.0
        %4065 = vmatpush1.msra.mxu0 0.0
        %4066 = vmatprep.subr.mxu0 0.0
        %4067 = vmatpush1.msra.mxu0 0.0
        %4068 = vmatprep.subr.mxu0 0.0
        %4069 = vmatpush1.msra.mxu0 0.0
        %4070 = vmatprep.subr.mxu0 0.0
        %4071 = vmatpush1.msra.mxu0 0.0
        %4072 = vmatprep.subr.mxu0 0.0
        %4073 = vmatpush1.msra.mxu0 0.0
        %4074 = vmatprep.subr.mxu0 0.0
        %4075 = vmatpush1.msra.mxu0 0.0
        %4076 = vmatprep.subr.mxu0 0.0
        %4077 = vmatpush1.msra.mxu0 0.0
        %4078 = vmatprep.subr.mxu0 0.0
        %4079 = vmatpush1.msra.mxu0 0.0
        %4080 = vmatprep.subr.mxu0 0.0
        %4081 = vmatpush1.msra.mxu0 0.0
        %4082 = vmatprep.subr.mxu0 0.0
        %4083 = vmatpush1.msra.mxu0 0.0
        %4084 = vmatprep.subr.mxu0 0.0
        %4085 = vmatpush1.msra.mxu0 %v2833
        %4086 = vmatprep.subr.mxu0 0.0
        %4087 = vmatpush2.msra.mxu0 0.0
        %4088 = vmatprep.subr.mxu0 0.0
        %4089 = vmatpush2.msra.mxu0 0.0
        %4090 = vmatprep.subr.mxu0 0.0
        %4091 = vmatpush2.msra.mxu0 0.0
        %4092 = vmatprep.subr.mxu0 0.0
        %4093 = vmatpush2.msra.mxu0 0.0
        %4094 = vmatprep.subr.mxu0 0.0
        %4095 = vmatpush2.msra.mxu0 0.0
        %4096 = vmatprep.subr.mxu0 0.0
        %4097 = vmatpush2.msra.mxu0 0.0
        %4098 = vmatprep.subr.mxu0 0.0
        %4099 = vmatpush2.msra.mxu0 0.0
        %4100 = vmatprep.subr.mxu0 0.0
        %4101 = vmatpush2.msra.mxu0 0.0
        %4102 = vmatprep.subr.mxu0 0.0
        %4103 = vmatpush2.msra.mxu0 0.0
        %4104 = vmatprep.subr.mxu0 0.0
        %4105 = vmatpush2.msra.mxu0 0.0
        %4106 = vmatprep.subr.mxu0 0.0
        %4107 = vmatpush2.msra.mxu0 0.0
        %4108 = vmatprep.subr.mxu0 0.0
        %4109 = vmatpush2.msra.mxu0 0.0
        %4110 = vmatprep.subr.mxu0 0.0
        %4111 = vmatpush2.msra.mxu0 0.0
        %4112 = vmatprep.subr.mxu0 0.0
        %4113 = vmatpush2.msra.mxu0 0.0
        %4114 = vmatprep.subr.mxu0 0.0
        %4115 = vmatpush2.msra.mxu0 0.0
        %4116 = vmatprep.subr.mxu0 0.0
        %4117 = vmatpush2.msra.mxu0 0.0
        %4118 = vmatprep.mubr.f32.mxu0 0.0
        %4119 = vmatmul.mubr.f32.gmra.mxu0 %v4046
        %v4120 = vpop.f32.mrf.mxu0
        %v4121 = vadd.f32 0.0, %v4120
        %v4122 = vpop.f32.mrf.mxu0
        %4123 = vmatprep.mubr.f32.mxu0 0.0
        %4124 = vmatmul.mubr.f32.gmra.mxu0 %v4049
        %v4125 = vpop.f32.mrf.mxu0
        %v4126 = vadd.f32 0.0, %v4125
        %v4127 = vpop.f32.mrf.mxu0
        %4128 = vmatprep.mubr.f32.mxu0 0.0
        %4129 = vmatmul.mubr.f32.gmra.mxu0 %v4052
        %v4130 = vpop.f32.mrf.mxu0
        %v4131 = vadd.f32 0.0, %v4130
        %v4132 = vpop.f32.mrf.mxu0
        %4133 = vdwg.mxu0
        %v4134 = vadd.f32 %v3806, %v4121
        %v4135 = vadd.f32 %v3807, %v4126
        %v4136 = vadd.f32 %v3808, %v4131
        %v4137 = vadd.f32 %v2663, %v4134
        %v4138 = vadd.f32 %v2664, %v4135
        %v4139 = vadd.f32 %v2665, %v4136
        %s4140 = scalar_lea.vmem %s12, 1
        %v4141 = vld [vmem:[%s4140] sm:$0x1]
        %v4143 = vlaneseq
        %v4144 = vshrl.u32 %v4143, 7
        %v4145 = vsub.s32 0, %v4144
        %v4146 = vrot.slane %v4141, %v4145
        %v4148 = vadd.f32 %v4137, %v4146
        %v4149 = vadd.f32 %v4138, %v4146
        %v4150 = vadd.f32 %v4139, %v4146
        %s4151 = scalar_lea.vmem %s13, 1
        %v4152 = vld [vmem:[%s4151] sm:$0x1]
        %s4153 = scalar_lea.vmem %s14, 1
        %v4154 = vld [vmem:[%s4153] sm:$0x1]
        %v4155 = vsel %vm833, %v4148, 0.0
        %4156 = vadd.xlane.f32.xlu0 %v4155
        %v4157 = vpop.xlane.xlu0 %4156
        %v4158 = vsel %vm833, %v4149, 0.0
        %4159 = vadd.xlane.f32.xlu0 %v4158
        %v4160 = vpop.xlane.xlu0 %4159
        %v4161 = vsel %vm840, %v4150, 0.0
        %4162 = vadd.xlane.f32.xlu0 %v4161
        %v4163 = vpop.xlane.xlu0 %4162
        %v4164 = vmul.f32 %v4157, %v844
        %v4165 = vmul.f32 %v4160, %v844
        %v4166 = vmul.f32 %v4163, %v844
        %v4167 = vsub.f32 %v4148, %v4164
        %v4168 = vsub.f32 %v4149, %v4165
        %v4169 = vsub.f32 %v4150, %v4166
        %v4170 = vmul.f32 %v4167, %v4167
        %v4171 = vmul.f32 %v4168, %v4168
        %v4172 = vmul.f32 %v4169, %v4169
        %v4173 = vsel %vm833, %v4170, 0.0
        %4174 = vadd.xlane.f32.xlu0 %v4173
        %v4175 = vpop.xlane.xlu0 %4174
        %v4176 = vsel %vm833, %v4171, 0.0
        %4177 = vadd.xlane.f32.xlu0 %v4176
        %v4178 = vpop.xlane.xlu0 %4177
        %v4179 = vsel %vm840, %v4172, 0.0
        %4180 = vadd.xlane.f32.xlu0 %v4179
        %v4181 = vpop.xlane.xlu0 %4180
        %v4182 = vmul.f32 %v4175, %v844
        %v4183 = vmul.f32 %v4178, %v844
        %v4184 = vmul.f32 %v4181, %v844
        %v4185 = vadd.f32 %v4182, 1e-05
        %v4186 = vadd.f32 %v4183, 1e-05
        %v4187 = vadd.f32 %v4184, 1e-05
        %v4188 = vrsqrt.pop %v4185
        %v4189 = vrsqrt.pop %v4186
        %v4190 = vrsqrt.pop %v4187
        %v4191 = vmul.f32 %v4167, %v4188
        %v4192 = vmul.f32 %v4168, %v4189
        %v4193 = vmul.f32 %v4169, %v4190
        %v4195 = vlaneseq
        %v4196 = vshrl.u32 %v4195, 7
        %v4197 = vsub.s32 0, %v4196
        %v4198 = vrot.slane %v4152, %v4197
        %v4200 = vmul.f32 %v4191, %v4198
        %v4201 = vmul.f32 %v4192, %v4198
        %v4202 = vmul.f32 %v4193, %v4198
        %v4204 = vlaneseq
        %v4205 = vshrl.u32 %v4204, 7
        %v4206 = vsub.s32 0, %v4205
        %v4207 = vrot.slane %v4154, %v4206
        %v4209 = vadd.f32 %v4200, %v4207
        %v4210 = vadd.f32 %v4201, %v4207
        %v4211 = vadd.f32 %v4202, %v4207
        %s4212 = scalar_lea.vmem %s15, 32
        %v4213 = vld [vmem:[%s4212] sm:$0xff]
        %v4214 = vld [vmem:[%s4212 + $0x8] sm:$0xff]
        %v4215 = vld [vmem:[%s4212 + $0x10] sm:$0xff]
        %v4216 = vld [vmem:[%s4212 + $0x18] sm:$0xff]
        %s4217 = scalar_lea.vmem %s16, 1
        %v4218 = vld [vmem:[%s4217] sm:$0x1]
        %v4220 = vlaneseq
        %v4221 = vshrl.u32 %v4220, 7
        %v4222 = vsub.s32 0, %v4221
        %v4223 = vrot.slane %v4218, %v4222
        %v4226 = vsel %vm833, %v4209, 0
        %v4229 = vsel %vm833, %v4210, 0
        %v4232 = vsel %vm833, %v4211, 0
        %4234 = vmatprep.subr.mxu0 0.0
        %4235 = vmatpush1.msra.mxu0 0.0
        %4236 = vmatprep.subr.mxu0 0.0
        %4237 = vmatpush1.msra.mxu0 0.0
        %4238 = vmatprep.subr.mxu0 0.0
        %4239 = vmatpush1.msra.mxu0 0.0
        %4240 = vmatprep.subr.mxu0 0.0
        %4241 = vmatpush1.msra.mxu0 0.0
        %4242 = vmatprep.subr.mxu0 0.0
        %4243 = vmatpush1.msra.mxu0 0.0
        %4244 = vmatprep.subr.mxu0 0.0
        %4245 = vmatpush1.msra.mxu0 0.0
        %4246 = vmatprep.subr.mxu0 0.0
        %4247 = vmatpush1.msra.mxu0 0.0
        %4248 = vmatprep.subr.mxu0 0.0
        %4249 = vmatpush1.msra.mxu0 0.0
        %4250 = vmatprep.subr.mxu0 0.0
        %4251 = vmatpush1.msra.mxu0 0.0
        %4252 = vmatprep.subr.mxu0 0.0
        %4253 = vmatpush1.msra.mxu0 0.0
        %4254 = vmatprep.subr.mxu0 0.0
        %4255 = vmatpush1.msra.mxu0 0.0
        %4256 = vmatprep.subr.mxu0 0.0
        %4257 = vmatpush1.msra.mxu0 0.0
        %4258 = vmatprep.subr.mxu0 0.0
        %4259 = vmatpush1.msra.mxu0 %v4216
        %4260 = vmatprep.subr.mxu0 0.0
        %4261 = vmatpush1.msra.mxu0 %v4215
        %4262 = vmatprep.subr.mxu0 0.0
        %4263 = vmatpush1.msra.mxu0 %v4214
        %4264 = vmatprep.subr.mxu0 0.0
        %4265 = vmatpush1.msra.mxu0 %v4213
        %4266 = vmatprep.subr.mxu0 0.0
        %4267 = vmatpush2.msra.mxu0 0.0
        %4268 = vmatprep.subr.mxu0 0.0
        %4269 = vmatpush2.msra.mxu0 0.0
        %4270 = vmatprep.subr.mxu0 0.0
        %4271 = vmatpush2.msra.mxu0 0.0
        %4272 = vmatprep.subr.mxu0 0.0
        %4273 = vmatpush2.msra.mxu0 0.0
        %4274 = vmatprep.subr.mxu0 0.0
        %4275 = vmatpush2.msra.mxu0 0.0
        %4276 = vmatprep.subr.mxu0 0.0
        %4277 = vmatpush2.msra.mxu0 0.0
        %4278 = vmatprep.subr.mxu0 0.0
        %4279 = vmatpush2.msra.mxu0 0.0
        %4280 = vmatprep.subr.mxu0 0.0
        %4281 = vmatpush2.msra.mxu0 0.0
        %4282 = vmatprep.subr.mxu0 0.0
        %4283 = vmatpush2.msra.mxu0 0.0
        %4284 = vmatprep.subr.mxu0 0.0
        %4285 = vmatpush2.msra.mxu0 0.0
        %4286 = vmatprep.subr.mxu0 0.0
        %4287 = vmatpush2.msra.mxu0 0.0
        %4288 = vmatprep.subr.mxu0 0.0
        %4289 = vmatpush2.msra.mxu0 0.0
        %4290 = vmatprep.subr.mxu0 0.0
        %4291 = vmatpush2.msra.mxu0 0.0
        %4292 = vmatprep.subr.mxu0 0.0
        %4293 = vmatpush2.msra.mxu0 0.0
        %4294 = vmatprep.subr.mxu0 0.0
        %4295 = vmatpush2.msra.mxu0 0.0
        %4296 = vmatprep.subr.mxu0 0.0
        %4297 = vmatpush2.msra.mxu0 0.0
        %4298 = vmatprep.mubr.f32.mxu0 0.0
        %4299 = vmatmul.mubr.f32.gmra.mxu0 %v4226
        %v4300 = vpop.f32.mrf.mxu0
        %v4301 = vadd.f32 %v4223, %v4300
        %v4302 = vpop.f32.mrf.mxu0
        %4303 = vmatprep.mubr.f32.mxu0 0.0
        %4304 = vmatmul.mubr.f32.gmra.mxu0 %v4229
        %v4305 = vpop.f32.mrf.mxu0
        %v4306 = vadd.f32 %v4223, %v4305
        %v4307 = vpop.f32.mrf.mxu0
        %4308 = vmatprep.mubr.f32.mxu0 0.0
        %4309 = vmatmul.mubr.f32.gmra.mxu0 %v4232
        %v4310 = vpop.f32.mrf.mxu0
        %v4311 = vadd.f32 %v4223, %v4310
        %v4312 = vpop.f32.mrf.mxu0
        %4313 = vdwg.mxu0
        %v4314 = vmul.f32 %v4301, 1.702
        %v4315 = vmul.f32 %v4306, 1.702
        %v4316 = vmul.f32 %v4311, 1.702
        %v4317 = vxor.u32 %v4314, 2147483648
        %v4318 = vxor.u32 %v4315, 2147483648
        %v4319 = vxor.u32 %v4316, 2147483648
        %v4320 = vmul.f32 %v4317, 1.442695
        %v4321 = vpow.pop %v4320
        %v4322 = vmul.f32 %v4318, 1.442695
        %v4323 = vpow.pop %v4322
        %v4324 = vmul.f32 %v4319, 1.442695
        %v4325 = vpow.pop %v4324
        %v4326 = vadd.f32 %v4321, 1.0
        %v4327 = vadd.f32 %v4323, 1.0
        %v4328 = vadd.f32 %v4325, 1.0
        %v4329 = vrcp.pop %v4326
        %v4330 = vmul.f32 1.0, %v4329
        %v4331 = vrcp.pop %v4327
        %v4332 = vmul.f32 1.0, %v4331
        %v4333 = vrcp.pop %v4328
        %v4334 = vmul.f32 1.0, %v4333
        %v4335 = vmul.f32 %v4301, %v4330
        %v4336 = vmul.f32 %v4306, %v4332
        %v4337 = vmul.f32 %v4311, %v4334
        %s4338 = scalar_lea.vmem %s17, 64
        %v4339 = vld [vmem:[%s4338] sm:$0xff]
        %v4340 = vld [vmem:[%s4338 + $0x8] sm:$0xff]
        %v4341 = vld [vmem:[%s4338 + $0x10] sm:$0xff]
        %v4342 = vld [vmem:[%s4338 + $0x18] sm:$0xff]
        %v4343 = vld [vmem:[%s4338 + $0x20] sm:$0xff]
        %v4344 = vld [vmem:[%s4338 + $0x28] sm:$0xff]
        %v4345 = vld [vmem:[%s4338 + $0x30] sm:$0xff]
        %v4346 = vld [vmem:[%s4338 + $0x38] sm:$0xff]
        %s4347 = scalar_lea.vmem %s18, 1
        %v4348 = vld [vmem:[%s4347] sm:$0x1]
        %v4350 = vlaneseq
        %v4351 = vshrl.u32 %v4350, 7
        %v4352 = vsub.s32 0, %v4351
        %v4353 = vrot.slane %v4348, %v4352
        %v4356 = vsel %vm718, %v4335, 0
        %v4359 = vsel %vm718, %v4336, 0
        %v4362 = vsel %vm718, %v4337, 0
        %4364 = vmatprep.subr.mxu0 0.0
        %4365 = vmatpush1.msra.mxu0 0.0
        %4366 = vmatprep.subr.mxu0 0.0
        %4367 = vmatpush1.msra.mxu0 0.0
        %4368 = vmatprep.subr.mxu0 0.0
        %4369 = vmatpush1.msra.mxu0 0.0
        %4370 = vmatprep.subr.mxu0 0.0
        %4371 = vmatpush1.msra.mxu0 0.0
        %4372 = vmatprep.subr.mxu0 0.0
        %4373 = vmatpush1.msra.mxu0 0.0
        %4374 = vmatprep.subr.mxu0 0.0
        %4375 = vmatpush1.msra.mxu0 0.0
        %4376 = vmatprep.subr.mxu0 0.0
        %4377 = vmatpush1.msra.mxu0 0.0
        %4378 = vmatprep.subr.mxu0 0.0
        %4379 = vmatpush1.msra.mxu0 0.0
        %4380 = vmatprep.subr.mxu0 0.0
        %4381 = vmatpush1.msra.mxu0 %v4346
        %4382 = vmatprep.subr.mxu0 0.0
        %4383 = vmatpush1.msra.mxu0 %v4345
        %4384 = vmatprep.subr.mxu0 0.0
        %4385 = vmatpush1.msra.mxu0 %v4344
        %4386 = vmatprep.subr.mxu0 0.0
        %4387 = vmatpush1.msra.mxu0 %v4343
        %4388 = vmatprep.subr.mxu0 0.0
        %4389 = vmatpush1.msra.mxu0 %v4342
        %4390 = vmatprep.subr.mxu0 0.0
        %4391 = vmatpush1.msra.mxu0 %v4341
        %4392 = vmatprep.subr.mxu0 0.0
        %4393 = vmatpush1.msra.mxu0 %v4340
        %4394 = vmatprep.subr.mxu0 0.0
        %4395 = vmatpush1.msra.mxu0 %v4339
        %4396 = vmatprep.subr.mxu0 0.0
        %4397 = vmatpush2.msra.mxu0 0.0
        %4398 = vmatprep.subr.mxu0 0.0
        %4399 = vmatpush2.msra.mxu0 0.0
        %4400 = vmatprep.subr.mxu0 0.0
        %4401 = vmatpush2.msra.mxu0 0.0
        %4402 = vmatprep.subr.mxu0 0.0
        %4403 = vmatpush2.msra.mxu0 0.0
        %4404 = vmatprep.subr.mxu0 0.0
        %4405 = vmatpush2.msra.mxu0 0.0
        %4406 = vmatprep.subr.mxu0 0.0
        %4407 = vmatpush2.msra.mxu0 0.0
        %4408 = vmatprep.subr.mxu0 0.0
        %4409 = vmatpush2.msra.mxu0 0.0
        %4410 = vmatprep.subr.mxu0 0.0
        %4411 = vmatpush2.msra.mxu0 0.0
        %4412 = vmatprep.subr.mxu0 0.0
        %4413 = vmatpush2.msra.mxu0 0.0
        %4414 = vmatprep.subr.mxu0 0.0
        %4415 = vmatpush2.msra.mxu0 0.0
        %4416 = vmatprep.subr.mxu0 0.0
        %4417 = vmatpush2.msra.mxu0 0.0
        %4418 = vmatprep.subr.mxu0 0.0
        %4419 = vmatpush2.msra.mxu0 0.0
        %4420 = vmatprep.subr.mxu0 0.0
        %4421 = vmatpush2.msra.mxu0 0.0
        %4422 = vmatprep.subr.mxu0 0.0
        %4423 = vmatpush2.msra.mxu0 0.0
        %4424 = vmatprep.subr.mxu0 0.0
        %4425 = vmatpush2.msra.mxu0 0.0
        %4426 = vmatprep.subr.mxu0 0.0
        %4427 = vmatpush2.msra.mxu0 0.0
        %4428 = vmatprep.mubr.f32.mxu0 0.0
        %4429 = vmatmul.mubr.f32.gmra.mxu0 %v4356
        %v4430 = vpop.f32.mrf.mxu0
        %v4431 = vadd.f32 %v4353, %v4430
        %v4432 = vpop.f32.mrf.mxu0
        %4433 = vmatprep.mubr.f32.mxu0 0.0
        %4434 = vmatmul.mubr.f32.gmra.mxu0 %v4359
        %v4435 = vpop.f32.mrf.mxu0
        %v4436 = vpop.f32.mrf.mxu0
        %4437 = vmatprep.mubr.f32.mxu0 0.0
        %4438 = vmatmul.mubr.f32.gmra.mxu0 %v4362
        %v4439 = vpop.f32.mrf.mxu0
        %v4440 = vpop.f32.mrf.mxu0
        %4441 = vdwg.mxu0
        %v4442 = vadd.f32 %v4148, %v4431
        %v4443 = vld [vmem:[%s19] sm:$0x1]
        %v4444 = vld [vmem:[%s20] sm:$0x1]
        %v4445 = vsel %vm840, %v4442, 0.0
        %4446 = vadd.xlane.f32.xlu0 %v4445
        %v4447 = vpop.xlane.xlu0 %4446
        %v4448 = vmul.f32 %v4447, %v844
        %v4449 = vsub.f32 %v4442, %v4448
        %v4450 = vmul.f32 %v4449, %v4449
        %v4451 = vsel %vm840, %v4450, 0.0
        %4452 = vadd.xlane.f32.xlu0 %v4451
        %v4453 = vpop.xlane.xlu0 %4452
        %v4454 = vmul.f32 %v4453, %v844
        %v4455 = vadd.f32 %v4454, 1e-05
        %v4456 = vrsqrt.pop %v4455
        %v4457 = vmul.f32 %v4449, %v4456
        %v4458 = vmul.f32 %v4457, %v4443
        %v4459 = vadd.f32 %v4458, %v4444
        %v4460 = vld [vmem:[%s21] sm:$0xff]
        %v4461 = vld [vmem:[%s21 + $0x8] sm:$0xff]
        %v4462 = vld [vmem:[%s21 + $0x10] sm:$0xff]
        %v4463 = vld [vmem:[%s21 + $0x18] sm:$0xff]
        %v4465 = vsel %vm833, %v4459, 0
        %4467 = vmatprep.subr.mxu0 0.0
        %4468 = vmatpush1.msra.mxu0 0.0
        %4469 = vmatprep.subr.mxu0 0.0
        %4470 = vmatpush1.msra.mxu0 0.0
        %4471 = vmatprep.subr.mxu0 0.0
        %4472 = vmatpush1.msra.mxu0 0.0
        %4473 = vmatprep.subr.mxu0 0.0
        %4474 = vmatpush1.msra.mxu0 0.0
        %4475 = vmatprep.subr.mxu0 0.0
        %4476 = vmatpush1.msra.mxu0 0.0
        %4477 = vmatprep.subr.mxu0 0.0
        %4478 = vmatpush1.msra.mxu0 0.0
        %4479 = vmatprep.subr.mxu0 0.0
        %4480 = vmatpush1.msra.mxu0 0.0
        %4481 = vmatprep.subr.mxu0 0.0
        %4482 = vmatpush1.msra.mxu0 0.0
        %4483 = vmatprep.subr.mxu0 0.0
        %4484 = vmatpush1.msra.mxu0 0.0
        %4485 = vmatprep.subr.mxu0 0.0
        %4486 = vmatpush1.msra.mxu0 0.0
        %4487 = vmatprep.subr.mxu0 0.0
        %4488 = vmatpush1.msra.mxu0 0.0
        %4489 = vmatprep.subr.mxu0 0.0
        %4490 = vmatpush1.msra.mxu0 0.0
        %4491 = vmatprep.subr.mxu0 0.0
        %4492 = vmatpush1.msra.mxu0 %v4463
        %4493 = vmatprep.subr.mxu0 0.0
        %4494 = vmatpush1.msra.mxu0 %v4462
        %4495 = vmatprep.subr.mxu0 0.0
        %4496 = vmatpush1.msra.mxu0 %v4461
        %4497 = vmatprep.subr.mxu0 0.0
        %4498 = vmatpush1.msra.mxu0 %v4460
        %4499 = vmatprep.subr.mxu0 0.0
        %4500 = vmatpush2.msra.mxu0 0.0
        %4501 = vmatprep.subr.mxu0 0.0
        %4502 = vmatpush2.msra.mxu0 0.0
        %4503 = vmatprep.subr.mxu0 0.0
        %4504 = vmatpush2.msra.mxu0 0.0
        %4505 = vmatprep.subr.mxu0 0.0
        %4506 = vmatpush2.msra.mxu0 0.0
        %4507 = vmatprep.subr.mxu0 0.0
        %4508 = vmatpush2.msra.mxu0 0.0
        %4509 = vmatprep.subr.mxu0 0.0
        %4510 = vmatpush2.msra.mxu0 0.0
        %4511 = vmatprep.subr.mxu0 0.0
        %4512 = vmatpush2.msra.mxu0 0.0
        %4513 = vmatprep.subr.mxu0 0.0
        %4514 = vmatpush2.msra.mxu0 0.0
        %4515 = vmatprep.subr.mxu0 0.0
        %4516 = vmatpush2.msra.mxu0 0.0
        %4517 = vmatprep.subr.mxu0 0.0
        %4518 = vmatpush2.msra.mxu0 0.0
        %4519 = vmatprep.subr.mxu0 0.0
        %4520 = vmatpush2.msra.mxu0 0.0
        %4521 = vmatprep.subr.mxu0 0.0
        %4522 = vmatpush2.msra.mxu0 0.0
        %4523 = vmatprep.subr.mxu0 0.0
        %4524 = vmatpush2.msra.mxu0 0.0
        %4525 = vmatprep.subr.mxu0 0.0
        %4526 = vmatpush2.msra.mxu0 0.0
        %4527 = vmatprep.subr.mxu0 0.0
        %4528 = vmatpush2.msra.mxu0 0.0
        %4529 = vmatprep.subr.mxu0 0.0
        %4530 = vmatpush2.msra.mxu0 0.0
        %4531 = vmatprep.mubr.f32.mxu0 0.0
        %4532 = vmatmul.mubr.f32.gmra.mxu0 %v4465
        %v4533 = vpop.f32.mrf.mxu0
        %v4534 = vadd.f32 0.0, %v4533
        %v4535 = vpop.f32.mrf.mxu0
        %4536 = vdwg.mxu0
        %vm4537 = vcmask 122880
        %4538 = vst.msk [vmem:[%s675] sm:$0x1] %vm4537, %v4534
        %s4539 = sand.u32 %s511, 1
        %s4540 = scalar_lea.sflag [#allocation3], %s4539
        %s4541 = sand.u32 %s511, 1
        %s4542 = scalar_lea.vmem [#allocation2], %s4541
        // Predicated region
        $region109: #{_lambda_.1} parent=107 // pred_check
          %p4543 = pneg %p521
        $region110: #{_lambda_.1} parent=107 // pred_check_branch
          %4545 = sbr.rel (%p4543) target = $region112
        $region111: #{_lambda_.1} parent=107 // pred_region
          %s4547 = ssub.s32 16, 16
          %4548 = vsyncadd %s4540, %s4547
          %s4549 = smul.addr %s36, 16
          %s4550 = scalar_lea.hbm %s22, %s4549
          %s4552 = sshll.u32 %s4542, 4
          %s4553 = int_to_ptr.vmem [resolvable:$true] %s4552
          %4555 = dma.vmem_to_hbm [thread:$0]  %s4553, 16, %s4550, %s4540
        $region112: #{_lambda_.1} parent=107 // pred_fallthru
          _
      $region108: #{_lambda_.1} parent=5 // pred_fallthru
        _
      %p4556 = scmp.le.s32.totalorder 2, %s31
      // Predicated region
      $region113: #{_lambda_.1} parent=5 // pred_check
        %p4557 = pneg %p4556
      $region114: #{_lambda_.1} parent=5 // pred_check_branch
        %4559 = sbr.rel (%p4557) target = $region116
      $region115: #{_lambda_.1} parent=5 // pred_region
        %s4560 = ssub.s32 %s31, 2
        // Predicated region
        $region117: #{_lambda_.1} parent=115 // pred_check
          %p4561 = pneg %p527
        $region118: #{_lambda_.1} parent=115 // pred_check_branch
          %4563 = sbr.rel (%p4561) target = $region120
        $region119: #{_lambda_.1} parent=115 // pred_region
          %s4564 = sand.u32 %s512, 1
          %s4565 = scalar_lea.sflag [#allocation3], %s4564
          %s4566 = sand.u32 %s512, 1
          %s4567 = scalar_lea.vmem [#allocation2], %s4566
          %4568 = dma.done %s4565, 16
        $region120: #{_lambda_.1} parent=115 // pred_fallthru
          _
      $region116: #{_lambda_.1} parent=5 // pred_fallthru
        _
    $region6: #{_lambda_.1} parent=1 // loop_footer
      %s35 = sadd.s32 1, %s31
    $region7: #{_lambda_.1} parent=1 // loop_footer_branch
      %30 = sbr.rel target = $region3
    $region8: #{_lambda_.1} parent=1 // loop_exit
      _
    %4569 = vsyncpa [#allocation3], 1
    %s4570 = scalar_lea.sflag [#allocation3], 1
    %4571 = vsyncpa %s4570, 1

</llo_original>
